<compile_context>
chip_gen: v5e
topology: v5e:2x2
jax: 0.10.0
libtpu: 0.0.40
codegen_flags: <defaults>
</compile_context>

<pallas_src>
import jax
import jax.numpy as jnp
from jax.experimental import pallas as pl
from jax.experimental.pallas import tpu as pltpu


HEAD_DIMS = (3, 2, 2, 2)
N_HEAD_OUT = sum(HEAD_DIMS)      # 9 real logit columns
N_OUT_PAD = 128                  # lane-dense padded output width
MAX_TILE_B = 256                 # batch-tile rows when B is large


def _round_up(x, m):
    return ((x + m - 1) // m) * m


# ----------------------------------------------------------------------------
# Fused forward kernel (everything after GAP / masked mean-pool)
# ----------------------------------------------------------------------------
def fused_multimodal_kernel(gap_ref, pooled_ref,
                            w_img_ref, w_pool_ref,
                            w_cnnfc_ref, b_cnnfc_ref,
                            w_textfc_ref, b_textfc_ref,
                            w_comb_a_ref, w_comb_b_ref, b_comb_ref,
                            w_heads_ref, b_heads_ref,
                            out_ref):
    # image backbone stub tail: ReLU(gap @ W_img)            [tb, C] -> [tb, 512]
    # K = C (e.g. 4) is ~3% MXU K-utilization, so do it on the VPU instead:
    # C broadcast-FMAs over [tb, 512], then ReLU.
    gap = gap_ref[...].astype(jnp.float32)                    # [tb, C]
    w_img = w_img_ref[...].astype(jnp.float32)                # [C, 512]
    c_dim = gap.shape[1]
    img_raw = gap[:, 0:1] * w_img[0:1, :]
    for c in range(1, c_dim):                                 # static, tiny C
        img_raw = img_raw + gap[:, c:c + 1] * w_img[c:c + 1, :]
    img_raw = jnp.maximum(img_raw, 0.0).astype(jnp.bfloat16)  # [tb, 512]

    # BERT pooler stub: tanh(pooled @ W_pool)                 [tb, 768] -> [tb, 768]
    txt_raw = jnp.tanh(
        jnp.dot(pooled_ref[...], w_pool_ref[...],
                preferred_element_type=jnp.float32)).astype(jnp.bfloat16)

    # img_feat = self.cnn.fc(resnet_features)                 [tb, 512] -> [tb, 256]
    img_feat = (jnp.dot(img_raw, w_cnnfc_ref[...],
                        preferred_element_type=jnp.float32) + b_cnnfc_ref[...])

    # text_feat = self.text_fc(pooler_output)                 [tb, 768] -> [tb, 256]
    txt_feat = (jnp.dot(txt_raw, w_textfc_ref[...],
                        preferred_element_type=jnp.float32) + b_textfc_ref[...])

    # combined = cat([img_feat, text_feat], 1); x = combined_fc(combined)
    # concat-free: combined_fc weight split into two K=256 halves.
    x = (jnp.dot(img_feat.astype(jnp.bfloat16), w_comb_a_ref[...],
                 preferred_element_type=jnp.float32)
         + jnp.dot(txt_feat.astype(jnp.bfloat16), w_comb_b_ref[...],
                   preferred_element_type=jnp.float32)
         + b_comb_ref[...])

    # 4 heads (256->3, 256->2, 256->2, 256->2) packed column-wise into a
    # zero-padded [256, 128] weight -> lane-dense [tb, 128] output slab.
    out_ref[...] = (jnp.dot(x.astype(jnp.bfloat16), w_heads_ref[...],
                            preferred_element_type=jnp.float32) + b_heads_ref[...])


def multimodal_classifier_heads(gap, pooled, params):
    """Runs the fused Pallas kernel.  Returns packed logits [B, 9] (f32)."""
    B, C = gap.shape

    # bf16 MXU operands pack 16 sublanes per vreg -> pad batch to 16;
    # for large B, tile at 256 rows and pipeline over the batch grid.
    B_pad = max(16, _round_up(B, 16))
    if B_pad > MAX_TILE_B:
        tile_b = MAX_TILE_B
        B_pad = _round_up(B_pad, tile_b)
    else:
        tile_b = B_pad
    n_tiles = B_pad // tile_b

    gap_p = jnp.pad(gap.astype(jnp.bfloat16), ((0, B_pad - B), (0, 0)))
    pooled_p = jnp.pad(pooled.astype(jnp.bfloat16), ((0, B_pad - B), (0, 0)))

    weights = (params["w_img_stub"], params["w_pool_stub"],
               params["w_cnnfc"], params["b_cnnfc"],
               params["w_textfc"], params["b_textfc"],
               params["w_comb_a"], params["w_comb_b"], params["b_comb"],
               params["w_heads"], params["b_heads"])

    def act_spec(width):
        # activations / output: tiled along the batch grid axis
        return pl.BlockSpec((tile_b, width), lambda i: (i, 0))

    def resident_spec(arr):
        # weights: constant block index -> fetched once, stays VMEM-resident
        ndims = len(arr.shape)
        return pl.BlockSpec(arr.shape, lambda i, _n=ndims: (0,) * _n)

    # Advisory cost estimate so XLA can overlap the surrounding stub ops.
    # TODO(synk): for repeated serving-size calls, a cross-call weight-prefetch
    # pallas_call (semaphore/VMEM future) would hide the ~2.1 MB weight DMA.
    matmul_macs = (C * 512 + 768 * 768 + 512 * 256 + 768 * 256
                   + 2 * 256 * 256 + 256 * N_OUT_PAD)
    weight_bytes = sum(int(w.size) * w.dtype.itemsize for w in weights)
    act_bytes = (int(gap_p.size) + int(pooled_p.size)) * 2 + B_pad * N_OUT_PAD * 4
    cost = pl.CostEstimate(flops=2 * B_pad * matmul_macs,
                           transcendentals=B_pad * 768,
                           bytes_accessed=weight_bytes + act_bytes)

    out = pl.pallas_call(
        fused_multimodal_kernel,
        out_shape=jax.ShapeDtypeStruct((B_pad, N_OUT_PAD), jnp.float32),
        grid=(n_tiles,),
        in_specs=[act_spec(C), act_spec(768)]
                 + [resident_spec(w) for w in weights],
        out_specs=act_spec(N_OUT_PAD),
        compiler_params=pltpu.CompilerParams(
            dimension_semantics=("parallel",)),
        cost_estimate=cost,
    )(gap_p, pooled_p, *weights)
    return out[:B, :N_HEAD_OUT]


# ----------------------------------------------------------------------------
# Deterministic backbone stubs (plain JAX glue: gather / pooling only)
# ----------------------------------------------------------------------------
def multimodal_classifier_forward(image, input_ids, attention_mask, params):
    # TODO(synk): pretrained ResNet18 conv stack not translated; replaced by a
    # deterministic global-average-pool feeding the in-kernel linear+ReLU stub.
    B, C, H, W = image.shape
    gap = jnp.mean(image.reshape(B, C, H * W).astype(jnp.float32), axis=-1)  # [B, C]

    # TODO(synk): pretrained BERT encoder not translated; replaced by a masked
    # mean-pool over a deterministic bf16 embedding table (accumulated in f32);
    # the tanh "pooler" linear runs inside the Pallas kernel.
    emb = params["emb_table"][input_ids].astype(jnp.float32)                 # [B, S, 768]
    mask = attention_mask[..., None].astype(jnp.float32)
    pooled = (emb * mask).sum(axis=1) / jnp.maximum(mask.sum(axis=1), 1.0)   # [B, 768]

    logits = multimodal_classifier_heads(gap, pooled, params)                # [B, 9]
    outputs, off = [], 0
    for d in HEAD_DIMS:                                                      # [B,3],[B,2],[B,2],[B,2]
        outputs.append(logits[:, off:off + d])
        off += d
    return outputs


# ----------------------------------------------------------------------------
# Parameter construction (deterministic; matches module __init__ shapes)
# ----------------------------------------------------------------------------
def init_params(key, img_channels, vocab_size):
    ks = jax.random.split(key, 17)
    s = 0.02

    def w(k, shape):  # bf16 matmul weights, f32-accumulated in the kernel
        return (s * jax.random.normal(k, shape, jnp.float32)).astype(jnp.bfloat16)

    head_w = [w(ks[6 + i], (256, d)) for i, d in enumerate(HEAD_DIMS)]
    head_b = [s * jax.random.normal(ks[10 + i], (1, d), jnp.float32)
              for i, d in enumerate(HEAD_DIMS)]
    w_heads = jnp.pad(jnp.concatenate(head_w, axis=1),
                      ((0, 0), (0, N_OUT_PAD - N_HEAD_OUT)))            # [256, 128]
    b_heads = jnp.pad(jnp.concatenate(head_b, axis=1),
                      ((0, 0), (0, N_OUT_PAD - N_HEAD_OUT)))            # [1, 128]

    w_comb = w(ks[4], (512, 256))                                       # combined_fc

    return {
        # module parameters (weights stored as [in, out]):
        "w_cnnfc":  w(ks[0], (512, 256)),
        "b_cnnfc":  s * jax.random.normal(ks[1], (1, 256), jnp.float32),
        "w_textfc": w(ks[2], (768, 256)),
        "b_textfc": s * jax.random.normal(ks[3], (1, 256), jnp.float32),
        "w_comb_a": w_comb[:256, :],                                     # img half
        "w_comb_b": w_comb[256:, :],                                     # text half
        "b_comb":   s * jax.random.normal(ks[5], (1, 256), jnp.float32),
        "w_heads":  w_heads,
        "b_heads":  b_heads,
        # backbone stubs:
        "w_img_stub":  w(ks[14], (img_channels, 512)),
        "w_pool_stub": w(ks[15], (768, 768)),
        "emb_table":   w(ks[16], (vocab_size, 768)),
    }


# ----------------------------------------------------------------------------
if __name__ == "__main__":
    key = jax.random.PRNGKey(0)
    k_img, k_ids, k_mask, k_params = jax.random.split(key, 4)

    B, C, H, W = 2, 4, 16, 16      # NCHW image
    S, VOCAB = 8, 32               # token sequence

    image = jax.random.normal(k_img, (B, C, H, W), jnp.float32)
    input_ids = jax.random.randint(k_ids, (B, S), 0, VOCAB, jnp.int32)
    attention_mask = (jax.random.uniform(k_mask, (B, S)) > 0.2).astype(jnp.int32)

    params = init_params(k_params, C, VOCAB)

    fwd = jax.jit(multimodal_classifier_forward)
    outputs = fwd(image, input_ids, attention_mask, params)
    outputs = [jax.block_until_ready(o) for o in outputs]

    expected_shapes = [(B, 3), (B, 2), (B, 2), (B, 2)]
    assert [o.shape for o in outputs] == expected_shapes, \
        f"unexpected shapes: {[o.shape for o in outputs]}"
    assert all(bool(jnp.all(jnp.isfinite(o))) for o in outputs)

    print("KERNEL_OK")
</pallas_src>

<mosaic_0001>
module attributes {stable_mosaic.version = 11 : i64} {
  func.func @fused_multimodal_kernel(%arg0: i32, %arg1: memref<16x4xbf16, #tpu.memory_space<vmem>>, %arg2: memref<16x768xbf16, #tpu.memory_space<vmem>>, %arg3: memref<4x512xbf16, #tpu.memory_space<vmem>>, %arg4: memref<768x768xbf16, #tpu.memory_space<vmem>>, %arg5: memref<512x256xbf16, #tpu.memory_space<vmem>>, %arg6: memref<1x256xf32, #tpu.memory_space<vmem>>, %arg7: memref<768x256xbf16, #tpu.memory_space<vmem>>, %arg8: memref<1x256xf32, #tpu.memory_space<vmem>>, %arg9: memref<256x256xbf16, #tpu.memory_space<vmem>>, %arg10: memref<256x256xbf16, #tpu.memory_space<vmem>>, %arg11: memref<1x256xf32, #tpu.memory_space<vmem>>, %arg12: memref<256x128xbf16, #tpu.memory_space<vmem>>, %arg13: memref<1x128xf32, #tpu.memory_space<vmem>>, %arg14: memref<16x128xf32, #tpu.memory_space<vmem>>) attributes {dimension_semantics = [#tpu.dimension_semantics<parallel>], iteration_bounds = array<i64: 1>, scalar_prefetch = 0 : i64, scratch_operands = 0 : i64, tpu.core_type = #tpu.core_type<tc>, window_params = [{transform_indices = @transform_0, window_bounds = array<i64: 16, 4>}, {transform_indices = @transform_1, window_bounds = array<i64: 16, 768>}, {pipeline_mode = #tpu.pipeline_mode<synchronous>, transform_indices = @transform_2, window_bounds = array<i64: 4, 512>}, {pipeline_mode = #tpu.pipeline_mode<synchronous>, transform_indices = @transform_3, window_bounds = array<i64: 768, 768>}, {pipeline_mode = #tpu.pipeline_mode<synchronous>, transform_indices = @transform_4, window_bounds = array<i64: 512, 256>}, {pipeline_mode = #tpu.pipeline_mode<synchronous>, transform_indices = @transform_5, window_bounds = array<i64: 1, 256>}, {pipeline_mode = #tpu.pipeline_mode<synchronous>, transform_indices = @transform_6, window_bounds = array<i64: 768, 256>}, {pipeline_mode = #tpu.pipeline_mode<synchronous>, transform_indices = @transform_7, window_bounds = array<i64: 1, 256>}, {pipeline_mode = #tpu.pipeline_mode<synchronous>, transform_indices = @transform_8, window_bounds = array<i64: 256, 256>}, {pipeline_mode = #tpu.pipeline_mode<synchronous>, transform_indices = @transform_9, window_bounds = array<i64: 256, 256>}, {pipeline_mode = #tpu.pipeline_mode<synchronous>, transform_indices = @transform_10, window_bounds = array<i64: 1, 256>}, {pipeline_mode = #tpu.pipeline_mode<synchronous>, transform_indices = @transform_11, window_bounds = array<i64: 256, 128>}, {pipeline_mode = #tpu.pipeline_mode<synchronous>, transform_indices = @transform_12, window_bounds = array<i64: 1, 128>}, {transform_indices = @transform_13, window_bounds = array<i64: 16, 128>}]} {
    %c0 = arith.constant 0 : index
    %c0_0 = arith.constant 0 : index
    %0 = vector.load %arg1[%c0, %c0_0] : memref<16x4xbf16, #tpu.memory_space<vmem>>, vector<16x4xbf16>
    %1 = arith.extf %0 : vector<16x4xbf16> to vector<16x4xf32>
    %c0_1 = arith.constant 0 : index
    %c0_2 = arith.constant 0 : index
    %2 = vector.load %arg3[%c0_1, %c0_2] : memref<4x512xbf16, #tpu.memory_space<vmem>>, vector<4x512xbf16>
    %3 = arith.extf %2 : vector<4x512xbf16> to vector<4x512xf32>
    %4 = vector.extract_strided_slice %1 {offsets = [0, 0], sizes = [16, 1], strides = [1, 1]} : vector<16x4xf32> to vector<16x1xf32>
    %5 = vector.extract_strided_slice %3 {offsets = [0, 0], sizes = [1, 512], strides = [1, 1]} : vector<4x512xf32> to vector<1x512xf32>
    %6 = vector.broadcast %4 : vector<16x1xf32> to vector<16x512xf32>
    %7 = vector.broadcast %5 : vector<1x512xf32> to vector<16x512xf32>
    %8 = arith.mulf %6, %7 : vector<16x512xf32>
    %9 = vector.extract_strided_slice %1 {offsets = [0, 1], sizes = [16, 1], strides = [1, 1]} : vector<16x4xf32> to vector<16x1xf32>
    %10 = vector.extract_strided_slice %3 {offsets = [1, 0], sizes = [1, 512], strides = [1, 1]} : vector<4x512xf32> to vector<1x512xf32>
    %11 = vector.broadcast %9 : vector<16x1xf32> to vector<16x512xf32>
    %12 = vector.broadcast %10 : vector<1x512xf32> to vector<16x512xf32>
    %13 = arith.mulf %11, %12 : vector<16x512xf32>
    %14 = arith.addf %8, %13 : vector<16x512xf32>
    %15 = vector.extract_strided_slice %1 {offsets = [0, 2], sizes = [16, 1], strides = [1, 1]} : vector<16x4xf32> to vector<16x1xf32>
    %16 = vector.extract_strided_slice %3 {offsets = [2, 0], sizes = [1, 512], strides = [1, 1]} : vector<4x512xf32> to vector<1x512xf32>
    %17 = vector.broadcast %15 : vector<16x1xf32> to vector<16x512xf32>
    %18 = vector.broadcast %16 : vector<1x512xf32> to vector<16x512xf32>
    %19 = arith.mulf %17, %18 : vector<16x512xf32>
    %20 = arith.addf %14, %19 : vector<16x512xf32>
    %21 = vector.extract_strided_slice %1 {offsets = [0, 3], sizes = [16, 1], strides = [1, 1]} : vector<16x4xf32> to vector<16x1xf32>
    %22 = vector.extract_strided_slice %3 {offsets = [3, 0], sizes = [1, 512], strides = [1, 1]} : vector<4x512xf32> to vector<1x512xf32>
    %23 = vector.broadcast %21 : vector<16x1xf32> to vector<16x512xf32>
    %24 = vector.broadcast %22 : vector<1x512xf32> to vector<16x512xf32>
    %25 = arith.mulf %23, %24 : vector<16x512xf32>
    %26 = arith.addf %20, %25 : vector<16x512xf32>
    %cst = arith.constant 0.000000e+00 : f32
    %27 = vector.broadcast %cst : f32 to vector<16x512xf32>
    %28 = arith.maximumf %26, %27 : vector<16x512xf32>
    %29 = arith.truncf %28 : vector<16x512xf32> to vector<16x512xbf16>
    %c0_3 = arith.constant 0 : index
    %c0_4 = arith.constant 0 : index
    %30 = vector.load %arg2[%c0_3, %c0_4] : memref<16x768xbf16, #tpu.memory_space<vmem>>, vector<16x768xbf16>
    %c0_5 = arith.constant 0 : index
    %c0_6 = arith.constant 0 : index
    %31 = vector.load %arg4[%c0_5, %c0_6] : memref<768x768xbf16, #tpu.memory_space<vmem>>, vector<768x768xbf16>
    %cst_7 = arith.constant dense<0.000000e+00> : vector<16x768xf32>
    %32 = tpu.matmul %30, %31, %cst_7 {dimension_numbers = #tpu.dot_dimension_numbers<[1], [0], [0], [1], [0, 0, 1, 1], [], []>} : vector<16x768xbf16>, vector<768x768xbf16>, vector<16x768xf32> -> vector<16x768xf32>
    %33 = math.tanh %32 : vector<16x768xf32>
    %34 = arith.truncf %33 : vector<16x768xf32> to vector<16x768xbf16>
    %c0_8 = arith.constant 0 : index
    %c0_9 = arith.constant 0 : index
    %35 = vector.load %arg5[%c0_8, %c0_9] : memref<512x256xbf16, #tpu.memory_space<vmem>>, vector<512x256xbf16>
    %cst_10 = arith.constant dense<0.000000e+00> : vector<16x256xf32>
    %36 = tpu.matmul %29, %35, %cst_10 {dimension_numbers = #tpu.dot_dimension_numbers<[1], [0], [0], [1], [0, 0, 1, 1], [], []>} : vector<16x512xbf16>, vector<512x256xbf16>, vector<16x256xf32> -> vector<16x256xf32>
    %c0_11 = arith.constant 0 : index
    %c0_12 = arith.constant 0 : index
    %37 = vector.load %arg6[%c0_11, %c0_12] : memref<1x256xf32, #tpu.memory_space<vmem>>, vector<1x256xf32>
    %38 = vector.broadcast %37 : vector<1x256xf32> to vector<16x256xf32>
    %39 = arith.addf %36, %38 : vector<16x256xf32>
    %c0_13 = arith.constant 0 : index
    %c0_14 = arith.constant 0 : index
    %40 = vector.load %arg7[%c0_13, %c0_14] : memref<768x256xbf16, #tpu.memory_space<vmem>>, vector<768x256xbf16>
    %cst_15 = arith.constant dense<0.000000e+00> : vector<16x256xf32>
    %41 = tpu.matmul %34, %40, %cst_15 {dimension_numbers = #tpu.dot_dimension_numbers<[1], [0], [0], [1], [0, 0, 1, 1], [], []>} : vector<16x768xbf16>, vector<768x256xbf16>, vector<16x256xf32> -> vector<16x256xf32>
    %c0_16 = arith.constant 0 : index
    %c0_17 = arith.constant 0 : index
    %42 = vector.load %arg8[%c0_16, %c0_17] : memref<1x256xf32, #tpu.memory_space<vmem>>, vector<1x256xf32>
    %43 = vector.broadcast %42 : vector<1x256xf32> to vector<16x256xf32>
    %44 = arith.addf %41, %43 : vector<16x256xf32>
    %45 = arith.truncf %39 : vector<16x256xf32> to vector<16x256xbf16>
    %c0_18 = arith.constant 0 : index
    %c0_19 = arith.constant 0 : index
    %46 = vector.load %arg9[%c0_18, %c0_19] : memref<256x256xbf16, #tpu.memory_space<vmem>>, vector<256x256xbf16>
    %cst_20 = arith.constant dense<0.000000e+00> : vector<16x256xf32>
    %47 = tpu.matmul %45, %46, %cst_20 {dimension_numbers = #tpu.dot_dimension_numbers<[1], [0], [0], [1], [0, 0, 1, 1], [], []>} : vector<16x256xbf16>, vector<256x256xbf16>, vector<16x256xf32> -> vector<16x256xf32>
    %48 = arith.truncf %44 : vector<16x256xf32> to vector<16x256xbf16>
    %c0_21 = arith.constant 0 : index
    %c0_22 = arith.constant 0 : index
    %49 = vector.load %arg10[%c0_21, %c0_22] : memref<256x256xbf16, #tpu.memory_space<vmem>>, vector<256x256xbf16>
    %cst_23 = arith.constant dense<0.000000e+00> : vector<16x256xf32>
    %50 = tpu.matmul %48, %49, %cst_23 {dimension_numbers = #tpu.dot_dimension_numbers<[1], [0], [0], [1], [0, 0, 1, 1], [], []>} : vector<16x256xbf16>, vector<256x256xbf16>, vector<16x256xf32> -> vector<16x256xf32>
    %51 = arith.addf %47, %50 : vector<16x256xf32>
    %c0_24 = arith.constant 0 : index
    %c0_25 = arith.constant 0 : index
    %52 = vector.load %arg11[%c0_24, %c0_25] : memref<1x256xf32, #tpu.memory_space<vmem>>, vector<1x256xf32>
    %53 = vector.broadcast %52 : vector<1x256xf32> to vector<16x256xf32>
    %54 = arith.addf %51, %53 : vector<16x256xf32>
    %55 = arith.truncf %54 : vector<16x256xf32> to vector<16x256xbf16>
    %c0_26 = arith.constant 0 : index
    %c0_27 = arith.constant 0 : index
    %56 = vector.load %arg12[%c0_26, %c0_27] : memref<256x128xbf16, #tpu.memory_space<vmem>>, vector<256x128xbf16>
    %cst_28 = arith.constant dense<0.000000e+00> : vector<16x128xf32>
    %57 = tpu.matmul %55, %56, %cst_28 {dimension_numbers = #tpu.dot_dimension_numbers<[1], [0], [0], [1], [0, 0, 1, 1], [], []>} : vector<16x256xbf16>, vector<256x128xbf16>, vector<16x128xf32> -> vector<16x128xf32>
    %c0_29 = arith.constant 0 : index
    %c0_30 = arith.constant 0 : index
    %58 = vector.load %arg13[%c0_29, %c0_30] : memref<1x128xf32, #tpu.memory_space<vmem>>, vector<1x128xf32>
    %59 = vector.broadcast %58 : vector<1x128xf32> to vector<16x128xf32>
    %60 = arith.addf %57, %59 : vector<16x128xf32>
    %c0_31 = arith.constant 0 : index
    %c0_32 = arith.constant 0 : index
    %61 = vector.load %arg14[%c0_31, %c0_32] : memref<16x128xf32, #tpu.memory_space<vmem>>, vector<16x128xf32>
    tpu.vector_store %arg14[%c0_31, %c0_32], %60 {strides = array<i32>} : memref<16x128xf32, #tpu.memory_space<vmem>>, vector<16x128xf32>,
    return
  }
  func.func @transform_0(%arg0: i32) -> (i32, i32) {
    %c0_i32 = arith.constant 0 : i32
    %c0_i32_0 = arith.constant 0 : i32
    return %arg0, %c0_i32 : i32, i32
  }
  func.func @transform_1(%arg0: i32) -> (i32, i32) {
    %c0_i32 = arith.constant 0 : i32
    %c0_i32_0 = arith.constant 0 : i32
    return %arg0, %c0_i32 : i32, i32
  }
  func.func @transform_2(%arg0: i32) -> (i32, i32) {
    %c0_i32 = arith.constant 0 : i32
    %c0_i32_0 = arith.constant 0 : i32
    %c0_i32_1 = arith.constant 0 : i32
    return %c0_i32, %c0_i32_0 : i32, i32
  }
  func.func @transform_3(%arg0: i32) -> (i32, i32) {
    %c0_i32 = arith.constant 0 : i32
    %c0_i32_0 = arith.constant 0 : i32
    %c0_i32_1 = arith.constant 0 : i32
    return %c0_i32, %c0_i32_0 : i32, i32
  }
  func.func @transform_4(%arg0: i32) -> (i32, i32) {
    %c0_i32 = arith.constant 0 : i32
    %c0_i32_0 = arith.constant 0 : i32
    %c0_i32_1 = arith.constant 0 : i32
    return %c0_i32, %c0_i32_0 : i32, i32
  }
  func.func @transform_5(%arg0: i32) -> (i32, i32) {
    %c0_i32 = arith.constant 0 : i32
    %c0_i32_0 = arith.constant 0 : i32
    %c0_i32_1 = arith.constant 0 : i32
    return %c0_i32, %c0_i32_0 : i32, i32
  }
  func.func @transform_6(%arg0: i32) -> (i32, i32) {
    %c0_i32 = arith.constant 0 : i32
    %c0_i32_0 = arith.constant 0 : i32
    %c0_i32_1 = arith.constant 0 : i32
    return %c0_i32, %c0_i32_0 : i32, i32
  }
  func.func @transform_7(%arg0: i32) -> (i32, i32) {
    %c0_i32 = arith.constant 0 : i32
    %c0_i32_0 = arith.constant 0 : i32
    %c0_i32_1 = arith.constant 0 : i32
    return %c0_i32, %c0_i32_0 : i32, i32
  }
  func.func @transform_8(%arg0: i32) -> (i32, i32) {
    %c0_i32 = arith.constant 0 : i32
    %c0_i32_0 = arith.constant 0 : i32
    %c0_i32_1 = arith.constant 0 : i32
    return %c0_i32, %c0_i32_0 : i32, i32
  }
  func.func @transform_9(%arg0: i32) -> (i32, i32) {
    %c0_i32 = arith.constant 0 : i32
    %c0_i32_0 = arith.constant 0 : i32
    %c0_i32_1 = arith.constant 0 : i32
    return %c0_i32, %c0_i32_0 : i32, i32
  }
  func.func @transform_10(%arg0: i32) -> (i32, i32) {
    %c0_i32 = arith.constant 0 : i32
    %c0_i32_0 = arith.constant 0 : i32
    %c0_i32_1 = arith.constant 0 : i32
    return %c0_i32, %c0_i32_0 : i32, i32
  }
  func.func @transform_11(%arg0: i32) -> (i32, i32) {
    %c0_i32 = arith.constant 0 : i32
    %c0_i32_0 = arith.constant 0 : i32
    %c0_i32_1 = arith.constant 0 : i32
    return %c0_i32, %c0_i32_0 : i32, i32
  }
  func.func @transform_12(%arg0: i32) -> (i32, i32) {
    %c0_i32 = arith.constant 0 : i32
    %c0_i32_0 = arith.constant 0 : i32
    %c0_i32_1 = arith.constant 0 : i32
    return %c0_i32, %c0_i32_0 : i32, i32
  }
  func.func @transform_13(%arg0: i32) -> (i32, i32) {
    %c0_i32 = arith.constant 0 : i32
    %c0_i32_0 = arith.constant 0 : i32
    return %arg0, %c0_i32 : i32, i32
  }
}

</mosaic_0001>

<llo_original>
// kernel: multimodal_classifier_forward.1
$region0: #{multimodal_classifier_forward.1}
  #allocation0 [shape = 'u32[]', space=smem, size = 0x4, offset = 0x4, fixed_abs, tag = 'smem constant byte address 0x4 - core index']
  #allocation1 [shape = 'u32[72,128]{1,0:T(1,128)}', space=vmem, size = 0x9000, scoped, tag = 'internal scratch']
  %s0 = inlined_call_operand.vmem [shape: bf16[16,4], index: 0, kind: input, shape index: {}]
  %s1 = inlined_call_operand.vmem [shape: bf16[16,768], index: 1, kind: input, shape index: {}]
  %s2 = inlined_call_operand.hbm [shape: bf16[4,512], index: 2, kind: input, shape index: {}]
  %s3 = inlined_call_operand.hbm [shape: bf16[768,768], index: 3, kind: input, shape index: {}]
  %s4 = inlined_call_operand.hbm [shape: bf16[512,256], index: 4, kind: input, shape index: {}]
  %s5 = inlined_call_operand.hbm [shape: f32[1,256], index: 5, kind: input, shape index: {}]
  %s6 = inlined_call_operand.hbm [shape: bf16[768,256], index: 6, kind: input, shape index: {}]
  %s7 = inlined_call_operand.hbm [shape: f32[1,256], index: 7, kind: input, shape index: {}]
  %s8 = inlined_call_operand.hbm [shape: bf16[256,256], index: 8, kind: input, shape index: {}]
  %s9 = inlined_call_operand.hbm [shape: bf16[256,256], index: 9, kind: input, shape index: {}]
  %s10 = inlined_call_operand.hbm [shape: f32[1,256], index: 10, kind: input, shape index: {}]
  %s11 = inlined_call_operand.hbm [shape: bf16[256,128], index: 11, kind: input, shape index: {}]
  %s12 = inlined_call_operand.hbm [shape: f32[1,128], index: 12, kind: input, shape index: {}]
  %s13 = inlined_call_operand.vmem [shape: f32[16,128], index: 13, kind: output, shape index: {}]
  %s14 = sld [smem:[#allocation0]]
  $region106: #{multimodal_classifier_forward.1} parent=0
    _
  %s16 = ssub.s32 1, %s14
  %s17 = scalar_select 0, %s16, %s14
  $region1: #{multimodal_classifier_forward.1} parent=0
    #allocation2 [shape = 'u8[4096]{0}', space=vmem, size = 0x1000, scoped, tag = 'input window, operand 2, single buffered']
    #allocation3 [shape = 's32[1]{0}', space=sflag, size = 0x4, scoped, tag = 'scoped memory for multimodal_classifier_forward.1']
    #allocation4 [shape = 'u8[1179648]{0}', space=vmem, size = 0x120000, scoped, tag = 'input window, operand 3, single buffered']
    #allocation5 [shape = 's32[1]{0}', space=sflag, size = 0x4, scoped, tag = 'scoped memory for multimodal_classifier_forward.1']
    #allocation6 [shape = 'u8[262144]{0}', space=vmem, size = 0x40000, scoped, tag = 'input window, operand 4, single buffered']
    #allocation7 [shape = 'u8[1024]{0}', space=vmem, size = 0x400, scoped, tag = 'input window, operand 5, single buffered']
    #allocation8 [shape = 's32[1]{0}', space=sflag, size = 0x4, scoped, tag = 'scoped memory for multimodal_classifier_forward.1']
    #allocation9 [shape = 'u8[393216]{0}', space=vmem, size = 0x60000, scoped, tag = 'input window, operand 6, single buffered']
    #allocation10 [shape = 'u8[1024]{0}', space=vmem, size = 0x400, scoped, tag = 'input window, operand 7, single buffered']
    #allocation11 [shape = 's32[1]{0}', space=sflag, size = 0x4, scoped, tag = 'scoped memory for multimodal_classifier_forward.1']
    #allocation12 [shape = 'u8[131072]{0}', space=vmem, size = 0x20000, scoped, tag = 'input window, operand 8, single buffered']
    #allocation13 [shape = 'u8[131072]{0}', space=vmem, size = 0x20000, scoped, tag = 'input window, operand 9, single buffered']
    #allocation14 [shape = 's32[1]{0}', space=sflag, size = 0x4, scoped, tag = 'scoped memory for multimodal_classifier_forward.1']
    #allocation15 [shape = 'u8[1024]{0}', space=vmem, size = 0x400, scoped, tag = 'input window, operand 10, single buffered']
    #allocation16 [shape = 'u8[65536]{0}', space=vmem, size = 0x10000, scoped, tag = 'input window, operand 11, single buffered']
    #allocation17 [shape = 's32[1]{0}', space=sflag, size = 0x4, scoped, tag = 'scoped memory for multimodal_classifier_forward.1']
    #allocation18 [shape = 'u8[512]{0}', space=vmem, size = 0x400, scoped, tag = 'input window, operand 12, single buffered']
    %18 = vsyncpa [#allocation3], 0
    %19 = vsyncpa [#allocation5], 0
    %20 = vsyncpa [#allocation8], 0
    %21 = vsyncpa [#allocation11], 0
    %22 = vsyncpa [#allocation14], 0
    %23 = vsyncpa [#allocation17], 0
    // Predicated region
    $region2: #{multimodal_classifier_forward.1} parent=1 // pred_check
      _
    $region3: #{multimodal_classifier_forward.1} parent=1 // pred_check_branch
      %25 = sbr.rel (0) target = $region5
    $region4: #{multimodal_classifier_forward.1} parent=1 // pred_region
      _
    $region5: #{multimodal_classifier_forward.1} parent=1 // pred_fallthru
      _
    // Predicated region
    $region6: #{multimodal_classifier_forward.1} parent=1 // pred_check
      _
    $region7: #{multimodal_classifier_forward.1} parent=1 // pred_check_branch
      %27 = sbr.rel (0) target = $region9
    $region8: #{multimodal_classifier_forward.1} parent=1 // pred_region
      _
    $region9: #{multimodal_classifier_forward.1} parent=1 // pred_fallthru
      _
    // Predicated region
    $region10: #{multimodal_classifier_forward.1} parent=1 // pred_check
      _
    $region11: #{multimodal_classifier_forward.1} parent=1 // pred_check_branch
      %29 = sbr.rel (0) target = $region13
    $region12: #{multimodal_classifier_forward.1} parent=1 // pred_region
      %31 = vsyncadd [#allocation3], 0
      %s33 = sshll.u32 %s2, 4
      %s34 = int_to_ptr.hbm [resolvable:$true] %s33
      %s35 = sshll.u32 [#allocation2], 4
      %s36 = int_to_ptr.vmem [resolvable:$true] %s35
      %38 = dma.hbm_to_vmem [thread:$0]  %s34, 128, %s36, [#allocation3]
    $region13: #{multimodal_classifier_forward.1} parent=1 // pred_fallthru
      _
    // Predicated region
    $region14: #{multimodal_classifier_forward.1} parent=1 // pred_check
      _
    $region15: #{multimodal_classifier_forward.1} parent=1 // pred_check_branch
      %40 = sbr.rel (0) target = $region17
    $region16: #{multimodal_classifier_forward.1} parent=1 // pred_region
      %42 = vsyncadd [#allocation5], 0
      %s43 = sshll.u32 %s3, 4
      %s44 = int_to_ptr.hbm [resolvable:$true] %s43
      %s45 = sshll.u32 [#allocation4], 4
      %s46 = int_to_ptr.vmem [resolvable:$true] %s45
      %51 = dma.hbm_to_vmem [thread:$0]  %s44, 36864, %s46, [#allocation5], 384, 384, 24
    $region17: #{multimodal_classifier_forward.1} parent=1 // pred_fallthru
      _
    // Predicated region
    $region18: #{multimodal_classifier_forward.1} parent=1 // pred_check
      _
    $region19: #{multimodal_classifier_forward.1} parent=1 // pred_check_branch
      %53 = sbr.rel (0) target = $region21
    $region20: #{multimodal_classifier_forward.1} parent=1 // pred_region
      %55 = vsyncadd [#allocation5], 0
      %s56 = sshll.u32 %s4, 4
      %s57 = int_to_ptr.hbm [resolvable:$true] %s56
      %s58 = sshll.u32 [#allocation6], 4
      %s59 = int_to_ptr.vmem [resolvable:$true] %s58
      %64 = dma.hbm_to_vmem [thread:$0]  %s57, 8192, %s59, [#allocation5], 128, 128, 8
    $region21: #{multimodal_classifier_forward.1} parent=1 // pred_fallthru
      _
    // Predicated region
    $region22: #{multimodal_classifier_forward.1} parent=1 // pred_check
      _
    $region23: #{multimodal_classifier_forward.1} parent=1 // pred_check_branch
      %66 = sbr.rel (0) target = $region25
    $region24: #{multimodal_classifier_forward.1} parent=1 // pred_region
      %68 = vsyncadd [#allocation8], 0
      %s70 = sshll.u32 %s5, 4
      %s71 = int_to_ptr.hbm [resolvable:$true] %s70
      %s72 = sshll.u32 [#allocation7], 4
      %s73 = int_to_ptr.vmem [resolvable:$true] %s72
      %75 = dma.hbm_to_vmem [thread:$0]  %s71, 32, %s73, [#allocation8]
    $region25: #{multimodal_classifier_forward.1} parent=1 // pred_fallthru
      _
    // Predicated region
    $region26: #{multimodal_classifier_forward.1} parent=1 // pred_check
      _
    $region27: #{multimodal_classifier_forward.1} parent=1 // pred_check_branch
      %77 = sbr.rel (0) target = $region29
    $region28: #{multimodal_classifier_forward.1} parent=1 // pred_region
      %79 = vsyncadd [#allocation8], 0
      %s80 = sshll.u32 %s6, 4
      %s81 = int_to_ptr.hbm [resolvable:$true] %s80
      %s82 = sshll.u32 [#allocation9], 4
      %s83 = int_to_ptr.vmem [resolvable:$true] %s82
      %88 = dma.hbm_to_vmem [thread:$0]  %s81, 12288, %s83, [#allocation8], 128, 128, 8
    $region29: #{multimodal_classifier_forward.1} parent=1 // pred_fallthru
      _
    // Predicated region
    $region30: #{multimodal_classifier_forward.1} parent=1 // pred_check
      _
    $region31: #{multimodal_classifier_forward.1} parent=1 // pred_check_branch
      %90 = sbr.rel (0) target = $region33
    $region32: #{multimodal_classifier_forward.1} parent=1 // pred_region
      %92 = vsyncadd [#allocation11], 0
      %s94 = sshll.u32 %s7, 4
      %s95 = int_to_ptr.hbm [resolvable:$true] %s94
      %s96 = sshll.u32 [#allocation10], 4
      %s97 = int_to_ptr.vmem [resolvable:$true] %s96
      %99 = dma.hbm_to_vmem [thread:$0]  %s95, 32, %s97, [#allocation11]
    $region33: #{multimodal_classifier_forward.1} parent=1 // pred_fallthru
      _
    // Predicated region
    $region34: #{multimodal_classifier_forward.1} parent=1 // pred_check
      _
    $region35: #{multimodal_classifier_forward.1} parent=1 // pred_check_branch
      %101 = sbr.rel (0) target = $region37
    $region36: #{multimodal_classifier_forward.1} parent=1 // pred_region
      %103 = vsyncadd [#allocation11], 0
      %s104 = sshll.u32 %s8, 4
      %s105 = int_to_ptr.hbm [resolvable:$true] %s104
      %s106 = sshll.u32 [#allocation12], 4
      %s107 = int_to_ptr.vmem [resolvable:$true] %s106
      %112 = dma.hbm_to_vmem [thread:$0]  %s105, 4096, %s107, [#allocation11], 128, 128, 8
    $region37: #{multimodal_classifier_forward.1} parent=1 // pred_fallthru
      _
    // Predicated region
    $region38: #{multimodal_classifier_forward.1} parent=1 // pred_check
      _
    $region39: #{multimodal_classifier_forward.1} parent=1 // pred_check_branch
      %114 = sbr.rel (0) target = $region41
    $region40: #{multimodal_classifier_forward.1} parent=1 // pred_region
      %116 = vsyncadd [#allocation14], 0
      %s117 = sshll.u32 %s9, 4
      %s118 = int_to_ptr.hbm [resolvable:$true] %s117
      %s119 = sshll.u32 [#allocation13], 4
      %s120 = int_to_ptr.vmem [resolvable:$true] %s119
      %125 = dma.hbm_to_vmem [thread:$0]  %s118, 4096, %s120, [#allocation14], 128, 128, 8
    $region41: #{multimodal_classifier_forward.1} parent=1 // pred_fallthru
      _
    // Predicated region
    $region42: #{multimodal_classifier_forward.1} parent=1 // pred_check
      _
    $region43: #{multimodal_classifier_forward.1} parent=1 // pred_check_branch
      %127 = sbr.rel (0) target = $region45
    $region44: #{multimodal_classifier_forward.1} parent=1 // pred_region
      %129 = vsyncadd [#allocation14], 0
      %s131 = sshll.u32 %s10, 4
      %s132 = int_to_ptr.hbm [resolvable:$true] %s131
      %s133 = sshll.u32 [#allocation15], 4
      %s134 = int_to_ptr.vmem [resolvable:$true] %s133
      %136 = dma.hbm_to_vmem [thread:$0]  %s132, 32, %s134, [#allocation14]
    $region45: #{multimodal_classifier_forward.1} parent=1 // pred_fallthru
      _
    // Predicated region
    $region46: #{multimodal_classifier_forward.1} parent=1 // pred_check
      _
    $region47: #{multimodal_classifier_forward.1} parent=1 // pred_check_branch
      %138 = sbr.rel (0) target = $region49
    $region48: #{multimodal_classifier_forward.1} parent=1 // pred_region
      %140 = vsyncadd [#allocation17], 0
      %s141 = sshll.u32 %s11, 4
      %s142 = int_to_ptr.hbm [resolvable:$true] %s141
      %s143 = sshll.u32 [#allocation16], 4
      %s144 = int_to_ptr.vmem [resolvable:$true] %s143
      %149 = dma.hbm_to_vmem [thread:$0]  %s142, 2048, %s144, [#allocation17], 64, 64, 4
    $region49: #{multimodal_classifier_forward.1} parent=1 // pred_fallthru
      _
    // Predicated region
    $region50: #{multimodal_classifier_forward.1} parent=1 // pred_check
      _
    $region51: #{multimodal_classifier_forward.1} parent=1 // pred_check_branch
      %151 = sbr.rel (0) target = $region53
    $region52: #{multimodal_classifier_forward.1} parent=1 // pred_region
      %153 = vsyncadd [#allocation17], 0
      %s155 = sshll.u32 %s12, 4
      %s156 = int_to_ptr.hbm [resolvable:$true] %s155
      %s157 = sshll.u32 [#allocation18], 4
      %s158 = int_to_ptr.vmem [resolvable:$true] %s157
      %160 = dma.hbm_to_vmem [thread:$0]  %s156, 16, %s158, [#allocation17]
    $region53: #{multimodal_classifier_forward.1} parent=1 // pred_fallthru
      _
    // Predicated region
    $region54: #{multimodal_classifier_forward.1} parent=1 // pred_check
      _
    $region55: #{multimodal_classifier_forward.1} parent=1 // pred_check_branch
      %162 = sbr.rel (0) target = $region57
    $region56: #{multimodal_classifier_forward.1} parent=1 // pred_region
      %164 = dma.done [#allocation3], 128
    $region57: #{multimodal_classifier_forward.1} parent=1 // pred_fallthru
      _
    // Predicated region
    $region58: #{multimodal_classifier_forward.1} parent=1 // pred_check
      _
    $region59: #{multimodal_classifier_forward.1} parent=1 // pred_check_branch
      %166 = sbr.rel (0) target = $region61
    $region60: #{multimodal_classifier_forward.1} parent=1 // pred_region
      %168 = dma.done [#allocation5], 36864
    $region61: #{multimodal_classifier_forward.1} parent=1 // pred_fallthru
      _
    // Predicated region
    $region62: #{multimodal_classifier_forward.1} parent=1 // pred_check
      _
    $region63: #{multimodal_classifier_forward.1} parent=1 // pred_check_branch
      %170 = sbr.rel (0) target = $region65
    $region64: #{multimodal_classifier_forward.1} parent=1 // pred_region
      %172 = dma.done [#allocation5], 8192
    $region65: #{multimodal_classifier_forward.1} parent=1 // pred_fallthru
      _
    // Predicated region
    $region66: #{multimodal_classifier_forward.1} parent=1 // pred_check
      _
    $region67: #{multimodal_classifier_forward.1} parent=1 // pred_check_branch
      %174 = sbr.rel (0) target = $region69
    $region68: #{multimodal_classifier_forward.1} parent=1 // pred_region
      %176 = dma.done [#allocation8], 32
    $region69: #{multimodal_classifier_forward.1} parent=1 // pred_fallthru
      _
    // Predicated region
    $region70: #{multimodal_classifier_forward.1} parent=1 // pred_check
      _
    $region71: #{multimodal_classifier_forward.1} parent=1 // pred_check_branch
      %178 = sbr.rel (0) target = $region73
    $region72: #{multimodal_classifier_forward.1} parent=1 // pred_region
      %180 = dma.done [#allocation8], 12288
    $region73: #{multimodal_classifier_forward.1} parent=1 // pred_fallthru
      _
    // Predicated region
    $region74: #{multimodal_classifier_forward.1} parent=1 // pred_check
      _
    $region75: #{multimodal_classifier_forward.1} parent=1 // pred_check_branch
      %182 = sbr.rel (0) target = $region77
    $region76: #{multimodal_classifier_forward.1} parent=1 // pred_region
      %184 = dma.done [#allocation11], 32
    $region77: #{multimodal_classifier_forward.1} parent=1 // pred_fallthru
      _
    // Predicated region
    $region78: #{multimodal_classifier_forward.1} parent=1 // pred_check
      _
    $region79: #{multimodal_classifier_forward.1} parent=1 // pred_check_branch
      %186 = sbr.rel (0) target = $region81
    $region80: #{multimodal_classifier_forward.1} parent=1 // pred_region
      %188 = dma.done [#allocation11], 4096
    $region81: #{multimodal_classifier_forward.1} parent=1 // pred_fallthru
      _
    // Predicated region
    $region82: #{multimodal_classifier_forward.1} parent=1 // pred_check
      _
    $region83: #{multimodal_classifier_forward.1} parent=1 // pred_check_branch
      %190 = sbr.rel (0) target = $region85
    $region84: #{multimodal_classifier_forward.1} parent=1 // pred_region
      %192 = dma.done [#allocation14], 4096
    $region85: #{multimodal_classifier_forward.1} parent=1 // pred_fallthru
      _
    // Predicated region
    $region86: #{multimodal_classifier_forward.1} parent=1 // pred_check
      _
    $region87: #{multimodal_classifier_forward.1} parent=1 // pred_check_branch
      %194 = sbr.rel (0) target = $region89
    $region88: #{multimodal_classifier_forward.1} parent=1 // pred_region
      %196 = dma.done [#allocation14], 32
    $region89: #{multimodal_classifier_forward.1} parent=1 // pred_fallthru
      _
    // Predicated region
    $region90: #{multimodal_classifier_forward.1} parent=1 // pred_check
      _
    $region91: #{multimodal_classifier_forward.1} parent=1 // pred_check_branch
      %198 = sbr.rel (0) target = $region93
    $region92: #{multimodal_classifier_forward.1} parent=1 // pred_region
      %200 = dma.done [#allocation17], 2048
    $region93: #{multimodal_classifier_forward.1} parent=1 // pred_fallthru
      _
    // Predicated region
    $region94: #{multimodal_classifier_forward.1} parent=1 // pred_check
      _
    $region95: #{multimodal_classifier_forward.1} parent=1 // pred_check_branch
      %202 = sbr.rel (0) target = $region97
    $region96: #{multimodal_classifier_forward.1} parent=1 // pred_region
      %204 = dma.done [#allocation17], 16
    $region97: #{multimodal_classifier_forward.1} parent=1 // pred_fallthru
      _
    %v205 = vld [vmem:[%s0] sm:$0xf]
    %v206 = vld [vmem:[%s0 + $0x4] sm:$0xf]
    %v207 = vunpack.c.l.bf16 %v205
    %v208 = vunpack.c.l.bf16 %v206
    %v209 = vld [vmem:[#allocation2] sm:$0xff]
    %v210 = vunpack.c.l.bf16 %v209
    %v211 = vunpack.c.h.bf16 %v209
    %213 = vset.pattern.permute.xlu0 0
    %214 = vperm.xlu0 %213, %v207
    %v215 = vpop.permute.xlu0 %214
    %218 = vset.pattern.permute.xlu0 0
    %219 = vperm.xlu0 %218, %v208
    %v220 = vpop.permute.xlu0 %219
    %v224 = vperm.slane %v210, 0
    %v225 = vperm.slane %v210, 4
    %v226 = vperm.slane %v211, 0
    %v227 = vperm.slane %v211, 4
    %v232 = vperm.slane %v224, 0
    %v233 = vperm.slane %v225, 0
    %v234 = vperm.slane %v226, 0
    %v235 = vperm.slane %v227, 0
    %v236 = vmul.f32 %v215, %v232
    %v237 = vmul.f32 %v215, %v233
    %v238 = vmul.f32 %v215, %v234
    %v239 = vmul.f32 %v215, %v235
    %v240 = vmul.f32 %v220, %v232
    %v241 = vmul.f32 %v220, %v233
    %v242 = vmul.f32 %v220, %v234
    %v243 = vmul.f32 %v220, %v235
    %244 = vset.pattern.permute.xlu0 1
    %245 = vperm.xlu0 %244, %v207
    %v246 = vpop.permute.xlu0 %245
    %248 = vset.pattern.permute.xlu0 1
    %249 = vperm.xlu0 %248, %v208
    %v250 = vpop.permute.xlu0 %249
    %v252 = vperm.slane %v210, 1
    %v253 = vperm.slane %v210, 5
    %v254 = vperm.slane %v211, 1
    %v255 = vperm.slane %v211, 5
    %v260 = vperm.slane %v252, 1
    %v261 = vperm.slane %v253, 1
    %v262 = vperm.slane %v254, 1
    %v263 = vperm.slane %v255, 1
    %v264 = vmul.f32 %v246, %v260
    %v265 = vmul.f32 %v246, %v261
    %v266 = vmul.f32 %v246, %v262
    %v267 = vmul.f32 %v246, %v263
    %v268 = vmul.f32 %v250, %v260
    %v269 = vmul.f32 %v250, %v261
    %v270 = vmul.f32 %v250, %v262
    %v271 = vmul.f32 %v250, %v263
    %v272 = vadd.f32 %v236, %v264
    %v273 = vadd.f32 %v237, %v265
    %v274 = vadd.f32 %v238, %v266
    %v275 = vadd.f32 %v239, %v267
    %v276 = vadd.f32 %v240, %v268
    %v277 = vadd.f32 %v241, %v269
    %v278 = vadd.f32 %v242, %v270
    %v279 = vadd.f32 %v243, %v271
    %280 = vset.pattern.permute.xlu0 2
    %281 = vperm.xlu0 %280, %v207
    %v282 = vpop.permute.xlu0 %281
    %284 = vset.pattern.permute.xlu0 2
    %285 = vperm.xlu0 %284, %v208
    %v286 = vpop.permute.xlu0 %285
    %v288 = vperm.slane %v210, 2
    %v289 = vperm.slane %v210, 6
    %v290 = vperm.slane %v211, 2
    %v291 = vperm.slane %v211, 6
    %v296 = vperm.slane %v288, 2
    %v297 = vperm.slane %v289, 2
    %v298 = vperm.slane %v290, 2
    %v299 = vperm.slane %v291, 2
    %v300 = vmul.f32 %v282, %v296
    %v301 = vmul.f32 %v282, %v297
    %v302 = vmul.f32 %v282, %v298
    %v303 = vmul.f32 %v282, %v299
    %v304 = vmul.f32 %v286, %v296
    %v305 = vmul.f32 %v286, %v297
    %v306 = vmul.f32 %v286, %v298
    %v307 = vmul.f32 %v286, %v299
    %v308 = vadd.f32 %v272, %v300
    %v309 = vadd.f32 %v273, %v301
    %v310 = vadd.f32 %v274, %v302
    %v311 = vadd.f32 %v275, %v303
    %v312 = vadd.f32 %v276, %v304
    %v313 = vadd.f32 %v277, %v305
    %v314 = vadd.f32 %v278, %v306
    %v315 = vadd.f32 %v279, %v307
    %316 = vset.pattern.permute.xlu0 3
    %317 = vperm.xlu0 %316, %v207
    %v318 = vpop.permute.xlu0 %317
    %320 = vset.pattern.permute.xlu0 3
    %321 = vperm.xlu0 %320, %v208
    %v322 = vpop.permute.xlu0 %321
    %v324 = vperm.slane %v210, 3
    %v325 = vperm.slane %v210, 7
    %v326 = vperm.slane %v211, 3
    %v327 = vperm.slane %v211, 7
    %v332 = vperm.slane %v324, 3
    %v333 = vperm.slane %v325, 3
    %v334 = vperm.slane %v326, 3
    %v335 = vperm.slane %v327, 3
    %v336 = vmul.f32 %v318, %v332
    %v337 = vmul.f32 %v318, %v333
    %v338 = vmul.f32 %v318, %v334
    %v339 = vmul.f32 %v318, %v335
    %v340 = vmul.f32 %v322, %v332
    %v341 = vmul.f32 %v322, %v333
    %v342 = vmul.f32 %v322, %v334
    %v343 = vmul.f32 %v322, %v335
    %v344 = vadd.f32 %v308, %v336
    %v345 = vadd.f32 %v309, %v337
    %v346 = vadd.f32 %v310, %v338
    %v347 = vadd.f32 %v311, %v339
    %v348 = vadd.f32 %v312, %v340
    %v349 = vadd.f32 %v313, %v341
    %v350 = vadd.f32 %v314, %v342
    %v351 = vadd.f32 %v315, %v343
    %v352 = vmax.f32 %v344, 0.0
    %v353 = vmax.f32 %v345, 0.0
    %v354 = vmax.f32 %v346, 0.0
    %v355 = vmax.f32 %v347, 0.0
    %v356 = vmax.f32 %v348, 0.0
    %v357 = vmax.f32 %v349, 0.0
    %v358 = vmax.f32 %v350, 0.0
    %v359 = vmax.f32 %v351, 0.0
    %v360 = vpack.c.bf16 %v356, %v352
    %v361 = vpack.c.bf16 %v357, %v353
    %v362 = vpack.c.bf16 %v358, %v354
    %v363 = vpack.c.bf16 %v359, %v355
    %v364 = vld [vmem:[%s1] sm:$0xff]
    %v365 = vld [vmem:[%s1 + $0x8] sm:$0xff]
    %v366 = vld [vmem:[%s1 + $0x10] sm:$0xff]
    %v367 = vld [vmem:[%s1 + $0x18] sm:$0xff]
    %v368 = vld [vmem:[%s1 + $0x20] sm:$0xff]
    %v369 = vld [vmem:[%s1 + $0x28] sm:$0xff]
    %v370 = vld [vmem:[#allocation4] sm:$0xff]
    %v371 = vld [vmem:[#allocation4 + $0x8] sm:$0xff]
    %v372 = vld [vmem:[#allocation4 + $0x10] sm:$0xff]
    %v373 = vld [vmem:[#allocation4 + $0x18] sm:$0xff]
    %v374 = vld [vmem:[#allocation4 + $0x20] sm:$0xff]
    %v375 = vld [vmem:[#allocation4 + $0x28] sm:$0xff]
    %v376 = vld [vmem:[#allocation4 + $0x30] sm:$0xff]
    %v377 = vld [vmem:[#allocation4 + $0x38] sm:$0xff]
    %v378 = vld [vmem:[#allocation4 + $0x40] sm:$0xff]
    %v379 = vld [vmem:[#allocation4 + $0x48] sm:$0xff]
    %v380 = vld [vmem:[#allocation4 + $0x50] sm:$0xff]
    %v381 = vld [vmem:[#allocation4 + $0x58] sm:$0xff]
    %v382 = vld [vmem:[#allocation4 + $0x60] sm:$0xff]
    %v383 = vld [vmem:[#allocation4 + $0x68] sm:$0xff]
    %v384 = vld [vmem:[#allocation4 + $0x70] sm:$0xff]
    %v385 = vld [vmem:[#allocation4 + $0x78] sm:$0xff]
    %v386 = vld [vmem:[#allocation4 + $0x80] sm:$0xff]
    %v387 = vld [vmem:[#allocation4 + $0x88] sm:$0xff]
    %v388 = vld [vmem:[#allocation4 + $0x90] sm:$0xff]
    %v389 = vld [vmem:[#allocation4 + $0x98] sm:$0xff]
    %v390 = vld [vmem:[#allocation4 + $0xa0] sm:$0xff]
    %v391 = vld [vmem:[#allocation4 + $0xa8] sm:$0xff]
    %v392 = vld [vmem:[#allocation4 + $0xb0] sm:$0xff]
    %v393 = vld [vmem:[#allocation4 + $0xb8] sm:$0xff]
    %v394 = vld [vmem:[#allocation4 + $0xc0] sm:$0xff]
    %v395 = vld [vmem:[#allocation4 + $0xc8] sm:$0xff]
    %v396 = vld [vmem:[#allocation4 + $0xd0] sm:$0xff]
    %v397 = vld [vmem:[#allocation4 + $0xd8] sm:$0xff]
    %v398 = vld [vmem:[#allocation4 + $0xe0] sm:$0xff]
    %v399 = vld [vmem:[#allocation4 + $0xe8] sm:$0xff]
    %v400 = vld [vmem:[#allocation4 + $0xf0] sm:$0xff]
    %v401 = vld [vmem:[#allocation4 + $0xf8] sm:$0xff]
    %v402 = vld [vmem:[#allocation4 + $0x100] sm:$0xff]
    %v403 = vld [vmem:[#allocation4 + $0x108] sm:$0xff]
    %v404 = vld [vmem:[#allocation4 + $0x110] sm:$0xff]
    %v405 = vld [vmem:[#allocation4 + $0x118] sm:$0xff]
    %v406 = vld [vmem:[#allocation4 + $0x120] sm:$0xff]
    %v407 = vld [vmem:[#allocation4 + $0x128] sm:$0xff]
    %v408 = vld [vmem:[#allocation4 + $0x130] sm:$0xff]
    %v409 = vld [vmem:[#allocation4 + $0x138] sm:$0xff]
    %v410 = vld [vmem:[#allocation4 + $0x140] sm:$0xff]
    %v411 = vld [vmem:[#allocation4 + $0x148] sm:$0xff]
    %v412 = vld [vmem:[#allocation4 + $0x150] sm:$0xff]
    %v413 = vld [vmem:[#allocation4 + $0x158] sm:$0xff]
    %v414 = vld [vmem:[#allocation4 + $0x160] sm:$0xff]
    %v415 = vld [vmem:[#allocation4 + $0x168] sm:$0xff]
    %v416 = vld [vmem:[#allocation4 + $0x170] sm:$0xff]
    %v417 = vld [vmem:[#allocation4 + $0x178] sm:$0xff]
    %v418 = vld [vmem:[#allocation4 + $0x180] sm:$0xff]
    %v419 = vld [vmem:[#allocation4 + $0x188] sm:$0xff]
    %v420 = vld [vmem:[#allocation4 + $0x190] sm:$0xff]
    %v421 = vld [vmem:[#allocation4 + $0x198] sm:$0xff]
    %v422 = vld [vmem:[#allocation4 + $0x1a0] sm:$0xff]
    %v423 = vld [vmem:[#allocation4 + $0x1a8] sm:$0xff]
    %v424 = vld [vmem:[#allocation4 + $0x1b0] sm:$0xff]
    %v425 = vld [vmem:[#allocation4 + $0x1b8] sm:$0xff]
    %v426 = vld [vmem:[#allocation4 + $0x1c0] sm:$0xff]
    %v427 = vld [vmem:[#allocation4 + $0x1c8] sm:$0xff]
    %v428 = vld [vmem:[#allocation4 + $0x1d0] sm:$0xff]
    %v429 = vld [vmem:[#allocation4 + $0x1d8] sm:$0xff]
    %v430 = vld [vmem:[#allocation4 + $0x1e0] sm:$0xff]
    %v431 = vld [vmem:[#allocation4 + $0x1e8] sm:$0xff]
    %v432 = vld [vmem:[#allocation4 + $0x1f0] sm:$0xff]
    %v433 = vld [vmem:[#allocation4 + $0x1f8] sm:$0xff]
    %v434 = vld [vmem:[#allocation4 + $0x200] sm:$0xff]
    %v435 = vld [vmem:[#allocation4 + $0x208] sm:$0xff]
    %v436 = vld [vmem:[#allocation4 + $0x210] sm:$0xff]
    %v437 = vld [vmem:[#allocation4 + $0x218] sm:$0xff]
    %v438 = vld [vmem:[#allocation4 + $0x220] sm:$0xff]
    %v439 = vld [vmem:[#allocation4 + $0x228] sm:$0xff]
    %v440 = vld [vmem:[#allocation4 + $0x230] sm:$0xff]
    %v441 = vld [vmem:[#allocation4 + $0x238] sm:$0xff]
    %v442 = vld [vmem:[#allocation4 + $0x240] sm:$0xff]
    %v443 = vld [vmem:[#allocation4 + $0x248] sm:$0xff]
    %v444 = vld [vmem:[#allocation4 + $0x250] sm:$0xff]
    %v445 = vld [vmem:[#allocation4 + $0x258] sm:$0xff]
    %v446 = vld [vmem:[#allocation4 + $0x260] sm:$0xff]
    %v447 = vld [vmem:[#allocation4 + $0x268] sm:$0xff]
    %v448 = vld [vmem:[#allocation4 + $0x270] sm:$0xff]
    %v449 = vld [vmem:[#allocation4 + $0x278] sm:$0xff]
    %v450 = vld [vmem:[#allocation4 + $0x280] sm:$0xff]
    %v451 = vld [vmem:[#allocation4 + $0x288] sm:$0xff]
    %v452 = vld [vmem:[#allocation4 + $0x290] sm:$0xff]
    %v453 = vld [vmem:[#allocation4 + $0x298] sm:$0xff]
    %v454 = vld [vmem:[#allocation4 + $0x2a0] sm:$0xff]
    %v455 = vld [vmem:[#allocation4 + $0x2a8] sm:$0xff]
    %v456 = vld [vmem:[#allocation4 + $0x2b0] sm:$0xff]
    %v457 = vld [vmem:[#allocation4 + $0x2b8] sm:$0xff]
    %v458 = vld [vmem:[#allocation4 + $0x2c0] sm:$0xff]
    %v459 = vld [vmem:[#allocation4 + $0x2c8] sm:$0xff]
    %v460 = vld [vmem:[#allocation4 + $0x2d0] sm:$0xff]
    %v461 = vld [vmem:[#allocation4 + $0x2d8] sm:$0xff]
    %v462 = vld [vmem:[#allocation4 + $0x2e0] sm:$0xff]
    %v463 = vld [vmem:[#allocation4 + $0x2e8] sm:$0xff]
    %v464 = vld [vmem:[#allocation4 + $0x2f0] sm:$0xff]
    %v465 = vld [vmem:[#allocation4 + $0x2f8] sm:$0xff]
    %v466 = vld [vmem:[#allocation4 + $0x300] sm:$0xff]
    %v467 = vld [vmem:[#allocation4 + $0x308] sm:$0xff]
    %v468 = vld [vmem:[#allocation4 + $0x310] sm:$0xff]
    %v469 = vld [vmem:[#allocation4 + $0x318] sm:$0xff]
    %v470 = vld [vmem:[#allocation4 + $0x320] sm:$0xff]
    %v471 = vld [vmem:[#allocation4 + $0x328] sm:$0xff]
    %v472 = vld [vmem:[#allocation4 + $0x330] sm:$0xff]
    %v473 = vld [vmem:[#allocation4 + $0x338] sm:$0xff]
    %v474 = vld [vmem:[#allocation4 + $0x340] sm:$0xff]
    %v475 = vld [vmem:[#allocation4 + $0x348] sm:$0xff]
    %v476 = vld [vmem:[#allocation4 + $0x350] sm:$0xff]
    %v477 = vld [vmem:[#allocation4 + $0x358] sm:$0xff]
    %v478 = vld [vmem:[#allocation4 + $0x360] sm:$0xff]
    %v479 = vld [vmem:[#allocation4 + $0x368] sm:$0xff]
    %v480 = vld [vmem:[#allocation4 + $0x370] sm:$0xff]
    %v481 = vld [vmem:[#allocation4 + $0x378] sm:$0xff]
    %v482 = vld [vmem:[#allocation4 + $0x380] sm:$0xff]
    %v483 = vld [vmem:[#allocation4 + $0x388] sm:$0xff]
    %v484 = vld [vmem:[#allocation4 + $0x390] sm:$0xff]
    %v485 = vld [vmem:[#allocation4 + $0x398] sm:$0xff]
    %v486 = vld [vmem:[#allocation4 + $0x3a0] sm:$0xff]
    %v487 = vld [vmem:[#allocation4 + $0x3a8] sm:$0xff]
    %v488 = vld [vmem:[#allocation4 + $0x3b0] sm:$0xff]
    %v489 = vld [vmem:[#allocation4 + $0x3b8] sm:$0xff]
    %v490 = vld [vmem:[#allocation4 + $0x3c0] sm:$0xff]
    %v491 = vld [vmem:[#allocation4 + $0x3c8] sm:$0xff]
    %v492 = vld [vmem:[#allocation4 + $0x3d0] sm:$0xff]
    %v493 = vld [vmem:[#allocation4 + $0x3d8] sm:$0xff]
    %v494 = vld [vmem:[#allocation4 + $0x3e0] sm:$0xff]
    %v495 = vld [vmem:[#allocation4 + $0x3e8] sm:$0xff]
    %v496 = vld [vmem:[#allocation4 + $0x3f0] sm:$0xff]
    %v497 = vld [vmem:[#allocation4 + $0x3f8] sm:$0xff]
    %v498 = vld [vmem:[#allocation4 + $0x400] sm:$0xff]
    %v499 = vld [vmem:[#allocation4 + $0x408] sm:$0xff]
    %v500 = vld [vmem:[#allocation4 + $0x410] sm:$0xff]
    %v501 = vld [vmem:[#allocation4 + $0x418] sm:$0xff]
    %v502 = vld [vmem:[#allocation4 + $0x420] sm:$0xff]
    %v503 = vld [vmem:[#allocation4 + $0x428] sm:$0xff]
    %v504 = vld [vmem:[#allocation4 + $0x430] sm:$0xff]
    %v505 = vld [vmem:[#allocation4 + $0x438] sm:$0xff]
    %v506 = vld [vmem:[#allocation4 + $0x440] sm:$0xff]
    %v507 = vld [vmem:[#allocation4 + $0x448] sm:$0xff]
    %v508 = vld [vmem:[#allocation4 + $0x450] sm:$0xff]
    %v509 = vld [vmem:[#allocation4 + $0x458] sm:$0xff]
    %v510 = vld [vmem:[#allocation4 + $0x460] sm:$0xff]
    %v511 = vld [vmem:[#allocation4 + $0x468] sm:$0xff]
    %v512 = vld [vmem:[#allocation4 + $0x470] sm:$0xff]
    %v513 = vld [vmem:[#allocation4 + $0x478] sm:$0xff]
    %v514 = vld [vmem:[#allocation4 + $0x480] sm:$0xff]
    %v515 = vld [vmem:[#allocation4 + $0x488] sm:$0xff]
    %v516 = vld [vmem:[#allocation4 + $0x490] sm:$0xff]
    %v517 = vld [vmem:[#allocation4 + $0x498] sm:$0xff]
    %v518 = vld [vmem:[#allocation4 + $0x4a0] sm:$0xff]
    %v519 = vld [vmem:[#allocation4 + $0x4a8] sm:$0xff]
    %v520 = vld [vmem:[#allocation4 + $0x4b0] sm:$0xff]
    %v521 = vld [vmem:[#allocation4 + $0x4b8] sm:$0xff]
    %v522 = vld [vmem:[#allocation4 + $0x4c0] sm:$0xff]
    %v523 = vld [vmem:[#allocation4 + $0x4c8] sm:$0xff]
    %v524 = vld [vmem:[#allocation4 + $0x4d0] sm:$0xff]
    %v525 = vld [vmem:[#allocation4 + $0x4d8] sm:$0xff]
    %v526 = vld [vmem:[#allocation4 + $0x4e0] sm:$0xff]
    %v527 = vld [vmem:[#allocation4 + $0x4e8] sm:$0xff]
    %v528 = vld [vmem:[#allocation4 + $0x4f0] sm:$0xff]
    %v529 = vld [vmem:[#allocation4 + $0x4f8] sm:$0xff]
    %v530 = vld [vmem:[#allocation4 + $0x500] sm:$0xff]
    %v531 = vld [vmem:[#allocation4 + $0x508] sm:$0xff]
    %v532 = vld [vmem:[#allocation4 + $0x510] sm:$0xff]
    %v533 = vld [vmem:[#allocation4 + $0x518] sm:$0xff]
    %v534 = vld [vmem:[#allocation4 + $0x520] sm:$0xff]
    %v535 = vld [vmem:[#allocation4 + $0x528] sm:$0xff]
    %v536 = vld [vmem:[#allocation4 + $0x530] sm:$0xff]
    %v537 = vld [vmem:[#allocation4 + $0x538] sm:$0xff]
    %v538 = vld [vmem:[#allocation4 + $0x540] sm:$0xff]
    %v539 = vld [vmem:[#allocation4 + $0x548] sm:$0xff]
    %v540 = vld [vmem:[#allocation4 + $0x550] sm:$0xff]
    %v541 = vld [vmem:[#allocation4 + $0x558] sm:$0xff]
    %v542 = vld [vmem:[#allocation4 + $0x560] sm:$0xff]
    %v543 = vld [vmem:[#allocation4 + $0x568] sm:$0xff]
    %v544 = vld [vmem:[#allocation4 + $0x570] sm:$0xff]
    %v545 = vld [vmem:[#allocation4 + $0x578] sm:$0xff]
    %v546 = vld [vmem:[#allocation4 + $0x580] sm:$0xff]
    %v547 = vld [vmem:[#allocation4 + $0x588] sm:$0xff]
    %v548 = vld [vmem:[#allocation4 + $0x590] sm:$0xff]
    %v549 = vld [vmem:[#allocation4 + $0x598] sm:$0xff]
    %v550 = vld [vmem:[#allocation4 + $0x5a0] sm:$0xff]
    %v551 = vld [vmem:[#allocation4 + $0x5a8] sm:$0xff]
    %v552 = vld [vmem:[#allocation4 + $0x5b0] sm:$0xff]
    %v553 = vld [vmem:[#allocation4 + $0x5b8] sm:$0xff]
    %v554 = vld [vmem:[#allocation4 + $0x5c0] sm:$0xff]
    %v555 = vld [vmem:[#allocation4 + $0x5c8] sm:$0xff]
    %v556 = vld [vmem:[#allocation4 + $0x5d0] sm:$0xff]
    %v557 = vld [vmem:[#allocation4 + $0x5d8] sm:$0xff]
    %v558 = vld [vmem:[#allocation4 + $0x5e0] sm:$0xff]
    %v559 = vld [vmem:[#allocation4 + $0x5e8] sm:$0xff]
    %v560 = vld [vmem:[#allocation4 + $0x5f0] sm:$0xff]
    %v561 = vld [vmem:[#allocation4 + $0x5f8] sm:$0xff]
    %v562 = vld [vmem:[#allocation4 + $0x600] sm:$0xff]
    %v563 = vld [vmem:[#allocation4 + $0x608] sm:$0xff]
    %v564 = vld [vmem:[#allocation4 + $0x610] sm:$0xff]
    %v565 = vld [vmem:[#allocation4 + $0x618] sm:$0xff]
    %v566 = vld [vmem:[#allocation4 + $0x620] sm:$0xff]
    %v567 = vld [vmem:[#allocation4 + $0x628] sm:$0xff]
    %v568 = vld [vmem:[#allocation4 + $0x630] sm:$0xff]
    %v569 = vld [vmem:[#allocation4 + $0x638] sm:$0xff]
    %v570 = vld [vmem:[#allocation4 + $0x640] sm:$0xff]
    %v571 = vld [vmem:[#allocation4 + $0x648] sm:$0xff]
    %v572 = vld [vmem:[#allocation4 + $0x650] sm:$0xff]
    %v573 = vld [vmem:[#allocation4 + $0x658] sm:$0xff]
    %v574 = vld [vmem:[#allocation4 + $0x660] sm:$0xff]
    %v575 = vld [vmem:[#allocation4 + $0x668] sm:$0xff]
    %v576 = vld [vmem:[#allocation4 + $0x670] sm:$0xff]
    %v577 = vld [vmem:[#allocation4 + $0x678] sm:$0xff]
    %v578 = vld [vmem:[#allocation4 + $0x680] sm:$0xff]
    %v579 = vld [vmem:[#allocation4 + $0x688] sm:$0xff]
    %v580 = vld [vmem:[#allocation4 + $0x690] sm:$0xff]
    %v581 = vld [vmem:[#allocation4 + $0x698] sm:$0xff]
    %v582 = vld [vmem:[#allocation4 + $0x6a0] sm:$0xff]
    %v583 = vld [vmem:[#allocation4 + $0x6a8] sm:$0xff]
    %v584 = vld [vmem:[#allocation4 + $0x6b0] sm:$0xff]
    %v585 = vld [vmem:[#allocation4 + $0x6b8] sm:$0xff]
    %v586 = vld [vmem:[#allocation4 + $0x6c0] sm:$0xff]
    %v587 = vld [vmem:[#allocation4 + $0x6c8] sm:$0xff]
    %v588 = vld [vmem:[#allocation4 + $0x6d0] sm:$0xff]
    %v589 = vld [vmem:[#allocation4 + $0x6d8] sm:$0xff]
    %v590 = vld [vmem:[#allocation4 + $0x6e0] sm:$0xff]
    %v591 = vld [vmem:[#allocation4 + $0x6e8] sm:$0xff]
    %v592 = vld [vmem:[#allocation4 + $0x6f0] sm:$0xff]
    %v593 = vld [vmem:[#allocation4 + $0x6f8] sm:$0xff]
    %v594 = vld [vmem:[#allocation4 + $0x700] sm:$0xff]
    %v595 = vld [vmem:[#allocation4 + $0x708] sm:$0xff]
    %v596 = vld [vmem:[#allocation4 + $0x710] sm:$0xff]
    %v597 = vld [vmem:[#allocation4 + $0x718] sm:$0xff]
    %v598 = vld [vmem:[#allocation4 + $0x720] sm:$0xff]
    %v599 = vld [vmem:[#allocation4 + $0x728] sm:$0xff]
    %v600 = vld [vmem:[#allocation4 + $0x730] sm:$0xff]
    %v601 = vld [vmem:[#allocation4 + $0x738] sm:$0xff]
    %v602 = vld [vmem:[#allocation4 + $0x740] sm:$0xff]
    %v603 = vld [vmem:[#allocation4 + $0x748] sm:$0xff]
    %v604 = vld [vmem:[#allocation4 + $0x750] sm:$0xff]
    %v605 = vld [vmem:[#allocation4 + $0x758] sm:$0xff]
    %v606 = vld [vmem:[#allocation4 + $0x760] sm:$0xff]
    %v607 = vld [vmem:[#allocation4 + $0x768] sm:$0xff]
    %v608 = vld [vmem:[#allocation4 + $0x770] sm:$0xff]
    %v609 = vld [vmem:[#allocation4 + $0x778] sm:$0xff]
    %v610 = vld [vmem:[#allocation4 + $0x780] sm:$0xff]
    %v611 = vld [vmem:[#allocation4 + $0x788] sm:$0xff]
    %v612 = vld [vmem:[#allocation4 + $0x790] sm:$0xff]
    %v613 = vld [vmem:[#allocation4 + $0x798] sm:$0xff]
    %v614 = vld [vmem:[#allocation4 + $0x7a0] sm:$0xff]
    %v615 = vld [vmem:[#allocation4 + $0x7a8] sm:$0xff]
    %v616 = vld [vmem:[#allocation4 + $0x7b0] sm:$0xff]
    %v617 = vld [vmem:[#allocation4 + $0x7b8] sm:$0xff]
    %v618 = vld [vmem:[#allocation4 + $0x7c0] sm:$0xff]
    %v619 = vld [vmem:[#allocation4 + $0x7c8] sm:$0xff]
    %v620 = vld [vmem:[#allocation4 + $0x7d0] sm:$0xff]
    %v621 = vld [vmem:[#allocation4 + $0x7d8] sm:$0xff]
    %v622 = vld [vmem:[#allocation4 + $0x7e0] sm:$0xff]
    %v623 = vld [vmem:[#allocation4 + $0x7e8] sm:$0xff]
    %v624 = vld [vmem:[#allocation4 + $0x7f0] sm:$0xff]
    %v625 = vld [vmem:[#allocation4 + $0x7f8] sm:$0xff]
    %v626 = vld [vmem:[#allocation4 + $0x800] sm:$0xff]
    %v627 = vld [vmem:[#allocation4 + $0x808] sm:$0xff]
    %v628 = vld [vmem:[#allocation4 + $0x810] sm:$0xff]
    %v629 = vld [vmem:[#allocation4 + $0x818] sm:$0xff]
    %v630 = vld [vmem:[#allocation4 + $0x820] sm:$0xff]
    %v631 = vld [vmem:[#allocation4 + $0x828] sm:$0xff]
    %v632 = vld [vmem:[#allocation4 + $0x830] sm:$0xff]
    %v633 = vld [vmem:[#allocation4 + $0x838] sm:$0xff]
    %v634 = vld [vmem:[#allocation4 + $0x840] sm:$0xff]
    %v635 = vld [vmem:[#allocation4 + $0x848] sm:$0xff]
    %v636 = vld [vmem:[#allocation4 + $0x850] sm:$0xff]
    %v637 = vld [vmem:[#allocation4 + $0x858] sm:$0xff]
    %v638 = vld [vmem:[#allocation4 + $0x860] sm:$0xff]
    %v639 = vld [vmem:[#allocation4 + $0x868] sm:$0xff]
    %v640 = vld [vmem:[#allocation4 + $0x870] sm:$0xff]
    %v641 = vld [vmem:[#allocation4 + $0x878] sm:$0xff]
    %v642 = vld [vmem:[#allocation4 + $0x880] sm:$0xff]
    %v643 = vld [vmem:[#allocation4 + $0x888] sm:$0xff]
    %v644 = vld [vmem:[#allocation4 + $0x890] sm:$0xff]
    %v645 = vld [vmem:[#allocation4 + $0x898] sm:$0xff]
    %v646 = vld [vmem:[#allocation4 + $0x8a0] sm:$0xff]
    %v647 = vld [vmem:[#allocation4 + $0x8a8] sm:$0xff]
    %v648 = vld [vmem:[#allocation4 + $0x8b0] sm:$0xff]
    %v649 = vld [vmem:[#allocation4 + $0x8b8] sm:$0xff]
    %v650 = vld [vmem:[#allocation4 + $0x8c0] sm:$0xff]
    %v651 = vld [vmem:[#allocation4 + $0x8c8] sm:$0xff]
    %v652 = vld [vmem:[#allocation4 + $0x8d0] sm:$0xff]
    %v653 = vld [vmem:[#allocation4 + $0x8d8] sm:$0xff]
    %v654 = vld [vmem:[#allocation4 + $0x8e0] sm:$0xff]
    %v655 = vld [vmem:[#allocation4 + $0x8e8] sm:$0xff]
    %v656 = vld [vmem:[#allocation4 + $0x8f0] sm:$0xff]
    %v657 = vld [vmem:[#allocation4 + $0x8f8] sm:$0xff]
    %v664 = vunpack.c.l.b16 %v364
    %v665 = vunpack.c.h.b16 %v364
    %v666 = vunpack.c.l.b16 %v365
    %v667 = vunpack.c.h.b16 %v365
    %v668 = vunpack.c.l.b16 %v366
    %v669 = vunpack.c.h.b16 %v366
    %v670 = vunpack.c.l.b16 %v367
    %v671 = vunpack.c.h.b16 %v367
    %v672 = vunpack.c.l.b16 %v368
    %v673 = vunpack.c.h.b16 %v368
    %v674 = vunpack.c.l.b16 %v369
    %v675 = vunpack.c.h.b16 %v369
    %v676 = vpack.c.b16 %v670, %v664
    %v677 = vpack.c.b16 %v671, %v665
    %v678 = vpack.c.b16 %v672, %v666
    %v679 = vpack.c.b16 %v673, %v667
    %v680 = vpack.c.b16 %v674, %v668
    %v681 = vpack.c.b16 %v675, %v669
    %v976 = vunpack.c.l.b16 %v370
    %v977 = vunpack.c.h.b16 %v370
    %v978 = vunpack.c.l.b16 %v371
    %v979 = vunpack.c.h.b16 %v371
    %v980 = vunpack.c.l.b16 %v372
    %v981 = vunpack.c.h.b16 %v372
    %v982 = vunpack.c.l.b16 %v373
    %v983 = vunpack.c.h.b16 %v373
    %v984 = vunpack.c.l.b16 %v374
    %v985 = vunpack.c.h.b16 %v374
    %v986 = vunpack.c.l.b16 %v375
    %v987 = vunpack.c.h.b16 %v375
    %v988 = vunpack.c.l.b16 %v376
    %v989 = vunpack.c.h.b16 %v376
    %v990 = vunpack.c.l.b16 %v377
    %v991 = vunpack.c.h.b16 %v377
    %v992 = vunpack.c.l.b16 %v378
    %v993 = vunpack.c.h.b16 %v378
    %v994 = vunpack.c.l.b16 %v379
    %v995 = vunpack.c.h.b16 %v379
    %v996 = vunpack.c.l.b16 %v380
    %v997 = vunpack.c.h.b16 %v380
    %v998 = vunpack.c.l.b16 %v381
    %v999 = vunpack.c.h.b16 %v381
    %v1000 = vunpack.c.l.b16 %v382
    %v1001 = vunpack.c.h.b16 %v382
    %v1002 = vunpack.c.l.b16 %v383
    %v1003 = vunpack.c.h.b16 %v383
    %v1004 = vunpack.c.l.b16 %v384
    %v1005 = vunpack.c.h.b16 %v384
    %v1006 = vunpack.c.l.b16 %v385
    %v1007 = vunpack.c.h.b16 %v385
    %v1008 = vunpack.c.l.b16 %v386
    %v1009 = vunpack.c.h.b16 %v386
    %v1010 = vunpack.c.l.b16 %v387
    %v1011 = vunpack.c.h.b16 %v387
    %v1012 = vunpack.c.l.b16 %v388
    %v1013 = vunpack.c.h.b16 %v388
    %v1014 = vunpack.c.l.b16 %v389
    %v1015 = vunpack.c.h.b16 %v389
    %v1016 = vunpack.c.l.b16 %v390
    %v1017 = vunpack.c.h.b16 %v390
    %v1018 = vunpack.c.l.b16 %v391
    %v1019 = vunpack.c.h.b16 %v391
    %v1020 = vunpack.c.l.b16 %v392
    %v1021 = vunpack.c.h.b16 %v392
    %v1022 = vunpack.c.l.b16 %v393
    %v1023 = vunpack.c.h.b16 %v393
    %v1024 = vunpack.c.l.b16 %v394
    %v1025 = vunpack.c.h.b16 %v394
    %v1026 = vunpack.c.l.b16 %v395
    %v1027 = vunpack.c.h.b16 %v395
    %v1028 = vunpack.c.l.b16 %v396
    %v1029 = vunpack.c.h.b16 %v396
    %v1030 = vunpack.c.l.b16 %v397
    %v1031 = vunpack.c.h.b16 %v397
    %v1032 = vunpack.c.l.b16 %v398
    %v1033 = vunpack.c.h.b16 %v398
    %v1034 = vunpack.c.l.b16 %v399
    %v1035 = vunpack.c.h.b16 %v399
    %v1036 = vunpack.c.l.b16 %v400
    %v1037 = vunpack.c.h.b16 %v400
    %v1038 = vunpack.c.l.b16 %v401
    %v1039 = vunpack.c.h.b16 %v401
    %v1040 = vunpack.c.l.b16 %v402
    %v1041 = vunpack.c.h.b16 %v402
    %v1042 = vunpack.c.l.b16 %v403
    %v1043 = vunpack.c.h.b16 %v403
    %v1044 = vunpack.c.l.b16 %v404
    %v1045 = vunpack.c.h.b16 %v404
    %v1046 = vunpack.c.l.b16 %v405
    %v1047 = vunpack.c.h.b16 %v405
    %v1048 = vunpack.c.l.b16 %v406
    %v1049 = vunpack.c.h.b16 %v406
    %v1050 = vunpack.c.l.b16 %v407
    %v1051 = vunpack.c.h.b16 %v407
    %v1052 = vunpack.c.l.b16 %v408
    %v1053 = vunpack.c.h.b16 %v408
    %v1054 = vunpack.c.l.b16 %v409
    %v1055 = vunpack.c.h.b16 %v409
    %v1056 = vunpack.c.l.b16 %v410
    %v1057 = vunpack.c.h.b16 %v410
    %v1058 = vunpack.c.l.b16 %v411
    %v1059 = vunpack.c.h.b16 %v411
    %v1060 = vunpack.c.l.b16 %v412
    %v1061 = vunpack.c.h.b16 %v412
    %v1062 = vunpack.c.l.b16 %v413
    %v1063 = vunpack.c.h.b16 %v413
    %v1064 = vunpack.c.l.b16 %v414
    %v1065 = vunpack.c.h.b16 %v414
    %v1066 = vunpack.c.l.b16 %v415
    %v1067 = vunpack.c.h.b16 %v415
    %v1068 = vunpack.c.l.b16 %v416
    %v1069 = vunpack.c.h.b16 %v416
    %v1070 = vunpack.c.l.b16 %v417
    %v1071 = vunpack.c.h.b16 %v417
    %v1072 = vunpack.c.l.b16 %v418
    %v1073 = vunpack.c.h.b16 %v418
    %v1074 = vunpack.c.l.b16 %v419
    %v1075 = vunpack.c.h.b16 %v419
    %v1076 = vunpack.c.l.b16 %v420
    %v1077 = vunpack.c.h.b16 %v420
    %v1078 = vunpack.c.l.b16 %v421
    %v1079 = vunpack.c.h.b16 %v421
    %v1080 = vunpack.c.l.b16 %v422
    %v1081 = vunpack.c.h.b16 %v422
    %v1082 = vunpack.c.l.b16 %v423
    %v1083 = vunpack.c.h.b16 %v423
    %v1084 = vunpack.c.l.b16 %v424
    %v1085 = vunpack.c.h.b16 %v424
    %v1086 = vunpack.c.l.b16 %v425
    %v1087 = vunpack.c.h.b16 %v425
    %v1088 = vunpack.c.l.b16 %v426
    %v1089 = vunpack.c.h.b16 %v426
    %v1090 = vunpack.c.l.b16 %v427
    %v1091 = vunpack.c.h.b16 %v427
    %v1092 = vunpack.c.l.b16 %v428
    %v1093 = vunpack.c.h.b16 %v428
    %v1094 = vunpack.c.l.b16 %v429
    %v1095 = vunpack.c.h.b16 %v429
    %v1096 = vunpack.c.l.b16 %v430
    %v1097 = vunpack.c.h.b16 %v430
    %v1098 = vunpack.c.l.b16 %v431
    %v1099 = vunpack.c.h.b16 %v431
    %v1100 = vunpack.c.l.b16 %v432
    %v1101 = vunpack.c.h.b16 %v432
    %v1102 = vunpack.c.l.b16 %v433
    %v1103 = vunpack.c.h.b16 %v433
    %v1104 = vunpack.c.l.b16 %v434
    %v1105 = vunpack.c.h.b16 %v434
    %v1106 = vunpack.c.l.b16 %v435
    %v1107 = vunpack.c.h.b16 %v435
    %v1108 = vunpack.c.l.b16 %v436
    %v1109 = vunpack.c.h.b16 %v436
    %v1110 = vunpack.c.l.b16 %v437
    %v1111 = vunpack.c.h.b16 %v437
    %v1112 = vunpack.c.l.b16 %v438
    %v1113 = vunpack.c.h.b16 %v438
    %v1114 = vunpack.c.l.b16 %v439
    %v1115 = vunpack.c.h.b16 %v439
    %v1116 = vunpack.c.l.b16 %v440
    %v1117 = vunpack.c.h.b16 %v440
    %v1118 = vunpack.c.l.b16 %v441
    %v1119 = vunpack.c.h.b16 %v441
    %v1120 = vunpack.c.l.b16 %v442
    %v1121 = vunpack.c.h.b16 %v442
    %v1122 = vunpack.c.l.b16 %v443
    %v1123 = vunpack.c.h.b16 %v443
    %v1124 = vunpack.c.l.b16 %v444
    %v1125 = vunpack.c.h.b16 %v444
    %v1126 = vunpack.c.l.b16 %v445
    %v1127 = vunpack.c.h.b16 %v445
    %v1128 = vunpack.c.l.b16 %v446
    %v1129 = vunpack.c.h.b16 %v446
    %v1130 = vunpack.c.l.b16 %v447
    %v1131 = vunpack.c.h.b16 %v447
    %v1132 = vunpack.c.l.b16 %v448
    %v1133 = vunpack.c.h.b16 %v448
    %v1134 = vunpack.c.l.b16 %v449
    %v1135 = vunpack.c.h.b16 %v449
    %v1136 = vunpack.c.l.b16 %v450
    %v1137 = vunpack.c.h.b16 %v450
    %v1138 = vunpack.c.l.b16 %v451
    %v1139 = vunpack.c.h.b16 %v451
    %v1140 = vunpack.c.l.b16 %v452
    %v1141 = vunpack.c.h.b16 %v452
    %v1142 = vunpack.c.l.b16 %v453
    %v1143 = vunpack.c.h.b16 %v453
    %v1144 = vunpack.c.l.b16 %v454
    %v1145 = vunpack.c.h.b16 %v454
    %v1146 = vunpack.c.l.b16 %v455
    %v1147 = vunpack.c.h.b16 %v455
    %v1148 = vunpack.c.l.b16 %v456
    %v1149 = vunpack.c.h.b16 %v456
    %v1150 = vunpack.c.l.b16 %v457
    %v1151 = vunpack.c.h.b16 %v457
    %v1152 = vunpack.c.l.b16 %v458
    %v1153 = vunpack.c.h.b16 %v458
    %v1154 = vunpack.c.l.b16 %v459
    %v1155 = vunpack.c.h.b16 %v459
    %v1156 = vunpack.c.l.b16 %v460
    %v1157 = vunpack.c.h.b16 %v460
    %v1158 = vunpack.c.l.b16 %v461
    %v1159 = vunpack.c.h.b16 %v461
    %v1160 = vunpack.c.l.b16 %v462
    %v1161 = vunpack.c.h.b16 %v462
    %v1162 = vunpack.c.l.b16 %v463
    %v1163 = vunpack.c.h.b16 %v463
    %v1164 = vunpack.c.l.b16 %v464
    %v1165 = vunpack.c.h.b16 %v464
    %v1166 = vunpack.c.l.b16 %v465
    %v1167 = vunpack.c.h.b16 %v465
    %v1168 = vunpack.c.l.b16 %v466
    %v1169 = vunpack.c.h.b16 %v466
    %v1170 = vunpack.c.l.b16 %v467
    %v1171 = vunpack.c.h.b16 %v467
    %v1172 = vunpack.c.l.b16 %v468
    %v1173 = vunpack.c.h.b16 %v468
    %v1174 = vunpack.c.l.b16 %v469
    %v1175 = vunpack.c.h.b16 %v469
    %v1176 = vunpack.c.l.b16 %v470
    %v1177 = vunpack.c.h.b16 %v470
    %v1178 = vunpack.c.l.b16 %v471
    %v1179 = vunpack.c.h.b16 %v471
    %v1180 = vunpack.c.l.b16 %v472
    %v1181 = vunpack.c.h.b16 %v472
    %v1182 = vunpack.c.l.b16 %v473
    %v1183 = vunpack.c.h.b16 %v473
    %v1184 = vunpack.c.l.b16 %v474
    %v1185 = vunpack.c.h.b16 %v474
    %v1186 = vunpack.c.l.b16 %v475
    %v1187 = vunpack.c.h.b16 %v475
    %v1188 = vunpack.c.l.b16 %v476
    %v1189 = vunpack.c.h.b16 %v476
    %v1190 = vunpack.c.l.b16 %v477
    %v1191 = vunpack.c.h.b16 %v477
    %v1192 = vunpack.c.l.b16 %v478
    %v1193 = vunpack.c.h.b16 %v478
    %v1194 = vunpack.c.l.b16 %v479
    %v1195 = vunpack.c.h.b16 %v479
    %v1196 = vunpack.c.l.b16 %v480
    %v1197 = vunpack.c.h.b16 %v480
    %v1198 = vunpack.c.l.b16 %v481
    %v1199 = vunpack.c.h.b16 %v481
    %v1200 = vunpack.c.l.b16 %v482
    %v1201 = vunpack.c.h.b16 %v482
    %v1202 = vunpack.c.l.b16 %v483
    %v1203 = vunpack.c.h.b16 %v483
    %v1204 = vunpack.c.l.b16 %v484
    %v1205 = vunpack.c.h.b16 %v484
    %v1206 = vunpack.c.l.b16 %v485
    %v1207 = vunpack.c.h.b16 %v485
    %v1208 = vunpack.c.l.b16 %v486
    %v1209 = vunpack.c.h.b16 %v486
    %v1210 = vunpack.c.l.b16 %v487
    %v1211 = vunpack.c.h.b16 %v487
    %v1212 = vunpack.c.l.b16 %v488
    %v1213 = vunpack.c.h.b16 %v488
    %v1214 = vunpack.c.l.b16 %v489
    %v1215 = vunpack.c.h.b16 %v489
    %v1216 = vunpack.c.l.b16 %v490
    %v1217 = vunpack.c.h.b16 %v490
    %v1218 = vunpack.c.l.b16 %v491
    %v1219 = vunpack.c.h.b16 %v491
    %v1220 = vunpack.c.l.b16 %v492
    %v1221 = vunpack.c.h.b16 %v492
    %v1222 = vunpack.c.l.b16 %v493
    %v1223 = vunpack.c.h.b16 %v493
    %v1224 = vunpack.c.l.b16 %v494
    %v1225 = vunpack.c.h.b16 %v494
    %v1226 = vunpack.c.l.b16 %v495
    %v1227 = vunpack.c.h.b16 %v495
    %v1228 = vunpack.c.l.b16 %v496
    %v1229 = vunpack.c.h.b16 %v496
    %v1230 = vunpack.c.l.b16 %v497
    %v1231 = vunpack.c.h.b16 %v497
    %v1232 = vunpack.c.l.b16 %v498
    %v1233 = vunpack.c.h.b16 %v498
    %v1234 = vunpack.c.l.b16 %v499
    %v1235 = vunpack.c.h.b16 %v499
    %v1236 = vunpack.c.l.b16 %v500
    %v1237 = vunpack.c.h.b16 %v500
    %v1238 = vunpack.c.l.b16 %v501
    %v1239 = vunpack.c.h.b16 %v501
    %v1240 = vunpack.c.l.b16 %v502
    %v1241 = vunpack.c.h.b16 %v502
    %v1242 = vunpack.c.l.b16 %v503
    %v1243 = vunpack.c.h.b16 %v503
    %v1244 = vunpack.c.l.b16 %v504
    %v1245 = vunpack.c.h.b16 %v504
    %v1246 = vunpack.c.l.b16 %v505
    %v1247 = vunpack.c.h.b16 %v505
    %v1248 = vunpack.c.l.b16 %v506
    %v1249 = vunpack.c.h.b16 %v506
    %v1250 = vunpack.c.l.b16 %v507
    %v1251 = vunpack.c.h.b16 %v507
    %v1252 = vunpack.c.l.b16 %v508
    %v1253 = vunpack.c.h.b16 %v508
    %v1254 = vunpack.c.l.b16 %v509
    %v1255 = vunpack.c.h.b16 %v509
    %v1256 = vunpack.c.l.b16 %v510
    %v1257 = vunpack.c.h.b16 %v510
    %v1258 = vunpack.c.l.b16 %v511
    %v1259 = vunpack.c.h.b16 %v511
    %v1260 = vunpack.c.l.b16 %v512
    %v1261 = vunpack.c.h.b16 %v512
    %v1262 = vunpack.c.l.b16 %v513
    %v1263 = vunpack.c.h.b16 %v513
    %v1264 = vunpack.c.l.b16 %v514
    %v1265 = vunpack.c.h.b16 %v514
    %v1266 = vunpack.c.l.b16 %v515
    %v1267 = vunpack.c.h.b16 %v515
    %v1268 = vunpack.c.l.b16 %v516
    %v1269 = vunpack.c.h.b16 %v516
    %v1270 = vunpack.c.l.b16 %v517
    %v1271 = vunpack.c.h.b16 %v517
    %v1272 = vunpack.c.l.b16 %v518
    %v1273 = vunpack.c.h.b16 %v518
    %v1274 = vunpack.c.l.b16 %v519
    %v1275 = vunpack.c.h.b16 %v519
    %v1276 = vunpack.c.l.b16 %v520
    %v1277 = vunpack.c.h.b16 %v520
    %v1278 = vunpack.c.l.b16 %v521
    %v1279 = vunpack.c.h.b16 %v521
    %v1280 = vunpack.c.l.b16 %v522
    %v1281 = vunpack.c.h.b16 %v522
    %v1282 = vunpack.c.l.b16 %v523
    %v1283 = vunpack.c.h.b16 %v523
    %v1284 = vunpack.c.l.b16 %v524
    %v1285 = vunpack.c.h.b16 %v524
    %v1286 = vunpack.c.l.b16 %v525
    %v1287 = vunpack.c.h.b16 %v525
    %v1288 = vunpack.c.l.b16 %v526
    %v1289 = vunpack.c.h.b16 %v526
    %v1290 = vunpack.c.l.b16 %v527
    %v1291 = vunpack.c.h.b16 %v527
    %v1292 = vunpack.c.l.b16 %v528
    %v1293 = vunpack.c.h.b16 %v528
    %v1294 = vunpack.c.l.b16 %v529
    %v1295 = vunpack.c.h.b16 %v529
    %v1296 = vunpack.c.l.b16 %v530
    %v1297 = vunpack.c.h.b16 %v530
    %v1298 = vunpack.c.l.b16 %v531
    %v1299 = vunpack.c.h.b16 %v531
    %v1300 = vunpack.c.l.b16 %v532
    %v1301 = vunpack.c.h.b16 %v532
    %v1302 = vunpack.c.l.b16 %v533
    %v1303 = vunpack.c.h.b16 %v533
    %v1304 = vunpack.c.l.b16 %v534
    %v1305 = vunpack.c.h.b16 %v534
    %v1306 = vunpack.c.l.b16 %v535
    %v1307 = vunpack.c.h.b16 %v535
    %v1308 = vunpack.c.l.b16 %v536
    %v1309 = vunpack.c.h.b16 %v536
    %v1310 = vunpack.c.l.b16 %v537
    %v1311 = vunpack.c.h.b16 %v537
    %v1312 = vunpack.c.l.b16 %v538
    %v1313 = vunpack.c.h.b16 %v538
    %v1314 = vunpack.c.l.b16 %v539
    %v1315 = vunpack.c.h.b16 %v539
    %v1316 = vunpack.c.l.b16 %v540
    %v1317 = vunpack.c.h.b16 %v540
    %v1318 = vunpack.c.l.b16 %v541
    %v1319 = vunpack.c.h.b16 %v541
    %v1320 = vunpack.c.l.b16 %v542
    %v1321 = vunpack.c.h.b16 %v542
    %v1322 = vunpack.c.l.b16 %v543
    %v1323 = vunpack.c.h.b16 %v543
    %v1324 = vunpack.c.l.b16 %v544
    %v1325 = vunpack.c.h.b16 %v544
    %v1326 = vunpack.c.l.b16 %v545
    %v1327 = vunpack.c.h.b16 %v545
    %v1328 = vunpack.c.l.b16 %v546
    %v1329 = vunpack.c.h.b16 %v546
    %v1330 = vunpack.c.l.b16 %v547
    %v1331 = vunpack.c.h.b16 %v547
    %v1332 = vunpack.c.l.b16 %v548
    %v1333 = vunpack.c.h.b16 %v548
    %v1334 = vunpack.c.l.b16 %v549
    %v1335 = vunpack.c.h.b16 %v549
    %v1336 = vunpack.c.l.b16 %v550
    %v1337 = vunpack.c.h.b16 %v550
    %v1338 = vunpack.c.l.b16 %v551
    %v1339 = vunpack.c.h.b16 %v551
    %v1340 = vunpack.c.l.b16 %v552
    %v1341 = vunpack.c.h.b16 %v552
    %v1342 = vunpack.c.l.b16 %v553
    %v1343 = vunpack.c.h.b16 %v553
    %v1344 = vunpack.c.l.b16 %v554
    %v1345 = vunpack.c.h.b16 %v554
    %v1346 = vunpack.c.l.b16 %v555
    %v1347 = vunpack.c.h.b16 %v555
    %v1348 = vunpack.c.l.b16 %v556
    %v1349 = vunpack.c.h.b16 %v556
    %v1350 = vunpack.c.l.b16 %v557
    %v1351 = vunpack.c.h.b16 %v557
    %v1352 = vunpack.c.l.b16 %v558
    %v1353 = vunpack.c.h.b16 %v558
    %v1354 = vunpack.c.l.b16 %v559
    %v1355 = vunpack.c.h.b16 %v559
    %v1356 = vunpack.c.l.b16 %v560
    %v1357 = vunpack.c.h.b16 %v560
    %v1358 = vunpack.c.l.b16 %v561
    %v1359 = vunpack.c.h.b16 %v561
    %v1360 = vunpack.c.l.b16 %v562
    %v1361 = vunpack.c.h.b16 %v562
    %v1362 = vunpack.c.l.b16 %v563
    %v1363 = vunpack.c.h.b16 %v563
    %v1364 = vunpack.c.l.b16 %v564
    %v1365 = vunpack.c.h.b16 %v564
    %v1366 = vunpack.c.l.b16 %v565
    %v1367 = vunpack.c.h.b16 %v565
    %v1368 = vunpack.c.l.b16 %v566
    %v1369 = vunpack.c.h.b16 %v566
    %v1370 = vunpack.c.l.b16 %v567
    %v1371 = vunpack.c.h.b16 %v567
    %v1372 = vunpack.c.l.b16 %v568
    %v1373 = vunpack.c.h.b16 %v568
    %v1374 = vunpack.c.l.b16 %v569
    %v1375 = vunpack.c.h.b16 %v569
    %v1376 = vunpack.c.l.b16 %v570
    %v1377 = vunpack.c.h.b16 %v570
    %v1378 = vunpack.c.l.b16 %v571
    %v1379 = vunpack.c.h.b16 %v571
    %v1380 = vunpack.c.l.b16 %v572
    %v1381 = vunpack.c.h.b16 %v572
    %v1382 = vunpack.c.l.b16 %v573
    %v1383 = vunpack.c.h.b16 %v573
    %v1384 = vunpack.c.l.b16 %v574
    %v1385 = vunpack.c.h.b16 %v574
    %v1386 = vunpack.c.l.b16 %v575
    %v1387 = vunpack.c.h.b16 %v575
    %v1388 = vunpack.c.l.b16 %v576
    %v1389 = vunpack.c.h.b16 %v576
    %v1390 = vunpack.c.l.b16 %v577
    %v1391 = vunpack.c.h.b16 %v577
    %v1392 = vunpack.c.l.b16 %v578
    %v1393 = vunpack.c.h.b16 %v578
    %v1394 = vunpack.c.l.b16 %v579
    %v1395 = vunpack.c.h.b16 %v579
    %v1396 = vunpack.c.l.b16 %v580
    %v1397 = vunpack.c.h.b16 %v580
    %v1398 = vunpack.c.l.b16 %v581
    %v1399 = vunpack.c.h.b16 %v581
    %v1400 = vunpack.c.l.b16 %v582
    %v1401 = vunpack.c.h.b16 %v582
    %v1402 = vunpack.c.l.b16 %v583
    %v1403 = vunpack.c.h.b16 %v583
    %v1404 = vunpack.c.l.b16 %v584
    %v1405 = vunpack.c.h.b16 %v584
    %v1406 = vunpack.c.l.b16 %v585
    %v1407 = vunpack.c.h.b16 %v585
    %v1408 = vunpack.c.l.b16 %v586
    %v1409 = vunpack.c.h.b16 %v586
    %v1410 = vunpack.c.l.b16 %v587
    %v1411 = vunpack.c.h.b16 %v587
    %v1412 = vunpack.c.l.b16 %v588
    %v1413 = vunpack.c.h.b16 %v588
    %v1414 = vunpack.c.l.b16 %v589
    %v1415 = vunpack.c.h.b16 %v589
    %v1416 = vunpack.c.l.b16 %v590
    %v1417 = vunpack.c.h.b16 %v590
    %v1418 = vunpack.c.l.b16 %v591
    %v1419 = vunpack.c.h.b16 %v591
    %v1420 = vunpack.c.l.b16 %v592
    %v1421 = vunpack.c.h.b16 %v592
    %v1422 = vunpack.c.l.b16 %v593
    %v1423 = vunpack.c.h.b16 %v593
    %v1424 = vunpack.c.l.b16 %v594
    %v1425 = vunpack.c.h.b16 %v594
    %v1426 = vunpack.c.l.b16 %v595
    %v1427 = vunpack.c.h.b16 %v595
    %v1428 = vunpack.c.l.b16 %v596
    %v1429 = vunpack.c.h.b16 %v596
    %v1430 = vunpack.c.l.b16 %v597
    %v1431 = vunpack.c.h.b16 %v597
    %v1432 = vunpack.c.l.b16 %v598
    %v1433 = vunpack.c.h.b16 %v598
    %v1434 = vunpack.c.l.b16 %v599
    %v1435 = vunpack.c.h.b16 %v599
    %v1436 = vunpack.c.l.b16 %v600
    %v1437 = vunpack.c.h.b16 %v600
    %v1438 = vunpack.c.l.b16 %v601
    %v1439 = vunpack.c.h.b16 %v601
    %v1440 = vunpack.c.l.b16 %v602
    %v1441 = vunpack.c.h.b16 %v602
    %v1442 = vunpack.c.l.b16 %v603
    %v1443 = vunpack.c.h.b16 %v603
    %v1444 = vunpack.c.l.b16 %v604
    %v1445 = vunpack.c.h.b16 %v604
    %v1446 = vunpack.c.l.b16 %v605
    %v1447 = vunpack.c.h.b16 %v605
    %v1448 = vunpack.c.l.b16 %v606
    %v1449 = vunpack.c.h.b16 %v606
    %v1450 = vunpack.c.l.b16 %v607
    %v1451 = vunpack.c.h.b16 %v607
    %v1452 = vunpack.c.l.b16 %v608
    %v1453 = vunpack.c.h.b16 %v608
    %v1454 = vunpack.c.l.b16 %v609
    %v1455 = vunpack.c.h.b16 %v609
    %v1456 = vunpack.c.l.b16 %v610
    %v1457 = vunpack.c.h.b16 %v610
    %v1458 = vunpack.c.l.b16 %v611
    %v1459 = vunpack.c.h.b16 %v611
    %v1460 = vunpack.c.l.b16 %v612
    %v1461 = vunpack.c.h.b16 %v612
    %v1462 = vunpack.c.l.b16 %v613
    %v1463 = vunpack.c.h.b16 %v613
    %v1464 = vunpack.c.l.b16 %v614
    %v1465 = vunpack.c.h.b16 %v614
    %v1466 = vunpack.c.l.b16 %v615
    %v1467 = vunpack.c.h.b16 %v615
    %v1468 = vunpack.c.l.b16 %v616
    %v1469 = vunpack.c.h.b16 %v616
    %v1470 = vunpack.c.l.b16 %v617
    %v1471 = vunpack.c.h.b16 %v617
    %v1472 = vunpack.c.l.b16 %v618
    %v1473 = vunpack.c.h.b16 %v618
    %v1474 = vunpack.c.l.b16 %v619
    %v1475 = vunpack.c.h.b16 %v619
    %v1476 = vunpack.c.l.b16 %v620
    %v1477 = vunpack.c.h.b16 %v620
    %v1478 = vunpack.c.l.b16 %v621
    %v1479 = vunpack.c.h.b16 %v621
    %v1480 = vunpack.c.l.b16 %v622
    %v1481 = vunpack.c.h.b16 %v622
    %v1482 = vunpack.c.l.b16 %v623
    %v1483 = vunpack.c.h.b16 %v623
    %v1484 = vunpack.c.l.b16 %v624
    %v1485 = vunpack.c.h.b16 %v624
    %v1486 = vunpack.c.l.b16 %v625
    %v1487 = vunpack.c.h.b16 %v625
    %v1488 = vunpack.c.l.b16 %v626
    %v1489 = vunpack.c.h.b16 %v626
    %v1490 = vunpack.c.l.b16 %v627
    %v1491 = vunpack.c.h.b16 %v627
    %v1492 = vunpack.c.l.b16 %v628
    %v1493 = vunpack.c.h.b16 %v628
    %v1494 = vunpack.c.l.b16 %v629
    %v1495 = vunpack.c.h.b16 %v629
    %v1496 = vunpack.c.l.b16 %v630
    %v1497 = vunpack.c.h.b16 %v630
    %v1498 = vunpack.c.l.b16 %v631
    %v1499 = vunpack.c.h.b16 %v631
    %v1500 = vunpack.c.l.b16 %v632
    %v1501 = vunpack.c.h.b16 %v632
    %v1502 = vunpack.c.l.b16 %v633
    %v1503 = vunpack.c.h.b16 %v633
    %v1504 = vunpack.c.l.b16 %v634
    %v1505 = vunpack.c.h.b16 %v634
    %v1506 = vunpack.c.l.b16 %v635
    %v1507 = vunpack.c.h.b16 %v635
    %v1508 = vunpack.c.l.b16 %v636
    %v1509 = vunpack.c.h.b16 %v636
    %v1510 = vunpack.c.l.b16 %v637
    %v1511 = vunpack.c.h.b16 %v637
    %v1512 = vunpack.c.l.b16 %v638
    %v1513 = vunpack.c.h.b16 %v638
    %v1514 = vunpack.c.l.b16 %v639
    %v1515 = vunpack.c.h.b16 %v639
    %v1516 = vunpack.c.l.b16 %v640
    %v1517 = vunpack.c.h.b16 %v640
    %v1518 = vunpack.c.l.b16 %v641
    %v1519 = vunpack.c.h.b16 %v641
    %v1520 = vunpack.c.l.b16 %v642
    %v1521 = vunpack.c.h.b16 %v642
    %v1522 = vunpack.c.l.b16 %v643
    %v1523 = vunpack.c.h.b16 %v643
    %v1524 = vunpack.c.l.b16 %v644
    %v1525 = vunpack.c.h.b16 %v644
    %v1526 = vunpack.c.l.b16 %v645
    %v1527 = vunpack.c.h.b16 %v645
    %v1528 = vunpack.c.l.b16 %v646
    %v1529 = vunpack.c.h.b16 %v646
    %v1530 = vunpack.c.l.b16 %v647
    %v1531 = vunpack.c.h.b16 %v647
    %v1532 = vunpack.c.l.b16 %v648
    %v1533 = vunpack.c.h.b16 %v648
    %v1534 = vunpack.c.l.b16 %v649
    %v1535 = vunpack.c.h.b16 %v649
    %v1536 = vunpack.c.l.b16 %v650
    %v1537 = vunpack.c.h.b16 %v650
    %v1538 = vunpack.c.l.b16 %v651
    %v1539 = vunpack.c.h.b16 %v651
    %v1540 = vunpack.c.l.b16 %v652
    %v1541 = vunpack.c.h.b16 %v652
    %v1542 = vunpack.c.l.b16 %v653
    %v1543 = vunpack.c.h.b16 %v653
    %v1544 = vunpack.c.l.b16 %v654
    %v1545 = vunpack.c.h.b16 %v654
    %v1546 = vunpack.c.l.b16 %v655
    %v1547 = vunpack.c.h.b16 %v655
    %v1548 = vunpack.c.l.b16 %v656
    %v1549 = vunpack.c.h.b16 %v656
    %v1550 = vunpack.c.l.b16 %v657
    %v1551 = vunpack.c.h.b16 %v657
    %v1552 = vpack.c.b16 %v982, %v976
    %v1553 = vpack.c.b16 %v983, %v977
    %v1554 = vpack.c.b16 %v984, %v978
    %v1555 = vpack.c.b16 %v985, %v979
    %v1556 = vpack.c.b16 %v986, %v980
    %v1557 = vpack.c.b16 %v987, %v981
    %v1558 = vpack.c.b16 %v994, %v988
    %v1559 = vpack.c.b16 %v995, %v989
    %v1560 = vpack.c.b16 %v996, %v990
    %v1561 = vpack.c.b16 %v997, %v991
    %v1562 = vpack.c.b16 %v998, %v992
    %v1563 = vpack.c.b16 %v999, %v993
    %v1564 = vpack.c.b16 %v1006, %v1000
    %v1565 = vpack.c.b16 %v1007, %v1001
    %v1566 = vpack.c.b16 %v1008, %v1002
    %v1567 = vpack.c.b16 %v1009, %v1003
    %v1568 = vpack.c.b16 %v1010, %v1004
    %v1569 = vpack.c.b16 %v1011, %v1005
    %v1570 = vpack.c.b16 %v1018, %v1012
    %v1571 = vpack.c.b16 %v1019, %v1013
    %v1572 = vpack.c.b16 %v1020, %v1014
    %v1573 = vpack.c.b16 %v1021, %v1015
    %v1574 = vpack.c.b16 %v1022, %v1016
    %v1575 = vpack.c.b16 %v1023, %v1017
    %v1576 = vpack.c.b16 %v1030, %v1024
    %v1577 = vpack.c.b16 %v1031, %v1025
    %v1578 = vpack.c.b16 %v1032, %v1026
    %v1579 = vpack.c.b16 %v1033, %v1027
    %v1580 = vpack.c.b16 %v1034, %v1028
    %v1581 = vpack.c.b16 %v1035, %v1029
    %v1582 = vpack.c.b16 %v1042, %v1036
    %v1583 = vpack.c.b16 %v1043, %v1037
    %v1584 = vpack.c.b16 %v1044, %v1038
    %v1585 = vpack.c.b16 %v1045, %v1039
    %v1586 = vpack.c.b16 %v1046, %v1040
    %v1587 = vpack.c.b16 %v1047, %v1041
    %v1588 = vpack.c.b16 %v1054, %v1048
    %v1589 = vpack.c.b16 %v1055, %v1049
    %v1590 = vpack.c.b16 %v1056, %v1050
    %v1591 = vpack.c.b16 %v1057, %v1051
    %v1592 = vpack.c.b16 %v1058, %v1052
    %v1593 = vpack.c.b16 %v1059, %v1053
    %v1594 = vpack.c.b16 %v1066, %v1060
    %v1595 = vpack.c.b16 %v1067, %v1061
    %v1596 = vpack.c.b16 %v1068, %v1062
    %v1597 = vpack.c.b16 %v1069, %v1063
    %v1598 = vpack.c.b16 %v1070, %v1064
    %v1599 = vpack.c.b16 %v1071, %v1065
    %v1600 = vpack.c.b16 %v1078, %v1072
    %v1601 = vpack.c.b16 %v1079, %v1073
    %v1602 = vpack.c.b16 %v1080, %v1074
    %v1603 = vpack.c.b16 %v1081, %v1075
    %v1604 = vpack.c.b16 %v1082, %v1076
    %v1605 = vpack.c.b16 %v1083, %v1077
    %v1606 = vpack.c.b16 %v1090, %v1084
    %v1607 = vpack.c.b16 %v1091, %v1085
    %v1608 = vpack.c.b16 %v1092, %v1086
    %v1609 = vpack.c.b16 %v1093, %v1087
    %v1610 = vpack.c.b16 %v1094, %v1088
    %v1611 = vpack.c.b16 %v1095, %v1089
    %v1612 = vpack.c.b16 %v1102, %v1096
    %v1613 = vpack.c.b16 %v1103, %v1097
    %v1614 = vpack.c.b16 %v1104, %v1098
    %v1615 = vpack.c.b16 %v1105, %v1099
    %v1616 = vpack.c.b16 %v1106, %v1100
    %v1617 = vpack.c.b16 %v1107, %v1101
    %v1618 = vpack.c.b16 %v1114, %v1108
    %v1619 = vpack.c.b16 %v1115, %v1109
    %v1620 = vpack.c.b16 %v1116, %v1110
    %v1621 = vpack.c.b16 %v1117, %v1111
    %v1622 = vpack.c.b16 %v1118, %v1112
    %v1623 = vpack.c.b16 %v1119, %v1113
    %v1624 = vpack.c.b16 %v1126, %v1120
    %v1625 = vpack.c.b16 %v1127, %v1121
    %v1626 = vpack.c.b16 %v1128, %v1122
    %v1627 = vpack.c.b16 %v1129, %v1123
    %v1628 = vpack.c.b16 %v1130, %v1124
    %v1629 = vpack.c.b16 %v1131, %v1125
    %v1630 = vpack.c.b16 %v1138, %v1132
    %v1631 = vpack.c.b16 %v1139, %v1133
    %v1632 = vpack.c.b16 %v1140, %v1134
    %v1633 = vpack.c.b16 %v1141, %v1135
    %v1634 = vpack.c.b16 %v1142, %v1136
    %v1635 = vpack.c.b16 %v1143, %v1137
    %v1636 = vpack.c.b16 %v1150, %v1144
    %v1637 = vpack.c.b16 %v1151, %v1145
    %v1638 = vpack.c.b16 %v1152, %v1146
    %v1639 = vpack.c.b16 %v1153, %v1147
    %v1640 = vpack.c.b16 %v1154, %v1148
    %v1641 = vpack.c.b16 %v1155, %v1149
    %v1642 = vpack.c.b16 %v1162, %v1156
    %v1643 = vpack.c.b16 %v1163, %v1157
    %v1644 = vpack.c.b16 %v1164, %v1158
    %v1645 = vpack.c.b16 %v1165, %v1159
    %v1646 = vpack.c.b16 %v1166, %v1160
    %v1647 = vpack.c.b16 %v1167, %v1161
    %v1648 = vpack.c.b16 %v1174, %v1168
    %v1649 = vpack.c.b16 %v1175, %v1169
    %v1650 = vpack.c.b16 %v1176, %v1170
    %v1651 = vpack.c.b16 %v1177, %v1171
    %v1652 = vpack.c.b16 %v1178, %v1172
    %v1653 = vpack.c.b16 %v1179, %v1173
    %v1654 = vpack.c.b16 %v1186, %v1180
    %v1655 = vpack.c.b16 %v1187, %v1181
    %v1656 = vpack.c.b16 %v1188, %v1182
    %v1657 = vpack.c.b16 %v1189, %v1183
    %v1658 = vpack.c.b16 %v1190, %v1184
    %v1659 = vpack.c.b16 %v1191, %v1185
    %v1660 = vpack.c.b16 %v1198, %v1192
    %v1661 = vpack.c.b16 %v1199, %v1193
    %v1662 = vpack.c.b16 %v1200, %v1194
    %v1663 = vpack.c.b16 %v1201, %v1195
    %v1664 = vpack.c.b16 %v1202, %v1196
    %v1665 = vpack.c.b16 %v1203, %v1197
    %v1666 = vpack.c.b16 %v1210, %v1204
    %v1667 = vpack.c.b16 %v1211, %v1205
    %v1668 = vpack.c.b16 %v1212, %v1206
    %v1669 = vpack.c.b16 %v1213, %v1207
    %v1670 = vpack.c.b16 %v1214, %v1208
    %v1671 = vpack.c.b16 %v1215, %v1209
    %v1672 = vpack.c.b16 %v1222, %v1216
    %v1673 = vpack.c.b16 %v1223, %v1217
    %v1674 = vpack.c.b16 %v1224, %v1218
    %v1675 = vpack.c.b16 %v1225, %v1219
    %v1676 = vpack.c.b16 %v1226, %v1220
    %v1677 = vpack.c.b16 %v1227, %v1221
    %v1678 = vpack.c.b16 %v1234, %v1228
    %v1679 = vpack.c.b16 %v1235, %v1229
    %v1680 = vpack.c.b16 %v1236, %v1230
    %v1681 = vpack.c.b16 %v1237, %v1231
    %v1682 = vpack.c.b16 %v1238, %v1232
    %v1683 = vpack.c.b16 %v1239, %v1233
    %v1684 = vpack.c.b16 %v1246, %v1240
    %v1685 = vpack.c.b16 %v1247, %v1241
    %v1686 = vpack.c.b16 %v1248, %v1242
    %v1687 = vpack.c.b16 %v1249, %v1243
    %v1688 = vpack.c.b16 %v1250, %v1244
    %v1689 = vpack.c.b16 %v1251, %v1245
    %v1690 = vpack.c.b16 %v1258, %v1252
    %v1691 = vpack.c.b16 %v1259, %v1253
    %v1692 = vpack.c.b16 %v1260, %v1254
    %v1693 = vpack.c.b16 %v1261, %v1255
    %v1694 = vpack.c.b16 %v1262, %v1256
    %v1695 = vpack.c.b16 %v1263, %v1257
    %v1696 = vpack.c.b16 %v1270, %v1264
    %v1697 = vpack.c.b16 %v1271, %v1265
    %v1698 = vpack.c.b16 %v1272, %v1266
    %v1699 = vpack.c.b16 %v1273, %v1267
    %v1700 = vpack.c.b16 %v1274, %v1268
    %v1701 = vpack.c.b16 %v1275, %v1269
    %v1702 = vpack.c.b16 %v1282, %v1276
    %v1703 = vpack.c.b16 %v1283, %v1277
    %v1704 = vpack.c.b16 %v1284, %v1278
    %v1705 = vpack.c.b16 %v1285, %v1279
    %v1706 = vpack.c.b16 %v1286, %v1280
    %v1707 = vpack.c.b16 %v1287, %v1281
    %v1708 = vpack.c.b16 %v1294, %v1288
    %v1709 = vpack.c.b16 %v1295, %v1289
    %v1710 = vpack.c.b16 %v1296, %v1290
    %v1711 = vpack.c.b16 %v1297, %v1291
    %v1712 = vpack.c.b16 %v1298, %v1292
    %v1713 = vpack.c.b16 %v1299, %v1293
    %v1714 = vpack.c.b16 %v1306, %v1300
    %v1715 = vpack.c.b16 %v1307, %v1301
    %v1716 = vpack.c.b16 %v1308, %v1302
    %v1717 = vpack.c.b16 %v1309, %v1303
    %v1718 = vpack.c.b16 %v1310, %v1304
    %v1719 = vpack.c.b16 %v1311, %v1305
    %v1720 = vpack.c.b16 %v1318, %v1312
    %v1721 = vpack.c.b16 %v1319, %v1313
    %v1722 = vpack.c.b16 %v1320, %v1314
    %v1723 = vpack.c.b16 %v1321, %v1315
    %v1724 = vpack.c.b16 %v1322, %v1316
    %v1725 = vpack.c.b16 %v1323, %v1317
    %v1726 = vpack.c.b16 %v1330, %v1324
    %v1727 = vpack.c.b16 %v1331, %v1325
    %v1728 = vpack.c.b16 %v1332, %v1326
    %v1729 = vpack.c.b16 %v1333, %v1327
    %v1730 = vpack.c.b16 %v1334, %v1328
    %v1731 = vpack.c.b16 %v1335, %v1329
    %v1732 = vpack.c.b16 %v1342, %v1336
    %v1733 = vpack.c.b16 %v1343, %v1337
    %v1734 = vpack.c.b16 %v1344, %v1338
    %v1735 = vpack.c.b16 %v1345, %v1339
    %v1736 = vpack.c.b16 %v1346, %v1340
    %v1737 = vpack.c.b16 %v1347, %v1341
    %v1738 = vpack.c.b16 %v1354, %v1348
    %v1739 = vpack.c.b16 %v1355, %v1349
    %v1740 = vpack.c.b16 %v1356, %v1350
    %v1741 = vpack.c.b16 %v1357, %v1351
    %v1742 = vpack.c.b16 %v1358, %v1352
    %v1743 = vpack.c.b16 %v1359, %v1353
    %v1744 = vpack.c.b16 %v1366, %v1360
    %v1745 = vpack.c.b16 %v1367, %v1361
    %v1746 = vpack.c.b16 %v1368, %v1362
    %v1747 = vpack.c.b16 %v1369, %v1363
    %v1748 = vpack.c.b16 %v1370, %v1364
    %v1749 = vpack.c.b16 %v1371, %v1365
    %v1750 = vpack.c.b16 %v1378, %v1372
    %v1751 = vpack.c.b16 %v1379, %v1373
    %v1752 = vpack.c.b16 %v1380, %v1374
    %v1753 = vpack.c.b16 %v1381, %v1375
    %v1754 = vpack.c.b16 %v1382, %v1376
    %v1755 = vpack.c.b16 %v1383, %v1377
    %v1756 = vpack.c.b16 %v1390, %v1384
    %v1757 = vpack.c.b16 %v1391, %v1385
    %v1758 = vpack.c.b16 %v1392, %v1386
    %v1759 = vpack.c.b16 %v1393, %v1387
    %v1760 = vpack.c.b16 %v1394, %v1388
    %v1761 = vpack.c.b16 %v1395, %v1389
    %v1762 = vpack.c.b16 %v1402, %v1396
    %v1763 = vpack.c.b16 %v1403, %v1397
    %v1764 = vpack.c.b16 %v1404, %v1398
    %v1765 = vpack.c.b16 %v1405, %v1399
    %v1766 = vpack.c.b16 %v1406, %v1400
    %v1767 = vpack.c.b16 %v1407, %v1401
    %v1768 = vpack.c.b16 %v1414, %v1408
    %v1769 = vpack.c.b16 %v1415, %v1409
    %v1770 = vpack.c.b16 %v1416, %v1410
    %v1771 = vpack.c.b16 %v1417, %v1411
    %v1772 = vpack.c.b16 %v1418, %v1412
    %v1773 = vpack.c.b16 %v1419, %v1413
    %v1774 = vpack.c.b16 %v1426, %v1420
    %v1775 = vpack.c.b16 %v1427, %v1421
    %v1776 = vpack.c.b16 %v1428, %v1422
    %v1777 = vpack.c.b16 %v1429, %v1423
    %v1778 = vpack.c.b16 %v1430, %v1424
    %v1779 = vpack.c.b16 %v1431, %v1425
    %v1780 = vpack.c.b16 %v1438, %v1432
    %v1781 = vpack.c.b16 %v1439, %v1433
    %v1782 = vpack.c.b16 %v1440, %v1434
    %v1783 = vpack.c.b16 %v1441, %v1435
    %v1784 = vpack.c.b16 %v1442, %v1436
    %v1785 = vpack.c.b16 %v1443, %v1437
    %v1786 = vpack.c.b16 %v1450, %v1444
    %v1787 = vpack.c.b16 %v1451, %v1445
    %v1788 = vpack.c.b16 %v1452, %v1446
    %v1789 = vpack.c.b16 %v1453, %v1447
    %v1790 = vpack.c.b16 %v1454, %v1448
    %v1791 = vpack.c.b16 %v1455, %v1449
    %v1792 = vpack.c.b16 %v1462, %v1456
    %v1793 = vpack.c.b16 %v1463, %v1457
    %v1794 = vpack.c.b16 %v1464, %v1458
    %v1795 = vpack.c.b16 %v1465, %v1459
    %v1796 = vpack.c.b16 %v1466, %v1460
    %v1797 = vpack.c.b16 %v1467, %v1461
    %v1798 = vpack.c.b16 %v1474, %v1468
    %v1799 = vpack.c.b16 %v1475, %v1469
    %v1800 = vpack.c.b16 %v1476, %v1470
    %v1801 = vpack.c.b16 %v1477, %v1471
    %v1802 = vpack.c.b16 %v1478, %v1472
    %v1803 = vpack.c.b16 %v1479, %v1473
    %v1804 = vpack.c.b16 %v1486, %v1480
    %v1805 = vpack.c.b16 %v1487, %v1481
    %v1806 = vpack.c.b16 %v1488, %v1482
    %v1807 = vpack.c.b16 %v1489, %v1483
    %v1808 = vpack.c.b16 %v1490, %v1484
    %v1809 = vpack.c.b16 %v1491, %v1485
    %v1810 = vpack.c.b16 %v1498, %v1492
    %v1811 = vpack.c.b16 %v1499, %v1493
    %v1812 = vpack.c.b16 %v1500, %v1494
    %v1813 = vpack.c.b16 %v1501, %v1495
    %v1814 = vpack.c.b16 %v1502, %v1496
    %v1815 = vpack.c.b16 %v1503, %v1497
    %v1816 = vpack.c.b16 %v1510, %v1504
    %v1817 = vpack.c.b16 %v1511, %v1505
    %v1818 = vpack.c.b16 %v1512, %v1506
    %v1819 = vpack.c.b16 %v1513, %v1507
    %v1820 = vpack.c.b16 %v1514, %v1508
    %v1821 = vpack.c.b16 %v1515, %v1509
    %v1822 = vpack.c.b16 %v1522, %v1516
    %v1823 = vpack.c.b16 %v1523, %v1517
    %v1824 = vpack.c.b16 %v1524, %v1518
    %v1825 = vpack.c.b16 %v1525, %v1519
    %v1826 = vpack.c.b16 %v1526, %v1520
    %v1827 = vpack.c.b16 %v1527, %v1521
    %v1828 = vpack.c.b16 %v1534, %v1528
    %v1829 = vpack.c.b16 %v1535, %v1529
    %v1830 = vpack.c.b16 %v1536, %v1530
    %v1831 = vpack.c.b16 %v1537, %v1531
    %v1832 = vpack.c.b16 %v1538, %v1532
    %v1833 = vpack.c.b16 %v1539, %v1533
    %v1834 = vpack.c.b16 %v1546, %v1540
    %v1835 = vpack.c.b16 %v1547, %v1541
    %v1836 = vpack.c.b16 %v1548, %v1542
    %v1837 = vpack.c.b16 %v1549, %v1543
    %v1838 = vpack.c.b16 %v1550, %v1544
    %v1839 = vpack.c.b16 %v1551, %v1545
    %2128 = vmatpush.bf16.msra.mxu0 %v1594
    %2129 = vmatpush.bf16.msra.mxu0 %v1588
    %2130 = vmatpush.bf16.msra.mxu0 %v1582
    %2131 = vmatpush.bf16.msra.mxu0 %v1576
    %2132 = vmatpush.bf16.msra.mxu0 %v1570
    %2133 = vmatpush.bf16.msra.mxu0 %v1564
    %2134 = vmatpush.bf16.msra.mxu0 %v1558
    %2135 = vmatpush.bf16.msra.mxu0 %v1552
    %2136 = vmatmul.bf16.gmra.mxu0 %v676
    %v2137 = vpop.f32.mrf.mxu0
    %v2138 = vadd.f32 0.0, %v2137
    %v2139 = vpop.f32.mrf.mxu0
    %v2140 = vadd.f32 0.0, %v2139
    %2141 = vdwg.mxu0
    %2142 = vmatpush.bf16.msra.mxu0 %v1642
    %2143 = vmatpush.bf16.msra.mxu0 %v1636
    %2144 = vmatpush.bf16.msra.mxu0 %v1630
    %2145 = vmatpush.bf16.msra.mxu0 %v1624
    %2146 = vmatpush.bf16.msra.mxu0 %v1618
    %2147 = vmatpush.bf16.msra.mxu0 %v1612
    %2148 = vmatpush.bf16.msra.mxu0 %v1606
    %2149 = vmatpush.bf16.msra.mxu0 %v1600
    %2150 = vmatmul.bf16.gmra.mxu0 %v677
    %v2151 = vpop.f32.mrf.mxu0
    %v2152 = vadd.f32 %v2138, %v2151
    %v2153 = vpop.f32.mrf.mxu0
    %v2154 = vadd.f32 %v2140, %v2153
    %2155 = vdwg.mxu0
    %2156 = vmatpush.bf16.msra.mxu0 %v1690
    %2157 = vmatpush.bf16.msra.mxu0 %v1684
    %2158 = vmatpush.bf16.msra.mxu0 %v1678
    %2159 = vmatpush.bf16.msra.mxu0 %v1672
    %2160 = vmatpush.bf16.msra.mxu0 %v1666
    %2161 = vmatpush.bf16.msra.mxu0 %v1660
    %2162 = vmatpush.bf16.msra.mxu0 %v1654
    %2163 = vmatpush.bf16.msra.mxu0 %v1648
    %2164 = vmatmul.bf16.gmra.mxu0 %v678
    %v2165 = vpop.f32.mrf.mxu0
    %v2166 = vadd.f32 %v2152, %v2165
    %v2167 = vpop.f32.mrf.mxu0
    %v2168 = vadd.f32 %v2154, %v2167
    %2169 = vdwg.mxu0
    %2170 = vmatpush.bf16.msra.mxu0 %v1738
    %2171 = vmatpush.bf16.msra.mxu0 %v1732
    %2172 = vmatpush.bf16.msra.mxu0 %v1726
    %2173 = vmatpush.bf16.msra.mxu0 %v1720
    %2174 = vmatpush.bf16.msra.mxu0 %v1714
    %2175 = vmatpush.bf16.msra.mxu0 %v1708
    %2176 = vmatpush.bf16.msra.mxu0 %v1702
    %2177 = vmatpush.bf16.msra.mxu0 %v1696
    %2178 = vmatmul.bf16.gmra.mxu0 %v679
    %v2179 = vpop.f32.mrf.mxu0
    %v2180 = vadd.f32 %v2166, %v2179
    %v2181 = vpop.f32.mrf.mxu0
    %v2182 = vadd.f32 %v2168, %v2181
    %2183 = vdwg.mxu0
    %2184 = vmatpush.bf16.msra.mxu0 %v1786
    %2185 = vmatpush.bf16.msra.mxu0 %v1780
    %2186 = vmatpush.bf16.msra.mxu0 %v1774
    %2187 = vmatpush.bf16.msra.mxu0 %v1768
    %2188 = vmatpush.bf16.msra.mxu0 %v1762
    %2189 = vmatpush.bf16.msra.mxu0 %v1756
    %2190 = vmatpush.bf16.msra.mxu0 %v1750
    %2191 = vmatpush.bf16.msra.mxu0 %v1744
    %2192 = vmatmul.bf16.gmra.mxu0 %v680
    %v2193 = vpop.f32.mrf.mxu0
    %v2194 = vadd.f32 %v2180, %v2193
    %v2195 = vpop.f32.mrf.mxu0
    %v2196 = vadd.f32 %v2182, %v2195
    %2197 = vdwg.mxu0
    %2198 = vmatpush.bf16.msra.mxu0 %v1834
    %2199 = vmatpush.bf16.msra.mxu0 %v1828
    %2200 = vmatpush.bf16.msra.mxu0 %v1822
    %2201 = vmatpush.bf16.msra.mxu0 %v1816
    %2202 = vmatpush.bf16.msra.mxu0 %v1810
    %2203 = vmatpush.bf16.msra.mxu0 %v1804
    %2204 = vmatpush.bf16.msra.mxu0 %v1798
    %2205 = vmatpush.bf16.msra.mxu0 %v1792
    %2206 = vmatmul.bf16.gmra.mxu0 %v681
    %v2207 = vpop.f32.mrf.mxu0
    %v2208 = vadd.f32 %v2194, %v2207
    %v2209 = vpop.f32.mrf.mxu0
    %v2210 = vadd.f32 %v2196, %v2209
    %2211 = vdwg.mxu0
    %2212 = vmatpush.bf16.msra.mxu0 %v1595
    %2213 = vmatpush.bf16.msra.mxu0 %v1589
    %2214 = vmatpush.bf16.msra.mxu0 %v1583
    %2215 = vmatpush.bf16.msra.mxu0 %v1577
    %2216 = vmatpush.bf16.msra.mxu0 %v1571
    %2217 = vmatpush.bf16.msra.mxu0 %v1565
    %2218 = vmatpush.bf16.msra.mxu0 %v1559
    %2219 = vmatpush.bf16.msra.mxu0 %v1553
    %2220 = vmatmul.bf16.gmra.mxu0 %v676
    %v2221 = vpop.f32.mrf.mxu0
    %v2222 = vadd.f32 0.0, %v2221
    %v2223 = vpop.f32.mrf.mxu0
    %v2224 = vadd.f32 0.0, %v2223
    %2225 = vdwg.mxu0
    %2226 = vmatpush.bf16.msra.mxu0 %v1643
    %2227 = vmatpush.bf16.msra.mxu0 %v1637
    %2228 = vmatpush.bf16.msra.mxu0 %v1631
    %2229 = vmatpush.bf16.msra.mxu0 %v1625
    %2230 = vmatpush.bf16.msra.mxu0 %v1619
    %2231 = vmatpush.bf16.msra.mxu0 %v1613
    %2232 = vmatpush.bf16.msra.mxu0 %v1607
    %2233 = vmatpush.bf16.msra.mxu0 %v1601
    %2234 = vmatmul.bf16.gmra.mxu0 %v677
    %v2235 = vpop.f32.mrf.mxu0
    %v2236 = vadd.f32 %v2222, %v2235
    %v2237 = vpop.f32.mrf.mxu0
    %v2238 = vadd.f32 %v2224, %v2237
    %2239 = vdwg.mxu0
    %2240 = vmatpush.bf16.msra.mxu0 %v1691
    %2241 = vmatpush.bf16.msra.mxu0 %v1685
    %2242 = vmatpush.bf16.msra.mxu0 %v1679
    %2243 = vmatpush.bf16.msra.mxu0 %v1673
    %2244 = vmatpush.bf16.msra.mxu0 %v1667
    %2245 = vmatpush.bf16.msra.mxu0 %v1661
    %2246 = vmatpush.bf16.msra.mxu0 %v1655
    %2247 = vmatpush.bf16.msra.mxu0 %v1649
    %2248 = vmatmul.bf16.gmra.mxu0 %v678
    %v2249 = vpop.f32.mrf.mxu0
    %v2250 = vadd.f32 %v2236, %v2249
    %v2251 = vpop.f32.mrf.mxu0
    %v2252 = vadd.f32 %v2238, %v2251
    %2253 = vdwg.mxu0
    %2254 = vmatpush.bf16.msra.mxu0 %v1739
    %2255 = vmatpush.bf16.msra.mxu0 %v1733
    %2256 = vmatpush.bf16.msra.mxu0 %v1727
    %2257 = vmatpush.bf16.msra.mxu0 %v1721
    %2258 = vmatpush.bf16.msra.mxu0 %v1715
    %2259 = vmatpush.bf16.msra.mxu0 %v1709
    %2260 = vmatpush.bf16.msra.mxu0 %v1703
    %2261 = vmatpush.bf16.msra.mxu0 %v1697
    %2262 = vmatmul.bf16.gmra.mxu0 %v679
    %v2263 = vpop.f32.mrf.mxu0
    %v2264 = vadd.f32 %v2250, %v2263
    %v2265 = vpop.f32.mrf.mxu0
    %v2266 = vadd.f32 %v2252, %v2265
    %2267 = vdwg.mxu0
    %2268 = vmatpush.bf16.msra.mxu0 %v1787
    %2269 = vmatpush.bf16.msra.mxu0 %v1781
    %2270 = vmatpush.bf16.msra.mxu0 %v1775
    %2271 = vmatpush.bf16.msra.mxu0 %v1769
    %2272 = vmatpush.bf16.msra.mxu0 %v1763
    %2273 = vmatpush.bf16.msra.mxu0 %v1757
    %2274 = vmatpush.bf16.msra.mxu0 %v1751
    %2275 = vmatpush.bf16.msra.mxu0 %v1745
    %2276 = vmatmul.bf16.gmra.mxu0 %v680
    %v2277 = vpop.f32.mrf.mxu0
    %v2278 = vadd.f32 %v2264, %v2277
    %v2279 = vpop.f32.mrf.mxu0
    %v2280 = vadd.f32 %v2266, %v2279
    %2281 = vdwg.mxu0
    %2282 = vmatpush.bf16.msra.mxu0 %v1835
    %2283 = vmatpush.bf16.msra.mxu0 %v1829
    %2284 = vmatpush.bf16.msra.mxu0 %v1823
    %2285 = vmatpush.bf16.msra.mxu0 %v1817
    %2286 = vmatpush.bf16.msra.mxu0 %v1811
    %2287 = vmatpush.bf16.msra.mxu0 %v1805
    %2288 = vmatpush.bf16.msra.mxu0 %v1799
    %2289 = vmatpush.bf16.msra.mxu0 %v1793
    %2290 = vmatmul.bf16.gmra.mxu0 %v681
    %v2291 = vpop.f32.mrf.mxu0
    %v2292 = vadd.f32 %v2278, %v2291
    %v2293 = vpop.f32.mrf.mxu0
    %v2294 = vadd.f32 %v2280, %v2293
    %2295 = vdwg.mxu0
    %2296 = vmatpush.bf16.msra.mxu0 %v1596
    %2297 = vmatpush.bf16.msra.mxu0 %v1590
    %2298 = vmatpush.bf16.msra.mxu0 %v1584
    %2299 = vmatpush.bf16.msra.mxu0 %v1578
    %2300 = vmatpush.bf16.msra.mxu0 %v1572
    %2301 = vmatpush.bf16.msra.mxu0 %v1566
    %2302 = vmatpush.bf16.msra.mxu0 %v1560
    %2303 = vmatpush.bf16.msra.mxu0 %v1554
    %2304 = vmatmul.bf16.gmra.mxu0 %v676
    %v2305 = vpop.f32.mrf.mxu0
    %v2306 = vadd.f32 0.0, %v2305
    %v2307 = vpop.f32.mrf.mxu0
    %v2308 = vadd.f32 0.0, %v2307
    %2309 = vdwg.mxu0
    %2310 = vmatpush.bf16.msra.mxu0 %v1644
    %2311 = vmatpush.bf16.msra.mxu0 %v1638
    %2312 = vmatpush.bf16.msra.mxu0 %v1632
    %2313 = vmatpush.bf16.msra.mxu0 %v1626
    %2314 = vmatpush.bf16.msra.mxu0 %v1620
    %2315 = vmatpush.bf16.msra.mxu0 %v1614
    %2316 = vmatpush.bf16.msra.mxu0 %v1608
    %2317 = vmatpush.bf16.msra.mxu0 %v1602
    %2318 = vmatmul.bf16.gmra.mxu0 %v677
    %v2319 = vpop.f32.mrf.mxu0
    %v2320 = vadd.f32 %v2306, %v2319
    %v2321 = vpop.f32.mrf.mxu0
    %v2322 = vadd.f32 %v2308, %v2321
    %2323 = vdwg.mxu0
    %2324 = vmatpush.bf16.msra.mxu0 %v1692
    %2325 = vmatpush.bf16.msra.mxu0 %v1686
    %2326 = vmatpush.bf16.msra.mxu0 %v1680
    %2327 = vmatpush.bf16.msra.mxu0 %v1674
    %2328 = vmatpush.bf16.msra.mxu0 %v1668
    %2329 = vmatpush.bf16.msra.mxu0 %v1662
    %2330 = vmatpush.bf16.msra.mxu0 %v1656
    %2331 = vmatpush.bf16.msra.mxu0 %v1650
    %2332 = vmatmul.bf16.gmra.mxu0 %v678
    %v2333 = vpop.f32.mrf.mxu0
    %v2334 = vadd.f32 %v2320, %v2333
    %v2335 = vpop.f32.mrf.mxu0
    %v2336 = vadd.f32 %v2322, %v2335
    %2337 = vdwg.mxu0
    %2338 = vmatpush.bf16.msra.mxu0 %v1740
    %2339 = vmatpush.bf16.msra.mxu0 %v1734
    %2340 = vmatpush.bf16.msra.mxu0 %v1728
    %2341 = vmatpush.bf16.msra.mxu0 %v1722
    %2342 = vmatpush.bf16.msra.mxu0 %v1716
    %2343 = vmatpush.bf16.msra.mxu0 %v1710
    %2344 = vmatpush.bf16.msra.mxu0 %v1704
    %2345 = vmatpush.bf16.msra.mxu0 %v1698
    %2346 = vmatmul.bf16.gmra.mxu0 %v679
    %v2347 = vpop.f32.mrf.mxu0
    %v2348 = vadd.f32 %v2334, %v2347
    %v2349 = vpop.f32.mrf.mxu0
    %v2350 = vadd.f32 %v2336, %v2349
    %2351 = vdwg.mxu0
    %2352 = vmatpush.bf16.msra.mxu0 %v1788
    %2353 = vmatpush.bf16.msra.mxu0 %v1782
    %2354 = vmatpush.bf16.msra.mxu0 %v1776
    %2355 = vmatpush.bf16.msra.mxu0 %v1770
    %2356 = vmatpush.bf16.msra.mxu0 %v1764
    %2357 = vmatpush.bf16.msra.mxu0 %v1758
    %2358 = vmatpush.bf16.msra.mxu0 %v1752
    %2359 = vmatpush.bf16.msra.mxu0 %v1746
    %2360 = vmatmul.bf16.gmra.mxu0 %v680
    %v2361 = vpop.f32.mrf.mxu0
    %v2362 = vadd.f32 %v2348, %v2361
    %v2363 = vpop.f32.mrf.mxu0
    %v2364 = vadd.f32 %v2350, %v2363
    %2365 = vdwg.mxu0
    %2366 = vmatpush.bf16.msra.mxu0 %v1836
    %2367 = vmatpush.bf16.msra.mxu0 %v1830
    %2368 = vmatpush.bf16.msra.mxu0 %v1824
    %2369 = vmatpush.bf16.msra.mxu0 %v1818
    %2370 = vmatpush.bf16.msra.mxu0 %v1812
    %2371 = vmatpush.bf16.msra.mxu0 %v1806
    %2372 = vmatpush.bf16.msra.mxu0 %v1800
    %2373 = vmatpush.bf16.msra.mxu0 %v1794
    %2374 = vmatmul.bf16.gmra.mxu0 %v681
    %v2375 = vpop.f32.mrf.mxu0
    %v2376 = vadd.f32 %v2362, %v2375
    %v2377 = vpop.f32.mrf.mxu0
    %v2378 = vadd.f32 %v2364, %v2377
    %2379 = vdwg.mxu0
    %2380 = vmatpush.bf16.msra.mxu0 %v1597
    %2381 = vmatpush.bf16.msra.mxu0 %v1591
    %2382 = vmatpush.bf16.msra.mxu0 %v1585
    %2383 = vmatpush.bf16.msra.mxu0 %v1579
    %2384 = vmatpush.bf16.msra.mxu0 %v1573
    %2385 = vmatpush.bf16.msra.mxu0 %v1567
    %2386 = vmatpush.bf16.msra.mxu0 %v1561
    %2387 = vmatpush.bf16.msra.mxu0 %v1555
    %2388 = vmatmul.bf16.gmra.mxu0 %v676
    %v2389 = vpop.f32.mrf.mxu0
    %v2390 = vadd.f32 0.0, %v2389
    %v2391 = vpop.f32.mrf.mxu0
    %v2392 = vadd.f32 0.0, %v2391
    %2393 = vdwg.mxu0
    %2394 = vmatpush.bf16.msra.mxu0 %v1645
    %2395 = vmatpush.bf16.msra.mxu0 %v1639
    %2396 = vmatpush.bf16.msra.mxu0 %v1633
    %2397 = vmatpush.bf16.msra.mxu0 %v1627
    %2398 = vmatpush.bf16.msra.mxu0 %v1621
    %2399 = vmatpush.bf16.msra.mxu0 %v1615
    %2400 = vmatpush.bf16.msra.mxu0 %v1609
    %2401 = vmatpush.bf16.msra.mxu0 %v1603
    %2402 = vmatmul.bf16.gmra.mxu0 %v677
    %v2403 = vpop.f32.mrf.mxu0
    %v2404 = vadd.f32 %v2390, %v2403
    %v2405 = vpop.f32.mrf.mxu0
    %v2406 = vadd.f32 %v2392, %v2405
    %2407 = vdwg.mxu0
    %2408 = vmatpush.bf16.msra.mxu0 %v1693
    %2409 = vmatpush.bf16.msra.mxu0 %v1687
    %2410 = vmatpush.bf16.msra.mxu0 %v1681
    %2411 = vmatpush.bf16.msra.mxu0 %v1675
    %2412 = vmatpush.bf16.msra.mxu0 %v1669
    %2413 = vmatpush.bf16.msra.mxu0 %v1663
    %2414 = vmatpush.bf16.msra.mxu0 %v1657
    %2415 = vmatpush.bf16.msra.mxu0 %v1651
    %2416 = vmatmul.bf16.gmra.mxu0 %v678
    %v2417 = vpop.f32.mrf.mxu0
    %v2418 = vadd.f32 %v2404, %v2417
    %v2419 = vpop.f32.mrf.mxu0
    %v2420 = vadd.f32 %v2406, %v2419
    %2421 = vdwg.mxu0
    %2422 = vmatpush.bf16.msra.mxu0 %v1741
    %2423 = vmatpush.bf16.msra.mxu0 %v1735
    %2424 = vmatpush.bf16.msra.mxu0 %v1729
    %2425 = vmatpush.bf16.msra.mxu0 %v1723
    %2426 = vmatpush.bf16.msra.mxu0 %v1717
    %2427 = vmatpush.bf16.msra.mxu0 %v1711
    %2428 = vmatpush.bf16.msra.mxu0 %v1705
    %2429 = vmatpush.bf16.msra.mxu0 %v1699
    %2430 = vmatmul.bf16.gmra.mxu0 %v679
    %v2431 = vpop.f32.mrf.mxu0
    %v2432 = vadd.f32 %v2418, %v2431
    %v2433 = vpop.f32.mrf.mxu0
    %v2434 = vadd.f32 %v2420, %v2433
    %2435 = vdwg.mxu0
    %2436 = vmatpush.bf16.msra.mxu0 %v1789
    %2437 = vmatpush.bf16.msra.mxu0 %v1783
    %2438 = vmatpush.bf16.msra.mxu0 %v1777
    %2439 = vmatpush.bf16.msra.mxu0 %v1771
    %2440 = vmatpush.bf16.msra.mxu0 %v1765
    %2441 = vmatpush.bf16.msra.mxu0 %v1759
    %2442 = vmatpush.bf16.msra.mxu0 %v1753
    %2443 = vmatpush.bf16.msra.mxu0 %v1747
    %2444 = vmatmul.bf16.gmra.mxu0 %v680
    %v2445 = vpop.f32.mrf.mxu0
    %v2446 = vadd.f32 %v2432, %v2445
    %v2447 = vpop.f32.mrf.mxu0
    %v2448 = vadd.f32 %v2434, %v2447
    %2449 = vdwg.mxu0
    %2450 = vmatpush.bf16.msra.mxu0 %v1837
    %2451 = vmatpush.bf16.msra.mxu0 %v1831
    %2452 = vmatpush.bf16.msra.mxu0 %v1825
    %2453 = vmatpush.bf16.msra.mxu0 %v1819
    %2454 = vmatpush.bf16.msra.mxu0 %v1813
    %2455 = vmatpush.bf16.msra.mxu0 %v1807
    %2456 = vmatpush.bf16.msra.mxu0 %v1801
    %2457 = vmatpush.bf16.msra.mxu0 %v1795
    %2458 = vmatmul.bf16.gmra.mxu0 %v681
    %v2459 = vpop.f32.mrf.mxu0
    %v2460 = vadd.f32 %v2446, %v2459
    %v2461 = vpop.f32.mrf.mxu0
    %v2462 = vadd.f32 %v2448, %v2461
    %2463 = vdwg.mxu0
    %2464 = vmatpush.bf16.msra.mxu0 %v1598
    %2465 = vmatpush.bf16.msra.mxu0 %v1592
    %2466 = vmatpush.bf16.msra.mxu0 %v1586
    %2467 = vmatpush.bf16.msra.mxu0 %v1580
    %2468 = vmatpush.bf16.msra.mxu0 %v1574
    %2469 = vmatpush.bf16.msra.mxu0 %v1568
    %2470 = vmatpush.bf16.msra.mxu0 %v1562
    %2471 = vmatpush.bf16.msra.mxu0 %v1556
    %2472 = vmatmul.bf16.gmra.mxu0 %v676
    %v2473 = vpop.f32.mrf.mxu0
    %v2474 = vadd.f32 0.0, %v2473
    %v2475 = vpop.f32.mrf.mxu0
    %v2476 = vadd.f32 0.0, %v2475
    %2477 = vdwg.mxu0
    %2478 = vmatpush.bf16.msra.mxu0 %v1646
    %2479 = vmatpush.bf16.msra.mxu0 %v1640
    %2480 = vmatpush.bf16.msra.mxu0 %v1634
    %2481 = vmatpush.bf16.msra.mxu0 %v1628
    %2482 = vmatpush.bf16.msra.mxu0 %v1622
    %2483 = vmatpush.bf16.msra.mxu0 %v1616
    %2484 = vmatpush.bf16.msra.mxu0 %v1610
    %2485 = vmatpush.bf16.msra.mxu0 %v1604
    %2486 = vmatmul.bf16.gmra.mxu0 %v677
    %v2487 = vpop.f32.mrf.mxu0
    %v2488 = vadd.f32 %v2474, %v2487
    %v2489 = vpop.f32.mrf.mxu0
    %v2490 = vadd.f32 %v2476, %v2489
    %2491 = vdwg.mxu0
    %2492 = vmatpush.bf16.msra.mxu0 %v1694
    %2493 = vmatpush.bf16.msra.mxu0 %v1688
    %2494 = vmatpush.bf16.msra.mxu0 %v1682
    %2495 = vmatpush.bf16.msra.mxu0 %v1676
    %2496 = vmatpush.bf16.msra.mxu0 %v1670
    %2497 = vmatpush.bf16.msra.mxu0 %v1664
    %2498 = vmatpush.bf16.msra.mxu0 %v1658
    %2499 = vmatpush.bf16.msra.mxu0 %v1652
    %2500 = vmatmul.bf16.gmra.mxu0 %v678
    %v2501 = vpop.f32.mrf.mxu0
    %v2502 = vadd.f32 %v2488, %v2501
    %v2503 = vpop.f32.mrf.mxu0
    %v2504 = vadd.f32 %v2490, %v2503
    %2505 = vdwg.mxu0
    %2506 = vmatpush.bf16.msra.mxu0 %v1742
    %2507 = vmatpush.bf16.msra.mxu0 %v1736
    %2508 = vmatpush.bf16.msra.mxu0 %v1730
    %2509 = vmatpush.bf16.msra.mxu0 %v1724
    %2510 = vmatpush.bf16.msra.mxu0 %v1718
    %2511 = vmatpush.bf16.msra.mxu0 %v1712
    %2512 = vmatpush.bf16.msra.mxu0 %v1706
    %2513 = vmatpush.bf16.msra.mxu0 %v1700
    %2514 = vmatmul.bf16.gmra.mxu0 %v679
    %v2515 = vpop.f32.mrf.mxu0
    %v2516 = vadd.f32 %v2502, %v2515
    %v2517 = vpop.f32.mrf.mxu0
    %v2518 = vadd.f32 %v2504, %v2517
    %2519 = vdwg.mxu0
    %2520 = vmatpush.bf16.msra.mxu0 %v1790
    %2521 = vmatpush.bf16.msra.mxu0 %v1784
    %2522 = vmatpush.bf16.msra.mxu0 %v1778
    %2523 = vmatpush.bf16.msra.mxu0 %v1772
    %2524 = vmatpush.bf16.msra.mxu0 %v1766
    %2525 = vmatpush.bf16.msra.mxu0 %v1760
    %2526 = vmatpush.bf16.msra.mxu0 %v1754
    %2527 = vmatpush.bf16.msra.mxu0 %v1748
    %2528 = vmatmul.bf16.gmra.mxu0 %v680
    %v2529 = vpop.f32.mrf.mxu0
    %v2530 = vadd.f32 %v2516, %v2529
    %v2531 = vpop.f32.mrf.mxu0
    %v2532 = vadd.f32 %v2518, %v2531
    %2533 = vdwg.mxu0
    %2534 = vmatpush.bf16.msra.mxu0 %v1838
    %2535 = vmatpush.bf16.msra.mxu0 %v1832
    %2536 = vmatpush.bf16.msra.mxu0 %v1826
    %2537 = vmatpush.bf16.msra.mxu0 %v1820
    %2538 = vmatpush.bf16.msra.mxu0 %v1814
    %2539 = vmatpush.bf16.msra.mxu0 %v1808
    %2540 = vmatpush.bf16.msra.mxu0 %v1802
    %2541 = vmatpush.bf16.msra.mxu0 %v1796
    %2542 = vmatmul.bf16.gmra.mxu0 %v681
    %v2543 = vpop.f32.mrf.mxu0
    %v2544 = vadd.f32 %v2530, %v2543
    %v2545 = vpop.f32.mrf.mxu0
    %v2546 = vadd.f32 %v2532, %v2545
    %2547 = vdwg.mxu0
    %2548 = vmatpush.bf16.msra.mxu0 %v1599
    %2549 = vmatpush.bf16.msra.mxu0 %v1593
    %2550 = vmatpush.bf16.msra.mxu0 %v1587
    %2551 = vmatpush.bf16.msra.mxu0 %v1581
    %2552 = vmatpush.bf16.msra.mxu0 %v1575
    %2553 = vmatpush.bf16.msra.mxu0 %v1569
    %2554 = vmatpush.bf16.msra.mxu0 %v1563
    %2555 = vmatpush.bf16.msra.mxu0 %v1557
    %2556 = vmatmul.bf16.gmra.mxu0 %v676
    %v2557 = vpop.f32.mrf.mxu0
    %v2558 = vadd.f32 0.0, %v2557
    %v2559 = vpop.f32.mrf.mxu0
    %v2560 = vadd.f32 0.0, %v2559
    %2561 = vdwg.mxu0
    %2562 = vmatpush.bf16.msra.mxu0 %v1647
    %2563 = vmatpush.bf16.msra.mxu0 %v1641
    %2564 = vmatpush.bf16.msra.mxu0 %v1635
    %2565 = vmatpush.bf16.msra.mxu0 %v1629
    %2566 = vmatpush.bf16.msra.mxu0 %v1623
    %2567 = vmatpush.bf16.msra.mxu0 %v1617
    %2568 = vmatpush.bf16.msra.mxu0 %v1611
    %2569 = vmatpush.bf16.msra.mxu0 %v1605
    %2570 = vmatmul.bf16.gmra.mxu0 %v677
    %v2571 = vpop.f32.mrf.mxu0
    %v2572 = vadd.f32 %v2558, %v2571
    %v2573 = vpop.f32.mrf.mxu0
    %v2574 = vadd.f32 %v2560, %v2573
    %2575 = vdwg.mxu0
    %2576 = vmatpush.bf16.msra.mxu0 %v1695
    %2577 = vmatpush.bf16.msra.mxu0 %v1689
    %2578 = vmatpush.bf16.msra.mxu0 %v1683
    %2579 = vmatpush.bf16.msra.mxu0 %v1677
    %2580 = vmatpush.bf16.msra.mxu0 %v1671
    %2581 = vmatpush.bf16.msra.mxu0 %v1665
    %2582 = vmatpush.bf16.msra.mxu0 %v1659
    %2583 = vmatpush.bf16.msra.mxu0 %v1653
    %2584 = vmatmul.bf16.gmra.mxu0 %v678
    %v2585 = vpop.f32.mrf.mxu0
    %v2586 = vadd.f32 %v2572, %v2585
    %v2587 = vpop.f32.mrf.mxu0
    %v2588 = vadd.f32 %v2574, %v2587
    %2589 = vdwg.mxu0
    %2590 = vmatpush.bf16.msra.mxu0 %v1743
    %2591 = vmatpush.bf16.msra.mxu0 %v1737
    %2592 = vmatpush.bf16.msra.mxu0 %v1731
    %2593 = vmatpush.bf16.msra.mxu0 %v1725
    %2594 = vmatpush.bf16.msra.mxu0 %v1719
    %2595 = vmatpush.bf16.msra.mxu0 %v1713
    %2596 = vmatpush.bf16.msra.mxu0 %v1707
    %2597 = vmatpush.bf16.msra.mxu0 %v1701
    %2598 = vmatmul.bf16.gmra.mxu0 %v679
    %v2599 = vpop.f32.mrf.mxu0
    %v2600 = vadd.f32 %v2586, %v2599
    %v2601 = vpop.f32.mrf.mxu0
    %v2602 = vadd.f32 %v2588, %v2601
    %2603 = vdwg.mxu0
    %2604 = vmatpush.bf16.msra.mxu0 %v1791
    %2605 = vmatpush.bf16.msra.mxu0 %v1785
    %2606 = vmatpush.bf16.msra.mxu0 %v1779
    %2607 = vmatpush.bf16.msra.mxu0 %v1773
    %2608 = vmatpush.bf16.msra.mxu0 %v1767
    %2609 = vmatpush.bf16.msra.mxu0 %v1761
    %2610 = vmatpush.bf16.msra.mxu0 %v1755
    %2611 = vmatpush.bf16.msra.mxu0 %v1749
    %2612 = vmatmul.bf16.gmra.mxu0 %v680
    %v2613 = vpop.f32.mrf.mxu0
    %v2614 = vadd.f32 %v2600, %v2613
    %v2615 = vpop.f32.mrf.mxu0
    %v2616 = vadd.f32 %v2602, %v2615
    %2617 = vdwg.mxu0
    %2618 = vmatpush.bf16.msra.mxu0 %v1839
    %2619 = vmatpush.bf16.msra.mxu0 %v1833
    %2620 = vmatpush.bf16.msra.mxu0 %v1827
    %2621 = vmatpush.bf16.msra.mxu0 %v1821
    %2622 = vmatpush.bf16.msra.mxu0 %v1815
    %2623 = vmatpush.bf16.msra.mxu0 %v1809
    %2624 = vmatpush.bf16.msra.mxu0 %v1803
    %2625 = vmatpush.bf16.msra.mxu0 %v1797
    %2626 = vmatmul.bf16.gmra.mxu0 %v681
    %v2627 = vpop.f32.mrf.mxu0
    %v2628 = vadd.f32 %v2614, %v2627
    %v2629 = vpop.f32.mrf.mxu0
    %v2630 = vadd.f32 %v2616, %v2629
    %2631 = vdwg.mxu0
    %v2632 = vtanh.pop %v2208
    %v2633 = vtanh.pop %v2292
    %v2634 = vtanh.pop %v2376
    %v2635 = vtanh.pop %v2460
    %v2636 = vtanh.pop %v2544
    %v2637 = vtanh.pop %v2628
    %v2638 = vtanh.pop %v2210
    %v2639 = vtanh.pop %v2294
    %v2640 = vtanh.pop %v2378
    %v2641 = vtanh.pop %v2462
    %v2642 = vtanh.pop %v2546
    %v2643 = vtanh.pop %v2630
    %v2644 = vpack.c.bf16 %v2638, %v2632
    %v2645 = vpack.c.bf16 %v2639, %v2633
    %v2646 = vpack.c.bf16 %v2640, %v2634
    %v2647 = vpack.c.bf16 %v2641, %v2635
    %v2648 = vpack.c.bf16 %v2642, %v2636
    %v2649 = vpack.c.bf16 %v2643, %v2637
    %v2650 = vld [vmem:[#allocation6] sm:$0xff]
    %v2651 = vld [vmem:[#allocation6 + $0x8] sm:$0xff]
    %v2652 = vld [vmem:[#allocation6 + $0x10] sm:$0xff]
    %v2653 = vld [vmem:[#allocation6 + $0x18] sm:$0xff]
    %v2654 = vld [vmem:[#allocation6 + $0x20] sm:$0xff]
    %v2655 = vld [vmem:[#allocation6 + $0x28] sm:$0xff]
    %v2656 = vld [vmem:[#allocation6 + $0x30] sm:$0xff]
    %v2657 = vld [vmem:[#allocation6 + $0x38] sm:$0xff]
    %v2658 = vld [vmem:[#allocation6 + $0x40] sm:$0xff]
    %v2659 = vld [vmem:[#allocation6 + $0x48] sm:$0xff]
    %v2660 = vld [vmem:[#allocation6 + $0x50] sm:$0xff]
    %v2661 = vld [vmem:[#allocation6 + $0x58] sm:$0xff]
    %v2662 = vld [vmem:[#allocation6 + $0x60] sm:$0xff]
    %v2663 = vld [vmem:[#allocation6 + $0x68] sm:$0xff]
    %v2664 = vld [vmem:[#allocation6 + $0x70] sm:$0xff]
    %v2665 = vld [vmem:[#allocation6 + $0x78] sm:$0xff]
    %v2666 = vld [vmem:[#allocation6 + $0x80] sm:$0xff]
    %v2667 = vld [vmem:[#allocation6 + $0x88] sm:$0xff]
    %v2668 = vld [vmem:[#allocation6 + $0x90] sm:$0xff]
    %v2669 = vld [vmem:[#allocation6 + $0x98] sm:$0xff]
    %v2670 = vld [vmem:[#allocation6 + $0xa0] sm:$0xff]
    %v2671 = vld [vmem:[#allocation6 + $0xa8] sm:$0xff]
    %v2672 = vld [vmem:[#allocation6 + $0xb0] sm:$0xff]
    %v2673 = vld [vmem:[#allocation6 + $0xb8] sm:$0xff]
    %v2674 = vld [vmem:[#allocation6 + $0xc0] sm:$0xff]
    %v2675 = vld [vmem:[#allocation6 + $0xc8] sm:$0xff]
    %v2676 = vld [vmem:[#allocation6 + $0xd0] sm:$0xff]
    %v2677 = vld [vmem:[#allocation6 + $0xd8] sm:$0xff]
    %v2678 = vld [vmem:[#allocation6 + $0xe0] sm:$0xff]
    %v2679 = vld [vmem:[#allocation6 + $0xe8] sm:$0xff]
    %v2680 = vld [vmem:[#allocation6 + $0xf0] sm:$0xff]
    %v2681 = vld [vmem:[#allocation6 + $0xf8] sm:$0xff]
    %v2682 = vld [vmem:[#allocation6 + $0x100] sm:$0xff]
    %v2683 = vld [vmem:[#allocation6 + $0x108] sm:$0xff]
    %v2684 = vld [vmem:[#allocation6 + $0x110] sm:$0xff]
    %v2685 = vld [vmem:[#allocation6 + $0x118] sm:$0xff]
    %v2686 = vld [vmem:[#allocation6 + $0x120] sm:$0xff]
    %v2687 = vld [vmem:[#allocation6 + $0x128] sm:$0xff]
    %v2688 = vld [vmem:[#allocation6 + $0x130] sm:$0xff]
    %v2689 = vld [vmem:[#allocation6 + $0x138] sm:$0xff]
    %v2690 = vld [vmem:[#allocation6 + $0x140] sm:$0xff]
    %v2691 = vld [vmem:[#allocation6 + $0x148] sm:$0xff]
    %v2692 = vld [vmem:[#allocation6 + $0x150] sm:$0xff]
    %v2693 = vld [vmem:[#allocation6 + $0x158] sm:$0xff]
    %v2694 = vld [vmem:[#allocation6 + $0x160] sm:$0xff]
    %v2695 = vld [vmem:[#allocation6 + $0x168] sm:$0xff]
    %v2696 = vld [vmem:[#allocation6 + $0x170] sm:$0xff]
    %v2697 = vld [vmem:[#allocation6 + $0x178] sm:$0xff]
    %v2698 = vld [vmem:[#allocation6 + $0x180] sm:$0xff]
    %v2699 = vld [vmem:[#allocation6 + $0x188] sm:$0xff]
    %v2700 = vld [vmem:[#allocation6 + $0x190] sm:$0xff]
    %v2701 = vld [vmem:[#allocation6 + $0x198] sm:$0xff]
    %v2702 = vld [vmem:[#allocation6 + $0x1a0] sm:$0xff]
    %v2703 = vld [vmem:[#allocation6 + $0x1a8] sm:$0xff]
    %v2704 = vld [vmem:[#allocation6 + $0x1b0] sm:$0xff]
    %v2705 = vld [vmem:[#allocation6 + $0x1b8] sm:$0xff]
    %v2706 = vld [vmem:[#allocation6 + $0x1c0] sm:$0xff]
    %v2707 = vld [vmem:[#allocation6 + $0x1c8] sm:$0xff]
    %v2708 = vld [vmem:[#allocation6 + $0x1d0] sm:$0xff]
    %v2709 = vld [vmem:[#allocation6 + $0x1d8] sm:$0xff]
    %v2710 = vld [vmem:[#allocation6 + $0x1e0] sm:$0xff]
    %v2711 = vld [vmem:[#allocation6 + $0x1e8] sm:$0xff]
    %v2712 = vld [vmem:[#allocation6 + $0x1f0] sm:$0xff]
    %v2713 = vld [vmem:[#allocation6 + $0x1f8] sm:$0xff]
    %v2714 = vld [vmem:[#allocation7] sm:$0x3]
    %v2716 = vperm.slane %v2714, 0
    %v2717 = vperm.slane %v2714, 1
    %v2784 = vunpack.c.l.b16 %v2650
    %v2785 = vunpack.c.h.b16 %v2650
    %v2786 = vunpack.c.l.b16 %v2651
    %v2787 = vunpack.c.h.b16 %v2651
    %v2788 = vunpack.c.l.b16 %v2652
    %v2789 = vunpack.c.h.b16 %v2652
    %v2790 = vunpack.c.l.b16 %v2653
    %v2791 = vunpack.c.h.b16 %v2653
    %v2792 = vunpack.c.l.b16 %v2654
    %v2793 = vunpack.c.h.b16 %v2654
    %v2794 = vunpack.c.l.b16 %v2655
    %v2795 = vunpack.c.h.b16 %v2655
    %v2796 = vunpack.c.l.b16 %v2656
    %v2797 = vunpack.c.h.b16 %v2656
    %v2798 = vunpack.c.l.b16 %v2657
    %v2799 = vunpack.c.h.b16 %v2657
    %v2800 = vunpack.c.l.b16 %v2658
    %v2801 = vunpack.c.h.b16 %v2658
    %v2802 = vunpack.c.l.b16 %v2659
    %v2803 = vunpack.c.h.b16 %v2659
    %v2804 = vunpack.c.l.b16 %v2660
    %v2805 = vunpack.c.h.b16 %v2660
    %v2806 = vunpack.c.l.b16 %v2661
    %v2807 = vunpack.c.h.b16 %v2661
    %v2808 = vunpack.c.l.b16 %v2662
    %v2809 = vunpack.c.h.b16 %v2662
    %v2810 = vunpack.c.l.b16 %v2663
    %v2811 = vunpack.c.h.b16 %v2663
    %v2812 = vunpack.c.l.b16 %v2664
    %v2813 = vunpack.c.h.b16 %v2664
    %v2814 = vunpack.c.l.b16 %v2665
    %v2815 = vunpack.c.h.b16 %v2665
    %v2816 = vunpack.c.l.b16 %v2666
    %v2817 = vunpack.c.h.b16 %v2666
    %v2818 = vunpack.c.l.b16 %v2667
    %v2819 = vunpack.c.h.b16 %v2667
    %v2820 = vunpack.c.l.b16 %v2668
    %v2821 = vunpack.c.h.b16 %v2668
    %v2822 = vunpack.c.l.b16 %v2669
    %v2823 = vunpack.c.h.b16 %v2669
    %v2824 = vunpack.c.l.b16 %v2670
    %v2825 = vunpack.c.h.b16 %v2670
    %v2826 = vunpack.c.l.b16 %v2671
    %v2827 = vunpack.c.h.b16 %v2671
    %v2828 = vunpack.c.l.b16 %v2672
    %v2829 = vunpack.c.h.b16 %v2672
    %v2830 = vunpack.c.l.b16 %v2673
    %v2831 = vunpack.c.h.b16 %v2673
    %v2832 = vunpack.c.l.b16 %v2674
    %v2833 = vunpack.c.h.b16 %v2674
    %v2834 = vunpack.c.l.b16 %v2675
    %v2835 = vunpack.c.h.b16 %v2675
    %v2836 = vunpack.c.l.b16 %v2676
    %v2837 = vunpack.c.h.b16 %v2676
    %v2838 = vunpack.c.l.b16 %v2677
    %v2839 = vunpack.c.h.b16 %v2677
    %v2840 = vunpack.c.l.b16 %v2678
    %v2841 = vunpack.c.h.b16 %v2678
    %v2842 = vunpack.c.l.b16 %v2679
    %v2843 = vunpack.c.h.b16 %v2679
    %v2844 = vunpack.c.l.b16 %v2680
    %v2845 = vunpack.c.h.b16 %v2680
    %v2846 = vunpack.c.l.b16 %v2681
    %v2847 = vunpack.c.h.b16 %v2681
    %v2848 = vunpack.c.l.b16 %v2682
    %v2849 = vunpack.c.h.b16 %v2682
    %v2850 = vunpack.c.l.b16 %v2683
    %v2851 = vunpack.c.h.b16 %v2683
    %v2852 = vunpack.c.l.b16 %v2684
    %v2853 = vunpack.c.h.b16 %v2684
    %v2854 = vunpack.c.l.b16 %v2685
    %v2855 = vunpack.c.h.b16 %v2685
    %v2856 = vunpack.c.l.b16 %v2686
    %v2857 = vunpack.c.h.b16 %v2686
    %v2858 = vunpack.c.l.b16 %v2687
    %v2859 = vunpack.c.h.b16 %v2687
    %v2860 = vunpack.c.l.b16 %v2688
    %v2861 = vunpack.c.h.b16 %v2688
    %v2862 = vunpack.c.l.b16 %v2689
    %v2863 = vunpack.c.h.b16 %v2689
    %v2864 = vunpack.c.l.b16 %v2690
    %v2865 = vunpack.c.h.b16 %v2690
    %v2866 = vunpack.c.l.b16 %v2691
    %v2867 = vunpack.c.h.b16 %v2691
    %v2868 = vunpack.c.l.b16 %v2692
    %v2869 = vunpack.c.h.b16 %v2692
    %v2870 = vunpack.c.l.b16 %v2693
    %v2871 = vunpack.c.h.b16 %v2693
    %v2872 = vunpack.c.l.b16 %v2694
    %v2873 = vunpack.c.h.b16 %v2694
    %v2874 = vunpack.c.l.b16 %v2695
    %v2875 = vunpack.c.h.b16 %v2695
    %v2876 = vunpack.c.l.b16 %v2696
    %v2877 = vunpack.c.h.b16 %v2696
    %v2878 = vunpack.c.l.b16 %v2697
    %v2879 = vunpack.c.h.b16 %v2697
    %v2880 = vunpack.c.l.b16 %v2698
    %v2881 = vunpack.c.h.b16 %v2698
    %v2882 = vunpack.c.l.b16 %v2699
    %v2883 = vunpack.c.h.b16 %v2699
    %v2884 = vunpack.c.l.b16 %v2700
    %v2885 = vunpack.c.h.b16 %v2700
    %v2886 = vunpack.c.l.b16 %v2701
    %v2887 = vunpack.c.h.b16 %v2701
    %v2888 = vunpack.c.l.b16 %v2702
    %v2889 = vunpack.c.h.b16 %v2702
    %v2890 = vunpack.c.l.b16 %v2703
    %v2891 = vunpack.c.h.b16 %v2703
    %v2892 = vunpack.c.l.b16 %v2704
    %v2893 = vunpack.c.h.b16 %v2704
    %v2894 = vunpack.c.l.b16 %v2705
    %v2895 = vunpack.c.h.b16 %v2705
    %v2896 = vunpack.c.l.b16 %v2706
    %v2897 = vunpack.c.h.b16 %v2706
    %v2898 = vunpack.c.l.b16 %v2707
    %v2899 = vunpack.c.h.b16 %v2707
    %v2900 = vunpack.c.l.b16 %v2708
    %v2901 = vunpack.c.h.b16 %v2708
    %v2902 = vunpack.c.l.b16 %v2709
    %v2903 = vunpack.c.h.b16 %v2709
    %v2904 = vunpack.c.l.b16 %v2710
    %v2905 = vunpack.c.h.b16 %v2710
    %v2906 = vunpack.c.l.b16 %v2711
    %v2907 = vunpack.c.h.b16 %v2711
    %v2908 = vunpack.c.l.b16 %v2712
    %v2909 = vunpack.c.h.b16 %v2712
    %v2910 = vunpack.c.l.b16 %v2713
    %v2911 = vunpack.c.h.b16 %v2713
    %v2912 = vpack.c.b16 %v2786, %v2784
    %v2913 = vpack.c.b16 %v2787, %v2785
    %v2914 = vpack.c.b16 %v2790, %v2788
    %v2915 = vpack.c.b16 %v2791, %v2789
    %v2916 = vpack.c.b16 %v2794, %v2792
    %v2917 = vpack.c.b16 %v2795, %v2793
    %v2918 = vpack.c.b16 %v2798, %v2796
    %v2919 = vpack.c.b16 %v2799, %v2797
    %v2920 = vpack.c.b16 %v2802, %v2800
    %v2921 = vpack.c.b16 %v2803, %v2801
    %v2922 = vpack.c.b16 %v2806, %v2804
    %v2923 = vpack.c.b16 %v2807, %v2805
    %v2924 = vpack.c.b16 %v2810, %v2808
    %v2925 = vpack.c.b16 %v2811, %v2809
    %v2926 = vpack.c.b16 %v2814, %v2812
    %v2927 = vpack.c.b16 %v2815, %v2813
    %v2928 = vpack.c.b16 %v2818, %v2816
    %v2929 = vpack.c.b16 %v2819, %v2817
    %v2930 = vpack.c.b16 %v2822, %v2820
    %v2931 = vpack.c.b16 %v2823, %v2821
    %v2932 = vpack.c.b16 %v2826, %v2824
    %v2933 = vpack.c.b16 %v2827, %v2825
    %v2934 = vpack.c.b16 %v2830, %v2828
    %v2935 = vpack.c.b16 %v2831, %v2829
    %v2936 = vpack.c.b16 %v2834, %v2832
    %v2937 = vpack.c.b16 %v2835, %v2833
    %v2938 = vpack.c.b16 %v2838, %v2836
    %v2939 = vpack.c.b16 %v2839, %v2837
    %v2940 = vpack.c.b16 %v2842, %v2840
    %v2941 = vpack.c.b16 %v2843, %v2841
    %v2942 = vpack.c.b16 %v2846, %v2844
    %v2943 = vpack.c.b16 %v2847, %v2845
    %v2944 = vpack.c.b16 %v2850, %v2848
    %v2945 = vpack.c.b16 %v2851, %v2849
    %v2946 = vpack.c.b16 %v2854, %v2852
    %v2947 = vpack.c.b16 %v2855, %v2853
    %v2948 = vpack.c.b16 %v2858, %v2856
    %v2949 = vpack.c.b16 %v2859, %v2857
    %v2950 = vpack.c.b16 %v2862, %v2860
    %v2951 = vpack.c.b16 %v2863, %v2861
    %v2952 = vpack.c.b16 %v2866, %v2864
    %v2953 = vpack.c.b16 %v2867, %v2865
    %v2954 = vpack.c.b16 %v2870, %v2868
    %v2955 = vpack.c.b16 %v2871, %v2869
    %v2956 = vpack.c.b16 %v2874, %v2872
    %v2957 = vpack.c.b16 %v2875, %v2873
    %v2958 = vpack.c.b16 %v2878, %v2876
    %v2959 = vpack.c.b16 %v2879, %v2877
    %v2960 = vpack.c.b16 %v2882, %v2880
    %v2961 = vpack.c.b16 %v2883, %v2881
    %v2962 = vpack.c.b16 %v2886, %v2884
    %v2963 = vpack.c.b16 %v2887, %v2885
    %v2964 = vpack.c.b16 %v2890, %v2888
    %v2965 = vpack.c.b16 %v2891, %v2889
    %v2966 = vpack.c.b16 %v2894, %v2892
    %v2967 = vpack.c.b16 %v2895, %v2893
    %v2968 = vpack.c.b16 %v2898, %v2896
    %v2969 = vpack.c.b16 %v2899, %v2897
    %v2970 = vpack.c.b16 %v2902, %v2900
    %v2971 = vpack.c.b16 %v2903, %v2901
    %v2972 = vpack.c.b16 %v2906, %v2904
    %v2973 = vpack.c.b16 %v2907, %v2905
    %v2974 = vpack.c.b16 %v2910, %v2908
    %v2975 = vpack.c.b16 %v2911, %v2909
    %3040 = vmatpush.bf16.msra.mxu0 %v2926
    %3041 = vmatpush.bf16.msra.mxu0 %v2924
    %3042 = vmatpush.bf16.msra.mxu0 %v2922
    %3043 = vmatpush.bf16.msra.mxu0 %v2920
    %3044 = vmatpush.bf16.msra.mxu0 %v2918
    %3045 = vmatpush.bf16.msra.mxu0 %v2916
    %3046 = vmatpush.bf16.msra.mxu0 %v2914
    %3047 = vmatpush.bf16.msra.mxu0 %v2912
    %3048 = vmatmul.bf16.gmra.mxu0 %v360
    %v3049 = vpop.f32.mrf.mxu0
    %v3050 = vadd.f32 %v2716, %v3049
    %v3051 = vpop.f32.mrf.mxu0
    %v3052 = vadd.f32 %v2716, %v3051
    %3053 = vdwg.mxu0
    %3054 = vmatpush.bf16.msra.mxu0 %v2942
    %3055 = vmatpush.bf16.msra.mxu0 %v2940
    %3056 = vmatpush.bf16.msra.mxu0 %v2938
    %3057 = vmatpush.bf16.msra.mxu0 %v2936
    %3058 = vmatpush.bf16.msra.mxu0 %v2934
    %3059 = vmatpush.bf16.msra.mxu0 %v2932
    %3060 = vmatpush.bf16.msra.mxu0 %v2930
    %3061 = vmatpush.bf16.msra.mxu0 %v2928
    %3062 = vmatmul.bf16.gmra.mxu0 %v361
    %v3063 = vpop.f32.mrf.mxu0
    %v3064 = vadd.f32 %v3050, %v3063
    %v3065 = vpop.f32.mrf.mxu0
    %v3066 = vadd.f32 %v3052, %v3065
    %3067 = vdwg.mxu0
    %3068 = vmatpush.bf16.msra.mxu0 %v2958
    %3069 = vmatpush.bf16.msra.mxu0 %v2956
    %3070 = vmatpush.bf16.msra.mxu0 %v2954
    %3071 = vmatpush.bf16.msra.mxu0 %v2952
    %3072 = vmatpush.bf16.msra.mxu0 %v2950
    %3073 = vmatpush.bf16.msra.mxu0 %v2948
    %3074 = vmatpush.bf16.msra.mxu0 %v2946
    %3075 = vmatpush.bf16.msra.mxu0 %v2944
    %3076 = vmatmul.bf16.gmra.mxu0 %v362
    %v3077 = vpop.f32.mrf.mxu0
    %v3078 = vadd.f32 %v3064, %v3077
    %v3079 = vpop.f32.mrf.mxu0
    %v3080 = vadd.f32 %v3066, %v3079
    %3081 = vdwg.mxu0
    %3082 = vmatpush.bf16.msra.mxu0 %v2974
    %3083 = vmatpush.bf16.msra.mxu0 %v2972
    %3084 = vmatpush.bf16.msra.mxu0 %v2970
    %3085 = vmatpush.bf16.msra.mxu0 %v2968
    %3086 = vmatpush.bf16.msra.mxu0 %v2966
    %3087 = vmatpush.bf16.msra.mxu0 %v2964
    %3088 = vmatpush.bf16.msra.mxu0 %v2962
    %3089 = vmatpush.bf16.msra.mxu0 %v2960
    %3090 = vmatmul.bf16.gmra.mxu0 %v363
    %v3091 = vpop.f32.mrf.mxu0
    %v3092 = vadd.f32 %v3078, %v3091
    %v3093 = vpop.f32.mrf.mxu0
    %v3094 = vadd.f32 %v3080, %v3093
    %3095 = vdwg.mxu0
    %3096 = vmatpush.bf16.msra.mxu0 %v2927
    %3097 = vmatpush.bf16.msra.mxu0 %v2925
    %3098 = vmatpush.bf16.msra.mxu0 %v2923
    %3099 = vmatpush.bf16.msra.mxu0 %v2921
    %3100 = vmatpush.bf16.msra.mxu0 %v2919
    %3101 = vmatpush.bf16.msra.mxu0 %v2917
    %3102 = vmatpush.bf16.msra.mxu0 %v2915
    %3103 = vmatpush.bf16.msra.mxu0 %v2913
    %3104 = vmatmul.bf16.gmra.mxu0 %v360
    %v3105 = vpop.f32.mrf.mxu0
    %v3106 = vadd.f32 %v2717, %v3105
    %v3107 = vpop.f32.mrf.mxu0
    %v3108 = vadd.f32 %v2717, %v3107
    %3109 = vdwg.mxu0
    %3110 = vmatpush.bf16.msra.mxu0 %v2943
    %3111 = vmatpush.bf16.msra.mxu0 %v2941
    %3112 = vmatpush.bf16.msra.mxu0 %v2939
    %3113 = vmatpush.bf16.msra.mxu0 %v2937
    %3114 = vmatpush.bf16.msra.mxu0 %v2935
    %3115 = vmatpush.bf16.msra.mxu0 %v2933
    %3116 = vmatpush.bf16.msra.mxu0 %v2931
    %3117 = vmatpush.bf16.msra.mxu0 %v2929
    %3118 = vmatmul.bf16.gmra.mxu0 %v361
    %v3119 = vpop.f32.mrf.mxu0
    %v3120 = vadd.f32 %v3106, %v3119
    %v3121 = vpop.f32.mrf.mxu0
    %v3122 = vadd.f32 %v3108, %v3121
    %3123 = vdwg.mxu0
    %3124 = vmatpush.bf16.msra.mxu0 %v2959
    %3125 = vmatpush.bf16.msra.mxu0 %v2957
    %3126 = vmatpush.bf16.msra.mxu0 %v2955
    %3127 = vmatpush.bf16.msra.mxu0 %v2953
    %3128 = vmatpush.bf16.msra.mxu0 %v2951
    %3129 = vmatpush.bf16.msra.mxu0 %v2949
    %3130 = vmatpush.bf16.msra.mxu0 %v2947
    %3131 = vmatpush.bf16.msra.mxu0 %v2945
    %3132 = vmatmul.bf16.gmra.mxu0 %v362
    %v3133 = vpop.f32.mrf.mxu0
    %v3134 = vadd.f32 %v3120, %v3133
    %v3135 = vpop.f32.mrf.mxu0
    %v3136 = vadd.f32 %v3122, %v3135
    %3137 = vdwg.mxu0
    %3138 = vmatpush.bf16.msra.mxu0 %v2975
    %3139 = vmatpush.bf16.msra.mxu0 %v2973
    %3140 = vmatpush.bf16.msra.mxu0 %v2971
    %3141 = vmatpush.bf16.msra.mxu0 %v2969
    %3142 = vmatpush.bf16.msra.mxu0 %v2967
    %3143 = vmatpush.bf16.msra.mxu0 %v2965
    %3144 = vmatpush.bf16.msra.mxu0 %v2963
    %3145 = vmatpush.bf16.msra.mxu0 %v2961
    %3146 = vmatmul.bf16.gmra.mxu0 %v363
    %v3147 = vpop.f32.mrf.mxu0
    %v3148 = vadd.f32 %v3134, %v3147
    %v3149 = vpop.f32.mrf.mxu0
    %v3150 = vadd.f32 %v3136, %v3149
    %3151 = vdwg.mxu0
    %v3152 = vld [vmem:[#allocation9] sm:$0xff]
    %v3153 = vld [vmem:[#allocation9 + $0x8] sm:$0xff]
    %v3154 = vld [vmem:[#allocation9 + $0x10] sm:$0xff]
    %v3155 = vld [vmem:[#allocation9 + $0x18] sm:$0xff]
    %v3156 = vld [vmem:[#allocation9 + $0x20] sm:$0xff]
    %v3157 = vld [vmem:[#allocation9 + $0x28] sm:$0xff]
    %v3158 = vld [vmem:[#allocation9 + $0x30] sm:$0xff]
    %v3159 = vld [vmem:[#allocation9 + $0x38] sm:$0xff]
    %v3160 = vld [vmem:[#allocation9 + $0x40] sm:$0xff]
    %v3161 = vld [vmem:[#allocation9 + $0x48] sm:$0xff]
    %v3162 = vld [vmem:[#allocation9 + $0x50] sm:$0xff]
    %v3163 = vld [vmem:[#allocation9 + $0x58] sm:$0xff]
    %v3164 = vld [vmem:[#allocation9 + $0x60] sm:$0xff]
    %v3165 = vld [vmem:[#allocation9 + $0x68] sm:$0xff]
    %v3166 = vld [vmem:[#allocation9 + $0x70] sm:$0xff]
    %v3167 = vld [vmem:[#allocation9 + $0x78] sm:$0xff]
    %v3168 = vld [vmem:[#allocation9 + $0x80] sm:$0xff]
    %v3169 = vld [vmem:[#allocation9 + $0x88] sm:$0xff]
    %v3170 = vld [vmem:[#allocation9 + $0x90] sm:$0xff]
    %v3171 = vld [vmem:[#allocation9 + $0x98] sm:$0xff]
    %v3172 = vld [vmem:[#allocation9 + $0xa0] sm:$0xff]
    %v3173 = vld [vmem:[#allocation9 + $0xa8] sm:$0xff]
    %v3174 = vld [vmem:[#allocation9 + $0xb0] sm:$0xff]
    %v3175 = vld [vmem:[#allocation9 + $0xb8] sm:$0xff]
    %v3176 = vld [vmem:[#allocation9 + $0xc0] sm:$0xff]
    %v3177 = vld [vmem:[#allocation9 + $0xc8] sm:$0xff]
    %v3178 = vld [vmem:[#allocation9 + $0xd0] sm:$0xff]
    %v3179 = vld [vmem:[#allocation9 + $0xd8] sm:$0xff]
    %v3180 = vld [vmem:[#allocation9 + $0xe0] sm:$0xff]
    %v3181 = vld [vmem:[#allocation9 + $0xe8] sm:$0xff]
    %v3182 = vld [vmem:[#allocation9 + $0xf0] sm:$0xff]
    %v3183 = vld [vmem:[#allocation9 + $0xf8] sm:$0xff]
    %v3184 = vld [vmem:[#allocation9 + $0x100] sm:$0xff]
    %v3185 = vld [vmem:[#allocation9 + $0x108] sm:$0xff]
    %v3186 = vld [vmem:[#allocation9 + $0x110] sm:$0xff]
    %v3187 = vld [vmem:[#allocation9 + $0x118] sm:$0xff]
    %v3188 = vld [vmem:[#allocation9 + $0x120] sm:$0xff]
    %v3189 = vld [vmem:[#allocation9 + $0x128] sm:$0xff]
    %v3190 = vld [vmem:[#allocation9 + $0x130] sm:$0xff]
    %v3191 = vld [vmem:[#allocation9 + $0x138] sm:$0xff]
    %v3192 = vld [vmem:[#allocation9 + $0x140] sm:$0xff]
    %v3193 = vld [vmem:[#allocation9 + $0x148] sm:$0xff]
    %v3194 = vld [vmem:[#allocation9 + $0x150] sm:$0xff]
    %v3195 = vld [vmem:[#allocation9 + $0x158] sm:$0xff]
    %v3196 = vld [vmem:[#allocation9 + $0x160] sm:$0xff]
    %v3197 = vld [vmem:[#allocation9 + $0x168] sm:$0xff]
    %v3198 = vld [vmem:[#allocation9 + $0x170] sm:$0xff]
    %v3199 = vld [vmem:[#allocation9 + $0x178] sm:$0xff]
    %v3200 = vld [vmem:[#allocation9 + $0x180] sm:$0xff]
    %v3201 = vld [vmem:[#allocation9 + $0x188] sm:$0xff]
    %v3202 = vld [vmem:[#allocation9 + $0x190] sm:$0xff]
    %v3203 = vld [vmem:[#allocation9 + $0x198] sm:$0xff]
    %v3204 = vld [vmem:[#allocation9 + $0x1a0] sm:$0xff]
    %v3205 = vld [vmem:[#allocation9 + $0x1a8] sm:$0xff]
    %v3206 = vld [vmem:[#allocation9 + $0x1b0] sm:$0xff]
    %v3207 = vld [vmem:[#allocation9 + $0x1b8] sm:$0xff]
    %v3208 = vld [vmem:[#allocation9 + $0x1c0] sm:$0xff]
    %v3209 = vld [vmem:[#allocation9 + $0x1c8] sm:$0xff]
    %v3210 = vld [vmem:[#allocation9 + $0x1d0] sm:$0xff]
    %v3211 = vld [vmem:[#allocation9 + $0x1d8] sm:$0xff]
    %v3212 = vld [vmem:[#allocation9 + $0x1e0] sm:$0xff]
    %v3213 = vld [vmem:[#allocation9 + $0x1e8] sm:$0xff]
    %v3214 = vld [vmem:[#allocation9 + $0x1f0] sm:$0xff]
    %v3215 = vld [vmem:[#allocation9 + $0x1f8] sm:$0xff]
    %v3216 = vld [vmem:[#allocation9 + $0x200] sm:$0xff]
    %v3217 = vld [vmem:[#allocation9 + $0x208] sm:$0xff]
    %v3218 = vld [vmem:[#allocation9 + $0x210] sm:$0xff]
    %v3219 = vld [vmem:[#allocation9 + $0x218] sm:$0xff]
    %v3220 = vld [vmem:[#allocation9 + $0x220] sm:$0xff]
    %v3221 = vld [vmem:[#allocation9 + $0x228] sm:$0xff]
    %v3222 = vld [vmem:[#allocation9 + $0x230] sm:$0xff]
    %v3223 = vld [vmem:[#allocation9 + $0x238] sm:$0xff]
    %v3224 = vld [vmem:[#allocation9 + $0x240] sm:$0xff]
    %v3225 = vld [vmem:[#allocation9 + $0x248] sm:$0xff]
    %v3226 = vld [vmem:[#allocation9 + $0x250] sm:$0xff]
    %v3227 = vld [vmem:[#allocation9 + $0x258] sm:$0xff]
    %v3228 = vld [vmem:[#allocation9 + $0x260] sm:$0xff]
    %v3229 = vld [vmem:[#allocation9 + $0x268] sm:$0xff]
    %v3230 = vld [vmem:[#allocation9 + $0x270] sm:$0xff]
    %v3231 = vld [vmem:[#allocation9 + $0x278] sm:$0xff]
    %v3232 = vld [vmem:[#allocation9 + $0x280] sm:$0xff]
    %v3233 = vld [vmem:[#allocation9 + $0x288] sm:$0xff]
    %v3234 = vld [vmem:[#allocation9 + $0x290] sm:$0xff]
    %v3235 = vld [vmem:[#allocation9 + $0x298] sm:$0xff]
    %v3236 = vld [vmem:[#allocation9 + $0x2a0] sm:$0xff]
    %v3237 = vld [vmem:[#allocation9 + $0x2a8] sm:$0xff]
    %v3238 = vld [vmem:[#allocation9 + $0x2b0] sm:$0xff]
    %v3239 = vld [vmem:[#allocation9 + $0x2b8] sm:$0xff]
    %v3240 = vld [vmem:[#allocation9 + $0x2c0] sm:$0xff]
    %v3241 = vld [vmem:[#allocation9 + $0x2c8] sm:$0xff]
    %v3242 = vld [vmem:[#allocation9 + $0x2d0] sm:$0xff]
    %v3243 = vld [vmem:[#allocation9 + $0x2d8] sm:$0xff]
    %v3244 = vld [vmem:[#allocation9 + $0x2e0] sm:$0xff]
    %v3245 = vld [vmem:[#allocation9 + $0x2e8] sm:$0xff]
    %v3246 = vld [vmem:[#allocation9 + $0x2f0] sm:$0xff]
    %v3247 = vld [vmem:[#allocation9 + $0x2f8] sm:$0xff]
    %v3248 = vld [vmem:[#allocation10] sm:$0x3]
    %v3250 = vperm.slane %v3248, 0
    %v3251 = vperm.slane %v3248, 1
    %v3350 = vunpack.c.l.b16 %v3152
    %v3351 = vunpack.c.h.b16 %v3152
    %v3352 = vunpack.c.l.b16 %v3153
    %v3353 = vunpack.c.h.b16 %v3153
    %v3354 = vunpack.c.l.b16 %v3154
    %v3355 = vunpack.c.h.b16 %v3154
    %v3356 = vunpack.c.l.b16 %v3155
    %v3357 = vunpack.c.h.b16 %v3155
    %v3358 = vunpack.c.l.b16 %v3156
    %v3359 = vunpack.c.h.b16 %v3156
    %v3360 = vunpack.c.l.b16 %v3157
    %v3361 = vunpack.c.h.b16 %v3157
    %v3362 = vunpack.c.l.b16 %v3158
    %v3363 = vunpack.c.h.b16 %v3158
    %v3364 = vunpack.c.l.b16 %v3159
    %v3365 = vunpack.c.h.b16 %v3159
    %v3366 = vunpack.c.l.b16 %v3160
    %v3367 = vunpack.c.h.b16 %v3160
    %v3368 = vunpack.c.l.b16 %v3161
    %v3369 = vunpack.c.h.b16 %v3161
    %v3370 = vunpack.c.l.b16 %v3162
    %v3371 = vunpack.c.h.b16 %v3162
    %v3372 = vunpack.c.l.b16 %v3163
    %v3373 = vunpack.c.h.b16 %v3163
    %v3374 = vunpack.c.l.b16 %v3164
    %v3375 = vunpack.c.h.b16 %v3164
    %v3376 = vunpack.c.l.b16 %v3165
    %v3377 = vunpack.c.h.b16 %v3165
    %v3378 = vunpack.c.l.b16 %v3166
    %v3379 = vunpack.c.h.b16 %v3166
    %v3380 = vunpack.c.l.b16 %v3167
    %v3381 = vunpack.c.h.b16 %v3167
    %v3382 = vunpack.c.l.b16 %v3168
    %v3383 = vunpack.c.h.b16 %v3168
    %v3384 = vunpack.c.l.b16 %v3169
    %v3385 = vunpack.c.h.b16 %v3169
    %v3386 = vunpack.c.l.b16 %v3170
    %v3387 = vunpack.c.h.b16 %v3170
    %v3388 = vunpack.c.l.b16 %v3171
    %v3389 = vunpack.c.h.b16 %v3171
    %v3390 = vunpack.c.l.b16 %v3172
    %v3391 = vunpack.c.h.b16 %v3172
    %v3392 = vunpack.c.l.b16 %v3173
    %v3393 = vunpack.c.h.b16 %v3173
    %v3394 = vunpack.c.l.b16 %v3174
    %v3395 = vunpack.c.h.b16 %v3174
    %v3396 = vunpack.c.l.b16 %v3175
    %v3397 = vunpack.c.h.b16 %v3175
    %v3398 = vunpack.c.l.b16 %v3176
    %v3399 = vunpack.c.h.b16 %v3176
    %v3400 = vunpack.c.l.b16 %v3177
    %v3401 = vunpack.c.h.b16 %v3177
    %v3402 = vunpack.c.l.b16 %v3178
    %v3403 = vunpack.c.h.b16 %v3178
    %v3404 = vunpack.c.l.b16 %v3179
    %v3405 = vunpack.c.h.b16 %v3179
    %v3406 = vunpack.c.l.b16 %v3180
    %v3407 = vunpack.c.h.b16 %v3180
    %v3408 = vunpack.c.l.b16 %v3181
    %v3409 = vunpack.c.h.b16 %v3181
    %v3410 = vunpack.c.l.b16 %v3182
    %v3411 = vunpack.c.h.b16 %v3182
    %v3412 = vunpack.c.l.b16 %v3183
    %v3413 = vunpack.c.h.b16 %v3183
    %v3414 = vunpack.c.l.b16 %v3184
    %v3415 = vunpack.c.h.b16 %v3184
    %v3416 = vunpack.c.l.b16 %v3185
    %v3417 = vunpack.c.h.b16 %v3185
    %v3418 = vunpack.c.l.b16 %v3186
    %v3419 = vunpack.c.h.b16 %v3186
    %v3420 = vunpack.c.l.b16 %v3187
    %v3421 = vunpack.c.h.b16 %v3187
    %v3422 = vunpack.c.l.b16 %v3188
    %v3423 = vunpack.c.h.b16 %v3188
    %v3424 = vunpack.c.l.b16 %v3189
    %v3425 = vunpack.c.h.b16 %v3189
    %v3426 = vunpack.c.l.b16 %v3190
    %v3427 = vunpack.c.h.b16 %v3190
    %v3428 = vunpack.c.l.b16 %v3191
    %v3429 = vunpack.c.h.b16 %v3191
    %v3430 = vunpack.c.l.b16 %v3192
    %v3431 = vunpack.c.h.b16 %v3192
    %v3432 = vunpack.c.l.b16 %v3193
    %v3433 = vunpack.c.h.b16 %v3193
    %v3434 = vunpack.c.l.b16 %v3194
    %v3435 = vunpack.c.h.b16 %v3194
    %v3436 = vunpack.c.l.b16 %v3195
    %v3437 = vunpack.c.h.b16 %v3195
    %v3438 = vunpack.c.l.b16 %v3196
    %v3439 = vunpack.c.h.b16 %v3196
    %v3440 = vunpack.c.l.b16 %v3197
    %v3441 = vunpack.c.h.b16 %v3197
    %v3442 = vunpack.c.l.b16 %v3198
    %v3443 = vunpack.c.h.b16 %v3198
    %v3444 = vunpack.c.l.b16 %v3199
    %v3445 = vunpack.c.h.b16 %v3199
    %v3446 = vunpack.c.l.b16 %v3200
    %v3447 = vunpack.c.h.b16 %v3200
    %v3448 = vunpack.c.l.b16 %v3201
    %v3449 = vunpack.c.h.b16 %v3201
    %v3450 = vunpack.c.l.b16 %v3202
    %v3451 = vunpack.c.h.b16 %v3202
    %v3452 = vunpack.c.l.b16 %v3203
    %v3453 = vunpack.c.h.b16 %v3203
    %v3454 = vunpack.c.l.b16 %v3204
    %v3455 = vunpack.c.h.b16 %v3204
    %v3456 = vunpack.c.l.b16 %v3205
    %v3457 = vunpack.c.h.b16 %v3205
    %v3458 = vunpack.c.l.b16 %v3206
    %v3459 = vunpack.c.h.b16 %v3206
    %v3460 = vunpack.c.l.b16 %v3207
    %v3461 = vunpack.c.h.b16 %v3207
    %v3462 = vunpack.c.l.b16 %v3208
    %v3463 = vunpack.c.h.b16 %v3208
    %v3464 = vunpack.c.l.b16 %v3209
    %v3465 = vunpack.c.h.b16 %v3209
    %v3466 = vunpack.c.l.b16 %v3210
    %v3467 = vunpack.c.h.b16 %v3210
    %v3468 = vunpack.c.l.b16 %v3211
    %v3469 = vunpack.c.h.b16 %v3211
    %v3470 = vunpack.c.l.b16 %v3212
    %v3471 = vunpack.c.h.b16 %v3212
    %v3472 = vunpack.c.l.b16 %v3213
    %v3473 = vunpack.c.h.b16 %v3213
    %v3474 = vunpack.c.l.b16 %v3214
    %v3475 = vunpack.c.h.b16 %v3214
    %v3476 = vunpack.c.l.b16 %v3215
    %v3477 = vunpack.c.h.b16 %v3215
    %v3478 = vunpack.c.l.b16 %v3216
    %v3479 = vunpack.c.h.b16 %v3216
    %v3480 = vunpack.c.l.b16 %v3217
    %v3481 = vunpack.c.h.b16 %v3217
    %v3482 = vunpack.c.l.b16 %v3218
    %v3483 = vunpack.c.h.b16 %v3218
    %v3484 = vunpack.c.l.b16 %v3219
    %v3485 = vunpack.c.h.b16 %v3219
    %v3486 = vunpack.c.l.b16 %v3220
    %v3487 = vunpack.c.h.b16 %v3220
    %v3488 = vunpack.c.l.b16 %v3221
    %v3489 = vunpack.c.h.b16 %v3221
    %v3490 = vunpack.c.l.b16 %v3222
    %v3491 = vunpack.c.h.b16 %v3222
    %v3492 = vunpack.c.l.b16 %v3223
    %v3493 = vunpack.c.h.b16 %v3223
    %v3494 = vunpack.c.l.b16 %v3224
    %v3495 = vunpack.c.h.b16 %v3224
    %v3496 = vunpack.c.l.b16 %v3225
    %v3497 = vunpack.c.h.b16 %v3225
    %v3498 = vunpack.c.l.b16 %v3226
    %v3499 = vunpack.c.h.b16 %v3226
    %v3500 = vunpack.c.l.b16 %v3227
    %v3501 = vunpack.c.h.b16 %v3227
    %v3502 = vunpack.c.l.b16 %v3228
    %v3503 = vunpack.c.h.b16 %v3228
    %v3504 = vunpack.c.l.b16 %v3229
    %v3505 = vunpack.c.h.b16 %v3229
    %v3506 = vunpack.c.l.b16 %v3230
    %v3507 = vunpack.c.h.b16 %v3230
    %v3508 = vunpack.c.l.b16 %v3231
    %v3509 = vunpack.c.h.b16 %v3231
    %v3510 = vunpack.c.l.b16 %v3232
    %v3511 = vunpack.c.h.b16 %v3232
    %v3512 = vunpack.c.l.b16 %v3233
    %v3513 = vunpack.c.h.b16 %v3233
    %v3514 = vunpack.c.l.b16 %v3234
    %v3515 = vunpack.c.h.b16 %v3234
    %v3516 = vunpack.c.l.b16 %v3235
    %v3517 = vunpack.c.h.b16 %v3235
    %v3518 = vunpack.c.l.b16 %v3236
    %v3519 = vunpack.c.h.b16 %v3236
    %v3520 = vunpack.c.l.b16 %v3237
    %v3521 = vunpack.c.h.b16 %v3237
    %v3522 = vunpack.c.l.b16 %v3238
    %v3523 = vunpack.c.h.b16 %v3238
    %v3524 = vunpack.c.l.b16 %v3239
    %v3525 = vunpack.c.h.b16 %v3239
    %v3526 = vunpack.c.l.b16 %v3240
    %v3527 = vunpack.c.h.b16 %v3240
    %v3528 = vunpack.c.l.b16 %v3241
    %v3529 = vunpack.c.h.b16 %v3241
    %v3530 = vunpack.c.l.b16 %v3242
    %v3531 = vunpack.c.h.b16 %v3242
    %v3532 = vunpack.c.l.b16 %v3243
    %v3533 = vunpack.c.h.b16 %v3243
    %v3534 = vunpack.c.l.b16 %v3244
    %v3535 = vunpack.c.h.b16 %v3244
    %v3536 = vunpack.c.l.b16 %v3245
    %v3537 = vunpack.c.h.b16 %v3245
    %v3538 = vunpack.c.l.b16 %v3246
    %v3539 = vunpack.c.h.b16 %v3246
    %v3540 = vunpack.c.l.b16 %v3247
    %v3541 = vunpack.c.h.b16 %v3247
    %v3542 = vpack.c.b16 %v3352, %v3350
    %v3543 = vpack.c.b16 %v3353, %v3351
    %v3544 = vpack.c.b16 %v3356, %v3354
    %v3545 = vpack.c.b16 %v3357, %v3355
    %v3546 = vpack.c.b16 %v3360, %v3358
    %v3547 = vpack.c.b16 %v3361, %v3359
    %v3548 = vpack.c.b16 %v3364, %v3362
    %v3549 = vpack.c.b16 %v3365, %v3363
    %v3550 = vpack.c.b16 %v3368, %v3366
    %v3551 = vpack.c.b16 %v3369, %v3367
    %v3552 = vpack.c.b16 %v3372, %v3370
    %v3553 = vpack.c.b16 %v3373, %v3371
    %v3554 = vpack.c.b16 %v3376, %v3374
    %v3555 = vpack.c.b16 %v3377, %v3375
    %v3556 = vpack.c.b16 %v3380, %v3378
    %v3557 = vpack.c.b16 %v3381, %v3379
    %v3558 = vpack.c.b16 %v3384, %v3382
    %v3559 = vpack.c.b16 %v3385, %v3383
    %v3560 = vpack.c.b16 %v3388, %v3386
    %v3561 = vpack.c.b16 %v3389, %v3387
    %v3562 = vpack.c.b16 %v3392, %v3390
    %v3563 = vpack.c.b16 %v3393, %v3391
    %v3564 = vpack.c.b16 %v3396, %v3394
    %v3565 = vpack.c.b16 %v3397, %v3395
    %v3566 = vpack.c.b16 %v3400, %v3398
    %v3567 = vpack.c.b16 %v3401, %v3399
    %v3568 = vpack.c.b16 %v3404, %v3402
    %v3569 = vpack.c.b16 %v3405, %v3403
    %v3570 = vpack.c.b16 %v3408, %v3406
    %v3571 = vpack.c.b16 %v3409, %v3407
    %v3572 = vpack.c.b16 %v3412, %v3410
    %v3573 = vpack.c.b16 %v3413, %v3411
    %v3574 = vpack.c.b16 %v3416, %v3414
    %v3575 = vpack.c.b16 %v3417, %v3415
    %v3576 = vpack.c.b16 %v3420, %v3418
    %v3577 = vpack.c.b16 %v3421, %v3419
    %v3578 = vpack.c.b16 %v3424, %v3422
    %v3579 = vpack.c.b16 %v3425, %v3423
    %v3580 = vpack.c.b16 %v3428, %v3426
    %v3581 = vpack.c.b16 %v3429, %v3427
    %v3582 = vpack.c.b16 %v3432, %v3430
    %v3583 = vpack.c.b16 %v3433, %v3431
    %v3584 = vpack.c.b16 %v3436, %v3434
    %v3585 = vpack.c.b16 %v3437, %v3435
    %v3586 = vpack.c.b16 %v3440, %v3438
    %v3587 = vpack.c.b16 %v3441, %v3439
    %v3588 = vpack.c.b16 %v3444, %v3442
    %v3589 = vpack.c.b16 %v3445, %v3443
    %v3590 = vpack.c.b16 %v3448, %v3446
    %v3591 = vpack.c.b16 %v3449, %v3447
    %v3592 = vpack.c.b16 %v3452, %v3450
    %v3593 = vpack.c.b16 %v3453, %v3451
    %v3594 = vpack.c.b16 %v3456, %v3454
    %v3595 = vpack.c.b16 %v3457, %v3455
    %v3596 = vpack.c.b16 %v3460, %v3458
    %v3597 = vpack.c.b16 %v3461, %v3459
    %v3598 = vpack.c.b16 %v3464, %v3462
    %v3599 = vpack.c.b16 %v3465, %v3463
    %v3600 = vpack.c.b16 %v3468, %v3466
    %v3601 = vpack.c.b16 %v3469, %v3467
    %v3602 = vpack.c.b16 %v3472, %v3470
    %v3603 = vpack.c.b16 %v3473, %v3471
    %v3604 = vpack.c.b16 %v3476, %v3474
    %v3605 = vpack.c.b16 %v3477, %v3475
    %v3606 = vpack.c.b16 %v3480, %v3478
    %v3607 = vpack.c.b16 %v3481, %v3479
    %v3608 = vpack.c.b16 %v3484, %v3482
    %v3609 = vpack.c.b16 %v3485, %v3483
    %v3610 = vpack.c.b16 %v3488, %v3486
    %v3611 = vpack.c.b16 %v3489, %v3487
    %v3612 = vpack.c.b16 %v3492, %v3490
    %v3613 = vpack.c.b16 %v3493, %v3491
    %v3614 = vpack.c.b16 %v3496, %v3494
    %v3615 = vpack.c.b16 %v3497, %v3495
    %v3616 = vpack.c.b16 %v3500, %v3498
    %v3617 = vpack.c.b16 %v3501, %v3499
    %v3618 = vpack.c.b16 %v3504, %v3502
    %v3619 = vpack.c.b16 %v3505, %v3503
    %v3620 = vpack.c.b16 %v3508, %v3506
    %v3621 = vpack.c.b16 %v3509, %v3507
    %v3622 = vpack.c.b16 %v3512, %v3510
    %v3623 = vpack.c.b16 %v3513, %v3511
    %v3624 = vpack.c.b16 %v3516, %v3514
    %v3625 = vpack.c.b16 %v3517, %v3515
    %v3626 = vpack.c.b16 %v3520, %v3518
    %v3627 = vpack.c.b16 %v3521, %v3519
    %v3628 = vpack.c.b16 %v3524, %v3522
    %v3629 = vpack.c.b16 %v3525, %v3523
    %v3630 = vpack.c.b16 %v3528, %v3526
    %v3631 = vpack.c.b16 %v3529, %v3527
    %v3632 = vpack.c.b16 %v3532, %v3530
    %v3633 = vpack.c.b16 %v3533, %v3531
    %v3634 = vpack.c.b16 %v3536, %v3534
    %v3635 = vpack.c.b16 %v3537, %v3535
    %v3636 = vpack.c.b16 %v3540, %v3538
    %v3637 = vpack.c.b16 %v3541, %v3539
    %3734 = vmatpush.bf16.msra.mxu0 %v3556
    %3735 = vmatpush.bf16.msra.mxu0 %v3554
    %3736 = vmatpush.bf16.msra.mxu0 %v3552
    %3737 = vmatpush.bf16.msra.mxu0 %v3550
    %3738 = vmatpush.bf16.msra.mxu0 %v3548
    %3739 = vmatpush.bf16.msra.mxu0 %v3546
    %3740 = vmatpush.bf16.msra.mxu0 %v3544
    %3741 = vmatpush.bf16.msra.mxu0 %v3542
    %3742 = vmatmul.bf16.gmra.mxu0 %v2644
    %v3743 = vpop.f32.mrf.mxu0
    %v3744 = vadd.f32 %v3250, %v3743
    %v3745 = vpop.f32.mrf.mxu0
    %v3746 = vadd.f32 %v3250, %v3745
    %3747 = vdwg.mxu0
    %3748 = vmatpush.bf16.msra.mxu0 %v3572
    %3749 = vmatpush.bf16.msra.mxu0 %v3570
    %3750 = vmatpush.bf16.msra.mxu0 %v3568
    %3751 = vmatpush.bf16.msra.mxu0 %v3566
    %3752 = vmatpush.bf16.msra.mxu0 %v3564
    %3753 = vmatpush.bf16.msra.mxu0 %v3562
    %3754 = vmatpush.bf16.msra.mxu0 %v3560
    %3755 = vmatpush.bf16.msra.mxu0 %v3558
    %3756 = vmatmul.bf16.gmra.mxu0 %v2645
    %v3757 = vpop.f32.mrf.mxu0
    %v3758 = vadd.f32 %v3744, %v3757
    %v3759 = vpop.f32.mrf.mxu0
    %v3760 = vadd.f32 %v3746, %v3759
    %3761 = vdwg.mxu0
    %3762 = vmatpush.bf16.msra.mxu0 %v3588
    %3763 = vmatpush.bf16.msra.mxu0 %v3586
    %3764 = vmatpush.bf16.msra.mxu0 %v3584
    %3765 = vmatpush.bf16.msra.mxu0 %v3582
    %3766 = vmatpush.bf16.msra.mxu0 %v3580
    %3767 = vmatpush.bf16.msra.mxu0 %v3578
    %3768 = vmatpush.bf16.msra.mxu0 %v3576
    %3769 = vmatpush.bf16.msra.mxu0 %v3574
    %3770 = vmatmul.bf16.gmra.mxu0 %v2646
    %v3771 = vpop.f32.mrf.mxu0
    %v3772 = vadd.f32 %v3758, %v3771
    %v3773 = vpop.f32.mrf.mxu0
    %v3774 = vadd.f32 %v3760, %v3773
    %3775 = vdwg.mxu0
    %3776 = vmatpush.bf16.msra.mxu0 %v3604
    %3777 = vmatpush.bf16.msra.mxu0 %v3602
    %3778 = vmatpush.bf16.msra.mxu0 %v3600
    %3779 = vmatpush.bf16.msra.mxu0 %v3598
    %3780 = vmatpush.bf16.msra.mxu0 %v3596
    %3781 = vmatpush.bf16.msra.mxu0 %v3594
    %3782 = vmatpush.bf16.msra.mxu0 %v3592
    %3783 = vmatpush.bf16.msra.mxu0 %v3590
    %3784 = vmatmul.bf16.gmra.mxu0 %v2647
    %v3785 = vpop.f32.mrf.mxu0
    %v3786 = vadd.f32 %v3772, %v3785
    %v3787 = vpop.f32.mrf.mxu0
    %v3788 = vadd.f32 %v3774, %v3787
    %3789 = vdwg.mxu0
    %3790 = vmatpush.bf16.msra.mxu0 %v3620
    %3791 = vmatpush.bf16.msra.mxu0 %v3618
    %3792 = vmatpush.bf16.msra.mxu0 %v3616
    %3793 = vmatpush.bf16.msra.mxu0 %v3614
    %3794 = vmatpush.bf16.msra.mxu0 %v3612
    %3795 = vmatpush.bf16.msra.mxu0 %v3610
    %3796 = vmatpush.bf16.msra.mxu0 %v3608
    %3797 = vmatpush.bf16.msra.mxu0 %v3606
    %3798 = vmatmul.bf16.gmra.mxu0 %v2648
    %v3799 = vpop.f32.mrf.mxu0
    %v3800 = vadd.f32 %v3786, %v3799
    %v3801 = vpop.f32.mrf.mxu0
    %v3802 = vadd.f32 %v3788, %v3801
    %3803 = vdwg.mxu0
    %3804 = vmatpush.bf16.msra.mxu0 %v3636
    %3805 = vmatpush.bf16.msra.mxu0 %v3634
    %3806 = vmatpush.bf16.msra.mxu0 %v3632
    %3807 = vmatpush.bf16.msra.mxu0 %v3630
    %3808 = vmatpush.bf16.msra.mxu0 %v3628
    %3809 = vmatpush.bf16.msra.mxu0 %v3626
    %3810 = vmatpush.bf16.msra.mxu0 %v3624
    %3811 = vmatpush.bf16.msra.mxu0 %v3622
    %3812 = vmatmul.bf16.gmra.mxu0 %v2649
    %v3813 = vpop.f32.mrf.mxu0
    %v3814 = vadd.f32 %v3800, %v3813
    %v3815 = vpop.f32.mrf.mxu0
    %v3816 = vadd.f32 %v3802, %v3815
    %3817 = vdwg.mxu0
    %3818 = vmatpush.bf16.msra.mxu0 %v3557
    %3819 = vmatpush.bf16.msra.mxu0 %v3555
    %3820 = vmatpush.bf16.msra.mxu0 %v3553
    %3821 = vmatpush.bf16.msra.mxu0 %v3551
    %3822 = vmatpush.bf16.msra.mxu0 %v3549
    %3823 = vmatpush.bf16.msra.mxu0 %v3547
    %3824 = vmatpush.bf16.msra.mxu0 %v3545
    %3825 = vmatpush.bf16.msra.mxu0 %v3543
    %3826 = vmatmul.bf16.gmra.mxu0 %v2644
    %v3827 = vpop.f32.mrf.mxu0
    %v3828 = vadd.f32 %v3251, %v3827
    %v3829 = vpop.f32.mrf.mxu0
    %v3830 = vadd.f32 %v3251, %v3829
    %3831 = vdwg.mxu0
    %3832 = vmatpush.bf16.msra.mxu0 %v3573
    %3833 = vmatpush.bf16.msra.mxu0 %v3571
    %3834 = vmatpush.bf16.msra.mxu0 %v3569
    %3835 = vmatpush.bf16.msra.mxu0 %v3567
    %3836 = vmatpush.bf16.msra.mxu0 %v3565
    %3837 = vmatpush.bf16.msra.mxu0 %v3563
    %3838 = vmatpush.bf16.msra.mxu0 %v3561
    %3839 = vmatpush.bf16.msra.mxu0 %v3559
    %3840 = vmatmul.bf16.gmra.mxu0 %v2645
    %v3841 = vpop.f32.mrf.mxu0
    %v3842 = vadd.f32 %v3828, %v3841
    %v3843 = vpop.f32.mrf.mxu0
    %v3844 = vadd.f32 %v3830, %v3843
    %3845 = vdwg.mxu0
    %3846 = vmatpush.bf16.msra.mxu0 %v3589
    %3847 = vmatpush.bf16.msra.mxu0 %v3587
    %3848 = vmatpush.bf16.msra.mxu0 %v3585
    %3849 = vmatpush.bf16.msra.mxu0 %v3583
    %3850 = vmatpush.bf16.msra.mxu0 %v3581
    %3851 = vmatpush.bf16.msra.mxu0 %v3579
    %3852 = vmatpush.bf16.msra.mxu0 %v3577
    %3853 = vmatpush.bf16.msra.mxu0 %v3575
    %3854 = vmatmul.bf16.gmra.mxu0 %v2646
    %v3855 = vpop.f32.mrf.mxu0
    %v3856 = vadd.f32 %v3842, %v3855
    %v3857 = vpop.f32.mrf.mxu0
    %v3858 = vadd.f32 %v3844, %v3857
    %3859 = vdwg.mxu0
    %3860 = vmatpush.bf16.msra.mxu0 %v3605
    %3861 = vmatpush.bf16.msra.mxu0 %v3603
    %3862 = vmatpush.bf16.msra.mxu0 %v3601
    %3863 = vmatpush.bf16.msra.mxu0 %v3599
    %3864 = vmatpush.bf16.msra.mxu0 %v3597
    %3865 = vmatpush.bf16.msra.mxu0 %v3595
    %3866 = vmatpush.bf16.msra.mxu0 %v3593
    %3867 = vmatpush.bf16.msra.mxu0 %v3591
    %3868 = vmatmul.bf16.gmra.mxu0 %v2647
    %v3869 = vpop.f32.mrf.mxu0
    %v3870 = vadd.f32 %v3856, %v3869
    %v3871 = vpop.f32.mrf.mxu0
    %v3872 = vadd.f32 %v3858, %v3871
    %3873 = vdwg.mxu0
    %3874 = vmatpush.bf16.msra.mxu0 %v3621
    %3875 = vmatpush.bf16.msra.mxu0 %v3619
    %3876 = vmatpush.bf16.msra.mxu0 %v3617
    %3877 = vmatpush.bf16.msra.mxu0 %v3615
    %3878 = vmatpush.bf16.msra.mxu0 %v3613
    %3879 = vmatpush.bf16.msra.mxu0 %v3611
    %3880 = vmatpush.bf16.msra.mxu0 %v3609
    %3881 = vmatpush.bf16.msra.mxu0 %v3607
    %3882 = vmatmul.bf16.gmra.mxu0 %v2648
    %v3883 = vpop.f32.mrf.mxu0
    %v3884 = vadd.f32 %v3870, %v3883
    %v3885 = vpop.f32.mrf.mxu0
    %v3886 = vadd.f32 %v3872, %v3885
    %3887 = vdwg.mxu0
    %3888 = vmatpush.bf16.msra.mxu0 %v3637
    %3889 = vmatpush.bf16.msra.mxu0 %v3635
    %3890 = vmatpush.bf16.msra.mxu0 %v3633
    %3891 = vmatpush.bf16.msra.mxu0 %v3631
    %3892 = vmatpush.bf16.msra.mxu0 %v3629
    %3893 = vmatpush.bf16.msra.mxu0 %v3627
    %3894 = vmatpush.bf16.msra.mxu0 %v3625
    %3895 = vmatpush.bf16.msra.mxu0 %v3623
    %3896 = vmatmul.bf16.gmra.mxu0 %v2649
    %v3897 = vpop.f32.mrf.mxu0
    %v3898 = vadd.f32 %v3884, %v3897
    %v3899 = vpop.f32.mrf.mxu0
    %v3900 = vadd.f32 %v3886, %v3899
    %3901 = vdwg.mxu0
    %v3902 = vpack.c.bf16 %v3094, %v3092
    %v3903 = vpack.c.bf16 %v3150, %v3148
    %v3904 = vld [vmem:[#allocation12] sm:$0xff]
    %v3905 = vld [vmem:[#allocation12 + $0x8] sm:$0xff]
    %v3906 = vld [vmem:[#allocation12 + $0x10] sm:$0xff]
    %v3907 = vld [vmem:[#allocation12 + $0x18] sm:$0xff]
    %v3908 = vld [vmem:[#allocation12 + $0x20] sm:$0xff]
    %v3909 = vld [vmem:[#allocation12 + $0x28] sm:$0xff]
    %v3910 = vld [vmem:[#allocation12 + $0x30] sm:$0xff]
    %v3911 = vld [vmem:[#allocation12 + $0x38] sm:$0xff]
    %v3912 = vld [vmem:[#allocation12 + $0x40] sm:$0xff]
    %v3913 = vld [vmem:[#allocation12 + $0x48] sm:$0xff]
    %v3914 = vld [vmem:[#allocation12 + $0x50] sm:$0xff]
    %v3915 = vld [vmem:[#allocation12 + $0x58] sm:$0xff]
    %v3916 = vld [vmem:[#allocation12 + $0x60] sm:$0xff]
    %v3917 = vld [vmem:[#allocation12 + $0x68] sm:$0xff]
    %v3918 = vld [vmem:[#allocation12 + $0x70] sm:$0xff]
    %v3919 = vld [vmem:[#allocation12 + $0x78] sm:$0xff]
    %v3920 = vld [vmem:[#allocation12 + $0x80] sm:$0xff]
    %v3921 = vld [vmem:[#allocation12 + $0x88] sm:$0xff]
    %v3922 = vld [vmem:[#allocation12 + $0x90] sm:$0xff]
    %v3923 = vld [vmem:[#allocation12 + $0x98] sm:$0xff]
    %v3924 = vld [vmem:[#allocation12 + $0xa0] sm:$0xff]
    %v3925 = vld [vmem:[#allocation12 + $0xa8] sm:$0xff]
    %v3926 = vld [vmem:[#allocation12 + $0xb0] sm:$0xff]
    %v3927 = vld [vmem:[#allocation12 + $0xb8] sm:$0xff]
    %v3928 = vld [vmem:[#allocation12 + $0xc0] sm:$0xff]
    %v3929 = vld [vmem:[#allocation12 + $0xc8] sm:$0xff]
    %v3930 = vld [vmem:[#allocation12 + $0xd0] sm:$0xff]
    %v3931 = vld [vmem:[#allocation12 + $0xd8] sm:$0xff]
    %v3932 = vld [vmem:[#allocation12 + $0xe0] sm:$0xff]
    %v3933 = vld [vmem:[#allocation12 + $0xe8] sm:$0xff]
    %v3934 = vld [vmem:[#allocation12 + $0xf0] sm:$0xff]
    %v3935 = vld [vmem:[#allocation12 + $0xf8] sm:$0xff]
    %v3936 = vpack.c.bf16 %v3816, %v3814
    %v3937 = vpack.c.bf16 %v3900, %v3898
    %v3938 = vld [vmem:[#allocation13] sm:$0xff]
    %v3939 = vld [vmem:[#allocation13 + $0x8] sm:$0xff]
    %v3940 = vld [vmem:[#allocation13 + $0x10] sm:$0xff]
    %v3941 = vld [vmem:[#allocation13 + $0x18] sm:$0xff]
    %v3942 = vld [vmem:[#allocation13 + $0x20] sm:$0xff]
    %v3943 = vld [vmem:[#allocation13 + $0x28] sm:$0xff]
    %v3944 = vld [vmem:[#allocation13 + $0x30] sm:$0xff]
    %v3945 = vld [vmem:[#allocation13 + $0x38] sm:$0xff]
    %v3946 = vld [vmem:[#allocation13 + $0x40] sm:$0xff]
    %v3947 = vld [vmem:[#allocation13 + $0x48] sm:$0xff]
    %v3948 = vld [vmem:[#allocation13 + $0x50] sm:$0xff]
    %v3949 = vld [vmem:[#allocation13 + $0x58] sm:$0xff]
    %v3950 = vld [vmem:[#allocation13 + $0x60] sm:$0xff]
    %v3951 = vld [vmem:[#allocation13 + $0x68] sm:$0xff]
    %v3952 = vld [vmem:[#allocation13 + $0x70] sm:$0xff]
    %v3953 = vld [vmem:[#allocation13 + $0x78] sm:$0xff]
    %v3954 = vld [vmem:[#allocation13 + $0x80] sm:$0xff]
    %v3955 = vld [vmem:[#allocation13 + $0x88] sm:$0xff]
    %v3956 = vld [vmem:[#allocation13 + $0x90] sm:$0xff]
    %v3957 = vld [vmem:[#allocation13 + $0x98] sm:$0xff]
    %v3958 = vld [vmem:[#allocation13 + $0xa0] sm:$0xff]
    %v3959 = vld [vmem:[#allocation13 + $0xa8] sm:$0xff]
    %v3960 = vld [vmem:[#allocation13 + $0xb0] sm:$0xff]
    %v3961 = vld [vmem:[#allocation13 + $0xb8] sm:$0xff]
    %v3962 = vld [vmem:[#allocation13 + $0xc0] sm:$0xff]
    %v3963 = vld [vmem:[#allocation13 + $0xc8] sm:$0xff]
    %v3964 = vld [vmem:[#allocation13 + $0xd0] sm:$0xff]
    %v3965 = vld [vmem:[#allocation13 + $0xd8] sm:$0xff]
    %v3966 = vld [vmem:[#allocation13 + $0xe0] sm:$0xff]
    %v3967 = vld [vmem:[#allocation13 + $0xe8] sm:$0xff]
    %v3968 = vld [vmem:[#allocation13 + $0xf0] sm:$0xff]
    %v3969 = vld [vmem:[#allocation13 + $0xf8] sm:$0xff]
    %v4002 = vunpack.c.l.b16 %v3938
    %v4003 = vunpack.c.h.b16 %v3938
    %v4004 = vunpack.c.l.b16 %v3939
    %v4005 = vunpack.c.h.b16 %v3939
    %v4006 = vunpack.c.l.b16 %v3940
    %v4007 = vunpack.c.h.b16 %v3940
    %v4008 = vunpack.c.l.b16 %v3941
    %v4009 = vunpack.c.h.b16 %v3941
    %v4010 = vunpack.c.l.b16 %v3942
    %v4011 = vunpack.c.h.b16 %v3942
    %v4012 = vunpack.c.l.b16 %v3943
    %v4013 = vunpack.c.h.b16 %v3943
    %v4014 = vunpack.c.l.b16 %v3944
    %v4015 = vunpack.c.h.b16 %v3944
    %v4016 = vunpack.c.l.b16 %v3945
    %v4017 = vunpack.c.h.b16 %v3945
    %v4018 = vunpack.c.l.b16 %v3946
    %v4019 = vunpack.c.h.b16 %v3946
    %v4020 = vunpack.c.l.b16 %v3947
    %v4021 = vunpack.c.h.b16 %v3947
    %v4022 = vunpack.c.l.b16 %v3948
    %v4023 = vunpack.c.h.b16 %v3948
    %v4024 = vunpack.c.l.b16 %v3949
    %v4025 = vunpack.c.h.b16 %v3949
    %v4026 = vunpack.c.l.b16 %v3950
    %v4027 = vunpack.c.h.b16 %v3950
    %v4028 = vunpack.c.l.b16 %v3951
    %v4029 = vunpack.c.h.b16 %v3951
    %v4030 = vunpack.c.l.b16 %v3952
    %v4031 = vunpack.c.h.b16 %v3952
    %v4032 = vunpack.c.l.b16 %v3953
    %v4033 = vunpack.c.h.b16 %v3953
    %v4034 = vunpack.c.l.b16 %v3954
    %v4035 = vunpack.c.h.b16 %v3954
    %v4036 = vunpack.c.l.b16 %v3955
    %v4037 = vunpack.c.h.b16 %v3955
    %v4038 = vunpack.c.l.b16 %v3956
    %v4039 = vunpack.c.h.b16 %v3956
    %v4040 = vunpack.c.l.b16 %v3957
    %v4041 = vunpack.c.h.b16 %v3957
    %v4042 = vunpack.c.l.b16 %v3958
    %v4043 = vunpack.c.h.b16 %v3958
    %v4044 = vunpack.c.l.b16 %v3959
    %v4045 = vunpack.c.h.b16 %v3959
    %v4046 = vunpack.c.l.b16 %v3960
    %v4047 = vunpack.c.h.b16 %v3960
    %v4048 = vunpack.c.l.b16 %v3961
    %v4049 = vunpack.c.h.b16 %v3961
    %v4050 = vunpack.c.l.b16 %v3962
    %v4051 = vunpack.c.h.b16 %v3962
    %v4052 = vunpack.c.l.b16 %v3963
    %v4053 = vunpack.c.h.b16 %v3963
    %v4054 = vunpack.c.l.b16 %v3964
    %v4055 = vunpack.c.h.b16 %v3964
    %v4056 = vunpack.c.l.b16 %v3965
    %v4057 = vunpack.c.h.b16 %v3965
    %v4058 = vunpack.c.l.b16 %v3966
    %v4059 = vunpack.c.h.b16 %v3966
    %v4060 = vunpack.c.l.b16 %v3967
    %v4061 = vunpack.c.h.b16 %v3967
    %v4062 = vunpack.c.l.b16 %v3968
    %v4063 = vunpack.c.h.b16 %v3968
    %v4064 = vunpack.c.l.b16 %v3969
    %v4065 = vunpack.c.h.b16 %v3969
    %v4066 = vpack.c.b16 %v4004, %v4002
    %v4067 = vpack.c.b16 %v4005, %v4003
    %v4068 = vpack.c.b16 %v4008, %v4006
    %v4069 = vpack.c.b16 %v4009, %v4007
    %v4070 = vpack.c.b16 %v4012, %v4010
    %v4071 = vpack.c.b16 %v4013, %v4011
    %v4072 = vpack.c.b16 %v4016, %v4014
    %v4073 = vpack.c.b16 %v4017, %v4015
    %v4074 = vpack.c.b16 %v4020, %v4018
    %v4075 = vpack.c.b16 %v4021, %v4019
    %v4076 = vpack.c.b16 %v4024, %v4022
    %v4077 = vpack.c.b16 %v4025, %v4023
    %v4078 = vpack.c.b16 %v4028, %v4026
    %v4079 = vpack.c.b16 %v4029, %v4027
    %v4080 = vpack.c.b16 %v4032, %v4030
    %v4081 = vpack.c.b16 %v4033, %v4031
    %v4082 = vpack.c.b16 %v4036, %v4034
    %v4083 = vpack.c.b16 %v4037, %v4035
    %v4084 = vpack.c.b16 %v4040, %v4038
    %v4085 = vpack.c.b16 %v4041, %v4039
    %v4086 = vpack.c.b16 %v4044, %v4042
    %v4087 = vpack.c.b16 %v4045, %v4043
    %v4088 = vpack.c.b16 %v4048, %v4046
    %v4089 = vpack.c.b16 %v4049, %v4047
    %v4090 = vpack.c.b16 %v4052, %v4050
    %v4091 = vpack.c.b16 %v4053, %v4051
    %v4092 = vpack.c.b16 %v4056, %v4054
    %v4093 = vpack.c.b16 %v4057, %v4055
    %v4094 = vpack.c.b16 %v4060, %v4058
    %v4095 = vpack.c.b16 %v4061, %v4059
    %v4096 = vpack.c.b16 %v4064, %v4062
    %v4097 = vpack.c.b16 %v4065, %v4063
    %4130 = vmatpush.bf16.msra.mxu0 %v4080
    %4131 = vmatpush.bf16.msra.mxu0 %v4078
    %4132 = vmatpush.bf16.msra.mxu0 %v4076
    %4133 = vmatpush.bf16.msra.mxu0 %v4074
    %4134 = vmatpush.bf16.msra.mxu0 %v4072
    %4135 = vmatpush.bf16.msra.mxu0 %v4070
    %4136 = vmatpush.bf16.msra.mxu0 %v4068
    %4137 = vmatpush.bf16.msra.mxu0 %v4066
    %4138 = vmatmul.bf16.gmra.mxu0 %v3936
    %v4139 = vpop.f32.mrf.mxu0
    %v4140 = vadd.f32 0.0, %v4139
    %v4141 = vpop.f32.mrf.mxu0
    %v4142 = vadd.f32 0.0, %v4141
    %4143 = vdwg.mxu0
    %4144 = vmatpush.bf16.msra.mxu0 %v4096
    %4145 = vmatpush.bf16.msra.mxu0 %v4094
    %4146 = vmatpush.bf16.msra.mxu0 %v4092
    %4147 = vmatpush.bf16.msra.mxu0 %v4090
    %4148 = vmatpush.bf16.msra.mxu0 %v4088
    %4149 = vmatpush.bf16.msra.mxu0 %v4086
    %4150 = vmatpush.bf16.msra.mxu0 %v4084
    %4151 = vmatpush.bf16.msra.mxu0 %v4082
    %4152 = vmatmul.bf16.gmra.mxu0 %v3937
    %v4153 = vpop.f32.mrf.mxu0
    %v4154 = vadd.f32 %v4140, %v4153
    %v4155 = vpop.f32.mrf.mxu0
    %v4156 = vadd.f32 %v4142, %v4155
    %4157 = vdwg.mxu0
    %4158 = vmatpush.bf16.msra.mxu0 %v4081
    %4159 = vmatpush.bf16.msra.mxu0 %v4079
    %4160 = vmatpush.bf16.msra.mxu0 %v4077
    %4161 = vmatpush.bf16.msra.mxu0 %v4075
    %4162 = vmatpush.bf16.msra.mxu0 %v4073
    %4163 = vmatpush.bf16.msra.mxu0 %v4071
    %4164 = vmatpush.bf16.msra.mxu0 %v4069
    %4165 = vmatpush.bf16.msra.mxu0 %v4067
    %4166 = vmatmul.bf16.gmra.mxu0 %v3936
    %v4167 = vpop.f32.mrf.mxu0
    %v4168 = vadd.f32 0.0, %v4167
    %v4169 = vpop.f32.mrf.mxu0
    %v4170 = vadd.f32 0.0, %v4169
    %4171 = vdwg.mxu0
    %4172 = vmatpush.bf16.msra.mxu0 %v4097
    %4173 = vmatpush.bf16.msra.mxu0 %v4095
    %4174 = vmatpush.bf16.msra.mxu0 %v4093
    %4175 = vmatpush.bf16.msra.mxu0 %v4091
    %4176 = vmatpush.bf16.msra.mxu0 %v4089
    %4177 = vmatpush.bf16.msra.mxu0 %v4087
    %4178 = vmatpush.bf16.msra.mxu0 %v4085
    %4179 = vmatpush.bf16.msra.mxu0 %v4083
    %4180 = vmatmul.bf16.gmra.mxu0 %v3937
    %v4181 = vpop.f32.mrf.mxu0
    %v4182 = vadd.f32 %v4168, %v4181
    %v4183 = vpop.f32.mrf.mxu0
    %v4184 = vadd.f32 %v4170, %v4183
    %4185 = vdwg.mxu0
    %v4218 = vunpack.c.l.b16 %v3904
    %v4219 = vunpack.c.h.b16 %v3904
    %v4220 = vunpack.c.l.b16 %v3905
    %v4221 = vunpack.c.h.b16 %v3905
    %v4222 = vunpack.c.l.b16 %v3906
    %v4223 = vunpack.c.h.b16 %v3906
    %v4224 = vunpack.c.l.b16 %v3907
    %v4225 = vunpack.c.h.b16 %v3907
    %v4226 = vunpack.c.l.b16 %v3908
    %v4227 = vunpack.c.h.b16 %v3908
    %v4228 = vunpack.c.l.b16 %v3909
    %v4229 = vunpack.c.h.b16 %v3909
    %v4230 = vunpack.c.l.b16 %v3910
    %v4231 = vunpack.c.h.b16 %v3910
    %v4232 = vunpack.c.l.b16 %v3911
    %v4233 = vunpack.c.h.b16 %v3911
    %v4234 = vunpack.c.l.b16 %v3912
    %v4235 = vunpack.c.h.b16 %v3912
    %v4236 = vunpack.c.l.b16 %v3913
    %v4237 = vunpack.c.h.b16 %v3913
    %v4238 = vunpack.c.l.b16 %v3914
    %v4239 = vunpack.c.h.b16 %v3914
    %v4240 = vunpack.c.l.b16 %v3915
    %v4241 = vunpack.c.h.b16 %v3915
    %v4242 = vunpack.c.l.b16 %v3916
    %v4243 = vunpack.c.h.b16 %v3916
    %v4244 = vunpack.c.l.b16 %v3917
    %v4245 = vunpack.c.h.b16 %v3917
    %v4246 = vunpack.c.l.b16 %v3918
    %v4247 = vunpack.c.h.b16 %v3918
    %v4248 = vunpack.c.l.b16 %v3919
    %v4249 = vunpack.c.h.b16 %v3919
    %v4250 = vunpack.c.l.b16 %v3920
    %v4251 = vunpack.c.h.b16 %v3920
    %v4252 = vunpack.c.l.b16 %v3921
    %v4253 = vunpack.c.h.b16 %v3921
    %v4254 = vunpack.c.l.b16 %v3922
    %v4255 = vunpack.c.h.b16 %v3922
    %v4256 = vunpack.c.l.b16 %v3923
    %v4257 = vunpack.c.h.b16 %v3923
    %v4258 = vunpack.c.l.b16 %v3924
    %v4259 = vunpack.c.h.b16 %v3924
    %v4260 = vunpack.c.l.b16 %v3925
    %v4261 = vunpack.c.h.b16 %v3925
    %v4262 = vunpack.c.l.b16 %v3926
    %v4263 = vunpack.c.h.b16 %v3926
    %v4264 = vunpack.c.l.b16 %v3927
    %v4265 = vunpack.c.h.b16 %v3927
    %v4266 = vunpack.c.l.b16 %v3928
    %v4267 = vunpack.c.h.b16 %v3928
    %v4268 = vunpack.c.l.b16 %v3929
    %v4269 = vunpack.c.h.b16 %v3929
    %v4270 = vunpack.c.l.b16 %v3930
    %v4271 = vunpack.c.h.b16 %v3930
    %v4272 = vunpack.c.l.b16 %v3931
    %v4273 = vunpack.c.h.b16 %v3931
    %v4274 = vunpack.c.l.b16 %v3932
    %v4275 = vunpack.c.h.b16 %v3932
    %v4276 = vunpack.c.l.b16 %v3933
    %v4277 = vunpack.c.h.b16 %v3933
    %v4278 = vunpack.c.l.b16 %v3934
    %v4279 = vunpack.c.h.b16 %v3934
    %v4280 = vunpack.c.l.b16 %v3935
    %v4281 = vunpack.c.h.b16 %v3935
    %v4282 = vpack.c.b16 %v4220, %v4218
    %v4283 = vpack.c.b16 %v4221, %v4219
    %v4284 = vpack.c.b16 %v4224, %v4222
    %v4285 = vpack.c.b16 %v4225, %v4223
    %v4286 = vpack.c.b16 %v4228, %v4226
    %v4287 = vpack.c.b16 %v4229, %v4227
    %v4288 = vpack.c.b16 %v4232, %v4230
    %v4289 = vpack.c.b16 %v4233, %v4231
    %v4290 = vpack.c.b16 %v4236, %v4234
    %v4291 = vpack.c.b16 %v4237, %v4235
    %v4292 = vpack.c.b16 %v4240, %v4238
    %v4293 = vpack.c.b16 %v4241, %v4239
    %v4294 = vpack.c.b16 %v4244, %v4242
    %v4295 = vpack.c.b16 %v4245, %v4243
    %v4296 = vpack.c.b16 %v4248, %v4246
    %v4297 = vpack.c.b16 %v4249, %v4247
    %v4298 = vpack.c.b16 %v4252, %v4250
    %v4299 = vpack.c.b16 %v4253, %v4251
    %v4300 = vpack.c.b16 %v4256, %v4254
    %v4301 = vpack.c.b16 %v4257, %v4255
    %v4302 = vpack.c.b16 %v4260, %v4258
    %v4303 = vpack.c.b16 %v4261, %v4259
    %v4304 = vpack.c.b16 %v4264, %v4262
    %v4305 = vpack.c.b16 %v4265, %v4263
    %v4306 = vpack.c.b16 %v4268, %v4266
    %v4307 = vpack.c.b16 %v4269, %v4267
    %v4308 = vpack.c.b16 %v4272, %v4270
    %v4309 = vpack.c.b16 %v4273, %v4271
    %v4310 = vpack.c.b16 %v4276, %v4274
    %v4311 = vpack.c.b16 %v4277, %v4275
    %v4312 = vpack.c.b16 %v4280, %v4278
    %v4313 = vpack.c.b16 %v4281, %v4279
    %4346 = vmatpush.bf16.msra.mxu0 %v4296
    %4347 = vmatpush.bf16.msra.mxu0 %v4294
    %4348 = vmatpush.bf16.msra.mxu0 %v4292
    %4349 = vmatpush.bf16.msra.mxu0 %v4290
    %4350 = vmatpush.bf16.msra.mxu0 %v4288
    %4351 = vmatpush.bf16.msra.mxu0 %v4286
    %4352 = vmatpush.bf16.msra.mxu0 %v4284
    %4353 = vmatpush.bf16.msra.mxu0 %v4282
    %4354 = vmatmul.bf16.gmra.mxu0 %v3902
    %v4355 = vpop.f32.mrf.mxu0
    %v4356 = vadd.f32 %v4154, %v4355
    %v4357 = vpop.f32.mrf.mxu0
    %v4358 = vadd.f32 %v4156, %v4357
    %4359 = vdwg.mxu0
    %4360 = vmatpush.bf16.msra.mxu0 %v4312
    %4361 = vmatpush.bf16.msra.mxu0 %v4310
    %4362 = vmatpush.bf16.msra.mxu0 %v4308
    %4363 = vmatpush.bf16.msra.mxu0 %v4306
    %4364 = vmatpush.bf16.msra.mxu0 %v4304
    %4365 = vmatpush.bf16.msra.mxu0 %v4302
    %4366 = vmatpush.bf16.msra.mxu0 %v4300
    %4367 = vmatpush.bf16.msra.mxu0 %v4298
    %4368 = vmatmul.bf16.gmra.mxu0 %v3903
    %v4369 = vpop.f32.mrf.mxu0
    %v4370 = vadd.f32 %v4356, %v4369
    %v4371 = vpop.f32.mrf.mxu0
    %v4372 = vadd.f32 %v4358, %v4371
    %4373 = vdwg.mxu0
    %4374 = vmatpush.bf16.msra.mxu0 %v4297
    %4375 = vmatpush.bf16.msra.mxu0 %v4295
    %4376 = vmatpush.bf16.msra.mxu0 %v4293
    %4377 = vmatpush.bf16.msra.mxu0 %v4291
    %4378 = vmatpush.bf16.msra.mxu0 %v4289
    %4379 = vmatpush.bf16.msra.mxu0 %v4287
    %4380 = vmatpush.bf16.msra.mxu0 %v4285
    %4381 = vmatpush.bf16.msra.mxu0 %v4283
    %4382 = vmatmul.bf16.gmra.mxu0 %v3902
    %v4383 = vpop.f32.mrf.mxu0
    %v4384 = vadd.f32 %v4182, %v4383
    %v4385 = vpop.f32.mrf.mxu0
    %v4386 = vadd.f32 %v4184, %v4385
    %4387 = vdwg.mxu0
    %4388 = vmatpush.bf16.msra.mxu0 %v4313
    %4389 = vmatpush.bf16.msra.mxu0 %v4311
    %4390 = vmatpush.bf16.msra.mxu0 %v4309
    %4391 = vmatpush.bf16.msra.mxu0 %v4307
    %4392 = vmatpush.bf16.msra.mxu0 %v4305
    %4393 = vmatpush.bf16.msra.mxu0 %v4303
    %4394 = vmatpush.bf16.msra.mxu0 %v4301
    %4395 = vmatpush.bf16.msra.mxu0 %v4299
    %4396 = vmatmul.bf16.gmra.mxu0 %v3903
    %v4397 = vpop.f32.mrf.mxu0
    %v4398 = vadd.f32 %v4384, %v4397
    %v4399 = vpop.f32.mrf.mxu0
    %v4400 = vadd.f32 %v4386, %v4399
    %4401 = vdwg.mxu0
    %v4402 = vld [vmem:[#allocation15] sm:$0x3]
    %v4404 = vperm.slane %v4402, 0
    %v4405 = vperm.slane %v4402, 1
    %v4408 = vadd.f32 %v4370, %v4404
    %v4409 = vadd.f32 %v4398, %v4405
    %v4410 = vadd.f32 %v4372, %v4404
    %v4411 = vadd.f32 %v4400, %v4405
    %v4412 = vpack.c.bf16 %v4410, %v4408
    %v4413 = vpack.c.bf16 %v4411, %v4409
    %v4414 = vld [vmem:[#allocation16] sm:$0xf]
    %v4415 = vld [vmem:[#allocation16 + $0x4] sm:$0xf]
    %v4416 = vld [vmem:[#allocation16 + $0x8] sm:$0xf]
    %v4417 = vld [vmem:[#allocation16 + $0xc] sm:$0xf]
    %v4418 = vld [vmem:[#allocation16 + $0x10] sm:$0xf]
    %v4419 = vld [vmem:[#allocation16 + $0x14] sm:$0xf]
    %v4420 = vld [vmem:[#allocation16 + $0x18] sm:$0xf]
    %v4421 = vld [vmem:[#allocation16 + $0x1c] sm:$0xf]
    %v4422 = vld [vmem:[#allocation16 + $0x20] sm:$0xf]
    %v4423 = vld [vmem:[#allocation16 + $0x24] sm:$0xf]
    %v4424 = vld [vmem:[#allocation16 + $0x28] sm:$0xf]
    %v4425 = vld [vmem:[#allocation16 + $0x2c] sm:$0xf]
    %v4426 = vld [vmem:[#allocation16 + $0x30] sm:$0xf]
    %v4427 = vld [vmem:[#allocation16 + $0x34] sm:$0xf]
    %v4428 = vld [vmem:[#allocation16 + $0x38] sm:$0xf]
    %v4429 = vld [vmem:[#allocation16 + $0x3c] sm:$0xf]
    %v4430 = vld [vmem:[#allocation16 + $0x40] sm:$0xf]
    %v4431 = vld [vmem:[#allocation16 + $0x44] sm:$0xf]
    %v4432 = vld [vmem:[#allocation16 + $0x48] sm:$0xf]
    %v4433 = vld [vmem:[#allocation16 + $0x4c] sm:$0xf]
    %v4434 = vld [vmem:[#allocation16 + $0x50] sm:$0xf]
    %v4435 = vld [vmem:[#allocation16 + $0x54] sm:$0xf]
    %v4436 = vld [vmem:[#allocation16 + $0x58] sm:$0xf]
    %v4437 = vld [vmem:[#allocation16 + $0x5c] sm:$0xf]
    %v4438 = vld [vmem:[#allocation16 + $0x60] sm:$0xf]
    %v4439 = vld [vmem:[#allocation16 + $0x64] sm:$0xf]
    %v4440 = vld [vmem:[#allocation16 + $0x68] sm:$0xf]
    %v4441 = vld [vmem:[#allocation16 + $0x6c] sm:$0xf]
    %v4442 = vld [vmem:[#allocation16 + $0x70] sm:$0xf]
    %v4443 = vld [vmem:[#allocation16 + $0x74] sm:$0xf]
    %v4444 = vld [vmem:[#allocation16 + $0x78] sm:$0xf]
    %v4445 = vld [vmem:[#allocation16 + $0x7c] sm:$0xf]
    %v4446 = vld [vmem:[#allocation18] sm:$0x1]
    %v4448 = vperm.slane %v4446, 0
    %v4482 = vunpack.c.l.b16 %v4414
    %v4483 = vunpack.c.l.b16 %v4415
    %v4484 = vunpack.c.l.b16 %v4416
    %v4485 = vunpack.c.l.b16 %v4417
    %v4486 = vunpack.c.l.b16 %v4418
    %v4487 = vunpack.c.l.b16 %v4419
    %v4488 = vunpack.c.l.b16 %v4420
    %v4489 = vunpack.c.l.b16 %v4421
    %v4490 = vunpack.c.l.b16 %v4422
    %v4491 = vunpack.c.l.b16 %v4423
    %v4492 = vunpack.c.l.b16 %v4424
    %v4493 = vunpack.c.l.b16 %v4425
    %v4494 = vunpack.c.l.b16 %v4426
    %v4495 = vunpack.c.l.b16 %v4427
    %v4496 = vunpack.c.l.b16 %v4428
    %v4497 = vunpack.c.l.b16 %v4429
    %v4498 = vunpack.c.l.b16 %v4430
    %v4499 = vunpack.c.l.b16 %v4431
    %v4500 = vunpack.c.l.b16 %v4432
    %v4501 = vunpack.c.l.b16 %v4433
    %v4502 = vunpack.c.l.b16 %v4434
    %v4503 = vunpack.c.l.b16 %v4435
    %v4504 = vunpack.c.l.b16 %v4436
    %v4505 = vunpack.c.l.b16 %v4437
    %v4506 = vunpack.c.l.b16 %v4438
    %v4507 = vunpack.c.l.b16 %v4439
    %v4508 = vunpack.c.l.b16 %v4440
    %v4509 = vunpack.c.l.b16 %v4441
    %v4510 = vunpack.c.l.b16 %v4442
    %v4511 = vunpack.c.l.b16 %v4443
    %v4512 = vunpack.c.l.b16 %v4444
    %v4513 = vunpack.c.l.b16 %v4445
    %v4514 = vpack.c.b16 %v4483, %v4482
    %v4515 = vpack.c.b16 %v4485, %v4484
    %v4516 = vpack.c.b16 %v4487, %v4486
    %v4517 = vpack.c.b16 %v4489, %v4488
    %v4518 = vpack.c.b16 %v4491, %v4490
    %v4519 = vpack.c.b16 %v4493, %v4492
    %v4520 = vpack.c.b16 %v4495, %v4494
    %v4521 = vpack.c.b16 %v4497, %v4496
    %v4522 = vpack.c.b16 %v4499, %v4498
    %v4523 = vpack.c.b16 %v4501, %v4500
    %v4524 = vpack.c.b16 %v4503, %v4502
    %v4525 = vpack.c.b16 %v4505, %v4504
    %v4526 = vpack.c.b16 %v4507, %v4506
    %v4527 = vpack.c.b16 %v4509, %v4508
    %v4528 = vpack.c.b16 %v4511, %v4510
    %v4529 = vpack.c.b16 %v4513, %v4512
    %4546 = vmatpush.bf16.msra.mxu0 %v4521
    %4547 = vmatpush.bf16.msra.mxu0 %v4520
    %4548 = vmatpush.bf16.msra.mxu0 %v4519
    %4549 = vmatpush.bf16.msra.mxu0 %v4518
    %4550 = vmatpush.bf16.msra.mxu0 %v4517
    %4551 = vmatpush.bf16.msra.mxu0 %v4516
    %4552 = vmatpush.bf16.msra.mxu0 %v4515
    %4553 = vmatpush.bf16.msra.mxu0 %v4514
    %4554 = vmatmul.bf16.gmra.mxu0 %v4412
    %v4555 = vpop.f32.mrf.mxu0
    %v4556 = vadd.f32 %v4448, %v4555
    %v4557 = vpop.f32.mrf.mxu0
    %v4558 = vadd.f32 %v4448, %v4557
    %4559 = vdwg.mxu0
    %4560 = vmatpush.bf16.msra.mxu0 %v4529
    %4561 = vmatpush.bf16.msra.mxu0 %v4528
    %4562 = vmatpush.bf16.msra.mxu0 %v4527
    %4563 = vmatpush.bf16.msra.mxu0 %v4526
    %4564 = vmatpush.bf16.msra.mxu0 %v4525
    %4565 = vmatpush.bf16.msra.mxu0 %v4524
    %4566 = vmatpush.bf16.msra.mxu0 %v4523
    %4567 = vmatpush.bf16.msra.mxu0 %v4522
    %4568 = vmatmul.bf16.gmra.mxu0 %v4413
    %v4569 = vpop.f32.mrf.mxu0
    %v4570 = vadd.f32 %v4556, %v4569
    %v4571 = vpop.f32.mrf.mxu0
    %v4572 = vadd.f32 %v4558, %v4571
    %4573 = vdwg.mxu0
    %4574 = vst [vmem:[%s13] sm:$0xff] %v4570
    %4575 = vst [vmem:[%s13 + $0x8] sm:$0xff] %v4572
    // Predicated region
    $region98: #{multimodal_classifier_forward.1} parent=1 // pred_check
      _
    $region99: #{multimodal_classifier_forward.1} parent=1 // pred_check_branch
      %4577 = sbr.rel (0) target = $region101
    $region100: #{multimodal_classifier_forward.1} parent=1 // pred_region
      _
    $region101: #{multimodal_classifier_forward.1} parent=1 // pred_fallthru
      _
    // Predicated region
    $region102: #{multimodal_classifier_forward.1} parent=1 // pred_check
      _
    $region103: #{multimodal_classifier_forward.1} parent=1 // pred_check_branch
      %4579 = sbr.rel (0) target = $region105
    $region104: #{multimodal_classifier_forward.1} parent=1 // pred_region
      _
    $region105: #{multimodal_classifier_forward.1} parent=1 // pred_fallthru
      _
    %4580 = vsyncpa [#allocation3], 1
    %4581 = vsyncpa [#allocation5], 1
    %4582 = vsyncpa [#allocation8], 1
    %4583 = vsyncpa [#allocation11], 1
    %4584 = vsyncpa [#allocation14], 1
    %4585 = vsyncpa [#allocation17], 1

</llo_original>
